<compile_context>
chip_gen: v7x
topology: tpu7x:2x2x1
jax: 0.10.0
libtpu: 0.0.40
codegen_flags: <defaults>
</compile_context>

<pallas_src>
import functools

import jax
import jax.numpy as jnp
from jax.experimental import pallas as pl
from jax.experimental.pallas import tpu as pltpu

F32 = jnp.float32


# ----------------------------------------------------------------------------
# Pallas kernel 1: tiled matmul + bias (+ optional ReLU) for im2col'd convolutions.
#   x: (TM, K)  w: (K, NP)  b: (1, NP)  ->  o: (TM, NP), NP a multiple of 128.
# ----------------------------------------------------------------------------
def _matmul_bias_kernel(x_ref, w_ref, b_ref, o_ref, *, relu):
    acc = jnp.dot(x_ref[...], w_ref[...], preferred_element_type=F32)
    acc = acc + b_ref[...]
    if relu:
        acc = jnp.maximum(acc, 0.0)
    o_ref[...] = acc.astype(o_ref.dtype)


def _pick_tm(m, dtype, cap=256):
    """Largest divisor of m that is a multiple of the sublane packing and <= cap;
    falls back to a full-array block (always legal) -- never pads M."""
    mult = 16 if dtype == jnp.bfloat16 else 8
    if m <= cap:
        return m
    for tm in range(cap - cap % mult, mult - 1, -mult):
        if m % tm == 0:
            return tm
    return m


def pallas_matmul_bias(x, w, b, *, relu, out_dtype):
    """y = x @ w + b (optional ReLU). x:(M,K), w:(K,N), b:(N,). No M padding; N is
    zero-padded to a multiple of 128 so output stores are lane-dense (unmasked)."""
    M, K = x.shape
    N = w.shape[1]
    NP = max(128, ((N + 127) // 128) * 128)
    wp = jnp.pad(w, ((0, 0), (0, NP - N)))
    bp = jnp.pad(b.astype(F32), (0, NP - N)).reshape(1, NP)
    TM = _pick_tm(M, x.dtype)

    out = pl.pallas_call(
        functools.partial(_matmul_bias_kernel, relu=relu),
        out_shape=jax.ShapeDtypeStruct((M, NP), out_dtype),
        grid_spec=pltpu.PrefetchScalarGridSpec(
            num_scalar_prefetch=0,
            grid=(M // TM,),
            in_specs=[
                pl.BlockSpec((TM, K), lambda i: (i, 0)),
                pl.BlockSpec((K, NP), lambda i: (0, 0)),
                pl.BlockSpec((1, NP), lambda i: (0, 0)),
            ],
            out_specs=pl.BlockSpec((TM, NP), lambda i: (i, 0)),
        ),
        compiler_params=pltpu.CompilerParams(dimension_semantics=("parallel",)),
    )(x, wp, bp)
    return out[:, :N]


def jnp_matmul_bias(x, w, b, *, relu, out_dtype):
    """Pure-jnp mirror of pallas_matmul_bias (same math; used for verification)."""
    acc = jnp.dot(x, w, preferred_element_type=F32,
                  precision=jax.lax.Precision.HIGHEST) + b.astype(F32)
    if relu:
        acc = jnp.maximum(acc, 0.0)
    return acc.astype(out_dtype)


# ----------------------------------------------------------------------------
# Pallas kernel 2: fused FC stack  fc1 -> ReLU -> fc2 -> dfc1 -> ReLU -> dfc2 -> ReLU.
# Single launch, whole arrays in VMEM, intermediates live in vregs.
# z output is lane-padded to 128; the matching K rows of w3 are zero.
# ----------------------------------------------------------------------------
def _fused_fc_kernel(x_ref, w1_ref, b1_ref, w2_ref, b2_ref, w3_ref, b3_ref,
                     w4_ref, b4_ref, z_ref, d_ref):
    cdt = x_ref.dtype
    h = jnp.dot(x_ref[...], w1_ref[...], preferred_element_type=F32) + b1_ref[...]
    h = jnp.maximum(h, 0.0).astype(cdt)
    z = jnp.dot(h, w2_ref[...], preferred_element_type=F32) + b2_ref[...]
    z_ref[...] = z
    d = jnp.dot(z.astype(cdt), w3_ref[...], preferred_element_type=F32) + b3_ref[...]
    d = jnp.maximum(d, 0.0).astype(cdt)
    d = jnp.dot(d, w4_ref[...], preferred_element_type=F32) + b4_ref[...]
    d_ref[...] = jnp.maximum(d, 0.0).astype(d_ref.dtype)


def fused_fc_pallas(flat, w1, b1, w2, b2, w3, b3, w4, b4, latent_dim, out_dtype):
    B = flat.shape[0]
    z_pad, d = pl.pallas_call(
        _fused_fc_kernel,
        out_shape=(jax.ShapeDtypeStruct((B, w2.shape[1]), F32),
                   jax.ShapeDtypeStruct((B, w4.shape[1]), out_dtype)),
    )(flat, w1, b1, w2, b2, w3, b3, w4, b4)
    return z_pad[:, :latent_dim], d


def fused_fc_jnp(flat, w1, b1, w2, b2, w3, b3, w4, b4, latent_dim, out_dtype):
    P = jax.lax.Precision.HIGHEST
    cdt = flat.dtype
    h = jnp.maximum(jnp.dot(flat, w1, preferred_element_type=F32, precision=P) + b1,
                    0.0).astype(cdt)
    z = jnp.dot(h, w2, preferred_element_type=F32, precision=P) + b2
    d = jnp.maximum(jnp.dot(z.astype(cdt), w3, preferred_element_type=F32, precision=P) + b3,
                    0.0).astype(cdt)
    d = jnp.maximum(jnp.dot(d, w4, preferred_element_type=F32, precision=P) + b4, 0.0)
    return z[:, :latent_dim], d.astype(out_dtype)


# ----------------------------------------------------------------------------
# Layout glue (plain JAX, channels-last): im2col, zero-dilation, weight reshapes.
# ----------------------------------------------------------------------------
def im2col_nhwc(x, kh, kw, stride, pad):
    """x: (B,H,W,C) -> patches (B*Ho*Wo, kh*kw*C) with K ordered (kh, kw, C)."""
    B, H, W, C = x.shape
    if pad:
        x = jnp.pad(x, ((0, 0), (pad, pad), (pad, pad), (0, 0)))
    Ho = (H + 2 * pad - kh) // stride + 1
    Wo = (W + 2 * pad - kw) // stride + 1
    taps = [x[:, i:i + stride * Ho:stride, j:j + stride * Wo:stride, :]
            for i in range(kh) for j in range(kw)]
    patches = jnp.stack(taps, axis=3)                  # (B, Ho, Wo, kh*kw, C)
    return patches.reshape(B * Ho * Wo, kh * kw * C), Ho, Wo


def dilate_pad_nhwc(x, stride, pad):
    """Zero-insert (stride-1) zeros between pixels AND zero-pad the border, one pass."""
    B, H, W, C = x.shape
    Hd = (H - 1) * stride + 1 + 2 * pad
    Wd = (W - 1) * stride + 1 + 2 * pad
    y = jnp.zeros((B, Hd, Wd, C), x.dtype)
    return y.at[:, pad:pad + (H - 1) * stride + 1:stride,
                pad:pad + (W - 1) * stride + 1:stride, :].set(x)


def conv_w_to_mm(w):
    """PyTorch Conv2d weight (O, I, kh, kw) -> matmul weight (kh*kw*I, O)."""
    O, I, kh, kw = w.shape
    return w.transpose(2, 3, 1, 0).reshape(kh * kw * I, O)


def convtranspose_w_to_mm(w):
    """PyTorch ConvTranspose2d weight (I, O, kh, kw) -> equivalent stride-1 conv
    matmul weight (kh*kw*I, O): spatial flip + in/out channel swap."""
    return conv_w_to_mm(jnp.flip(w, axis=(2, 3)).transpose(1, 0, 2, 3))


def _rearrange_perm(order):
    """Permutation between PyTorch's flat index (c*49 + h*7 + w) and a channels-last
    flattening: 'hwc' for the encoder flatten, 'whc' for 'b (c h w) -> b c w h'."""
    k_old = (jnp.arange(32)[:, None, None] * 49
             + jnp.arange(7)[None, :, None] * 7
             + jnp.arange(7)[None, None, :])            # indexed [c, h, w]
    axes = {"hwc": (1, 2, 0), "whc": (2, 1, 0)}[order]
    return jnp.transpose(k_old, axes).reshape(-1)


# ----------------------------------------------------------------------------
# Parameters (deterministic, synthetic, PyTorch shapes/layouts)
# ----------------------------------------------------------------------------
def init_params(key, hidden_dim, latent_dim):
    ks = jax.random.split(key, 16)
    n = lambda k, shape, s: jax.random.normal(k, shape, F32) * s
    return {
        "conv1_w": n(ks[0], (16, 1, 4, 4), 0.2),      # Conv2d(1, 16, 4, s2, p1)
        "conv1_b": n(ks[1], (16,), 0.1),
        "conv2_w": n(ks[2], (32, 16, 4, 4), 0.05),    # Conv2d(16, 32, 4, s2, p1)
        "conv2_b": n(ks[3], (32,), 0.05),
        "fc1_w": n(ks[4], (hidden_dim, 7 * 7 * 32), 0.02),   # Linear(1568, hidden)
        "fc1_b": n(ks[5], (hidden_dim,), 0.02),
        "fc2_w": n(ks[6], (latent_dim, hidden_dim), 0.05),   # Linear(hidden, latent)
        "fc2_b": n(ks[7], (latent_dim,), 0.05),
        "dfc1_w": n(ks[8], (hidden_dim, latent_dim), 0.05),  # Linear(latent, hidden)
        "dfc1_b": n(ks[9], (hidden_dim,), 0.05),
        "dfc2_w": n(ks[10], (7 * 7 * 32, hidden_dim), 0.02), # Linear(hidden, 1568)
        "dfc2_b": n(ks[11], (7 * 7 * 32,), 0.02),
        "dconv1_w": n(ks[12], (32, 16, 4, 4), 0.05),  # ConvTranspose2d(32, 16, 4, s2, p1)
        "dconv1_b": n(ks[13], (16,), 0.05),
        "dconv2_w": n(ks[14], (16, 1, 4, 4), 0.1),    # ConvTranspose2d(16, 1, 4, s2, p1)
        "dconv2_b": n(ks[15], (1,), 0.1),
    }


# ----------------------------------------------------------------------------
# Forward pass (mirrors the PyTorch module exactly)
# ----------------------------------------------------------------------------
def autoencoder_forward(params, x, *, impl="pallas", compute_dtype=jnp.bfloat16):
    assert impl in ("pallas", "jnp")
    mm = pallas_matmul_bias if impl == "pallas" else jnp_matmul_bias
    fused_fc = fused_fc_pallas if impl == "pallas" else fused_fc_jnp
    cdt = compute_dtype
    B = x.shape[0]
    hidden = params["fc1_w"].shape[0]
    latent = params["fc2_w"].shape[0]
    assert latent <= 128
    LP = 128                                            # latent lane-padded to one tile

    # ---------------- encoder (NHWC end-to-end) ----------------
    h = jnp.transpose(x, (0, 2, 3, 1)).astype(cdt)                     # (B, 28, 28, 1)

    # Conv2d(1, 16, 4, stride=2, padding=1) + ReLU
    p, Ho, Wo = im2col_nhwc(h, 4, 4, 2, 1)                             # (B*14*14, 16)
    h = mm(p, conv_w_to_mm(params["conv1_w"]).astype(cdt),
           params["conv1_b"], relu=True, out_dtype=cdt)
    h = h.reshape(B, Ho, Wo, 16)

    # Conv2d(16, 32, 4, stride=2, padding=1) + ReLU
    p, Ho, Wo = im2col_nhwc(h, 4, 4, 2, 1)                             # (B*7*7, 256)
    h = mm(p, conv_w_to_mm(params["conv2_w"]).astype(cdt),
           params["conv2_b"], relu=True, out_dtype=cdt)                # (B*7*7, 32)
    flat = h.reshape(B, 7 * 7 * 32)                                    # (h, w, c) order

    # ------- fused FC stack: fc1 -> fc2 -> dfc1 -> dfc2, one pallas_call -------
    # The 'b c h w -> b (c h w)' flatten and 'b (c h w) -> b c w h' rearrange are
    # folded into a row permutation of fc1 and a column permutation of dfc2.
    perm_enc = _rearrange_perm("hwc")
    perm_dec = _rearrange_perm("whc")
    w1 = params["fc1_w"].T[perm_enc, :].astype(cdt)                    # (1568, hidden)
    b1 = params["fc1_b"].astype(F32).reshape(1, hidden)
    w2 = jnp.pad(params["fc2_w"].T, ((0, 0), (0, LP - latent))).astype(cdt)   # (hidden, 128)
    b2 = jnp.pad(params["fc2_b"].astype(F32), (0, LP - latent)).reshape(1, LP)
    w3 = jnp.pad(params["dfc1_w"].T, ((0, LP - latent), (0, 0))).astype(cdt)  # (128, hidden)
    b3 = params["dfc1_b"].astype(F32).reshape(1, hidden)
    w4 = params["dfc2_w"].T[:, perm_dec].astype(cdt)                   # (hidden, 1568)
    b4 = params["dfc2_b"][perm_dec].astype(F32).reshape(1, 7 * 7 * 32)

    z, d = fused_fc(flat, w1, b1, w2, b2, w3, b3, w4, b4, latent, cdt)
    d = d.reshape(B, 7, 7, 32)      # NHWC view of the module's 'b c w h' tensor

    # ---------------- decoder ----------------
    # ConvTranspose2d(32, 16, 4, stride=2, padding=1) + ReLU
    #   == zero-dilate by 2, pad by k-1-p = 2, stride-1 conv with flipped/swapped weight.
    up = dilate_pad_nhwc(d, 2, 2)                                      # (B, 17, 17, 32)
    p, Ho, Wo = im2col_nhwc(up, 4, 4, 1, 0)                            # (B*14*14, 512)
    d = mm(p, convtranspose_w_to_mm(params["dconv1_w"]).astype(cdt),
           params["dconv1_b"], relu=True, out_dtype=cdt)
    d = d.reshape(B, Ho, Wo, 16)

    # ConvTranspose2d(16, 1, 4, stride=2, padding=1)   (no activation)
    up = dilate_pad_nhwc(d, 2, 2)                                      # (B, 31, 31, 16)
    p, Ho, Wo = im2col_nhwc(up, 4, 4, 1, 0)                            # (B*28*28, 256)
    xr = mm(p, convtranspose_w_to_mm(params["dconv2_w"]).astype(cdt),
            params["dconv2_b"], relu=False, out_dtype=F32)
    x_prime = xr.reshape(B, Ho, Wo, 1).transpose(0, 3, 1, 2)           # back to NCHW

    return x_prime, z


# ----------------------------------------------------------------------------
# Independent NCHW reference (lax.conv_general_dilated, f32) for end-to-end checks.
# ----------------------------------------------------------------------------
def reference_forward_lax(params, x):
    P = jax.lax.Precision.HIGHEST
    dn = ("NCHW", "OIHW", "NCHW")
    B = x.shape[0]

    h = jax.lax.conv_general_dilated(x, params["conv1_w"], (2, 2), [(1, 1), (1, 1)],
                                     dimension_numbers=dn, precision=P)
    h = jax.nn.relu(h + params["conv1_b"].reshape(1, -1, 1, 1))
    h = jax.lax.conv_general_dilated(h, params["conv2_w"], (2, 2), [(1, 1), (1, 1)],
                                     dimension_numbers=dn, precision=P)
    h = jax.nn.relu(h + params["conv2_b"].reshape(1, -1, 1, 1))
    flat = h.reshape(B, 32 * 7 * 7)

    h = jax.nn.relu(jnp.dot(flat, params["fc1_w"].T, precision=P) + params["fc1_b"])
    z = jnp.dot(h, params["fc2_w"].T, precision=P) + params["fc2_b"]
    d = jax.nn.relu(jnp.dot(z, params["dfc1_w"].T, precision=P) + params["dfc1_b"])
    d = jax.nn.relu(jnp.dot(d, params["dfc2_w"].T, precision=P) + params["dfc2_b"])
    d = d.reshape(B, 32, 7, 7).transpose(0, 1, 3, 2)

    w = jnp.flip(params["dconv1_w"], axis=(2, 3)).transpose(1, 0, 2, 3)
    d = jax.lax.conv_general_dilated(d, w, (1, 1), [(2, 2), (2, 2)], lhs_dilation=(2, 2),
                                     dimension_numbers=dn, precision=P)
    d = jax.nn.relu(d + params["dconv1_b"].reshape(1, -1, 1, 1))
    w = jnp.flip(params["dconv2_w"], axis=(2, 3)).transpose(1, 0, 2, 3)
    xp = jax.lax.conv_general_dilated(d, w, (1, 1), [(2, 2), (2, 2)], lhs_dilation=(2, 2),
                                      dimension_numbers=dn, precision=P)
    xp = xp + params["dconv2_b"].reshape(1, -1, 1, 1)
    return xp, z


if __name__ == "__main__":
    B, HIDDEN, LATENT = 2, 32, 8
    key = jax.random.PRNGKey(0)
    pkey, xkey = jax.random.split(key)

    params = init_params(pkey, HIDDEN, LATENT)
    x = jax.random.normal(xkey, (B, 1, 28, 28), F32)

    fwd_pallas = jax.jit(functools.partial(autoencoder_forward, impl="pallas",
                                           compute_dtype=jnp.bfloat16))
    x_prime, z = fwd_pallas(params, x)
    jax.block_until_ready((x_prime, z))
    assert x_prime.shape == (B, 1, 28, 28) and x_prime.dtype == F32, (x_prime.shape, x_prime.dtype)
    assert z.shape == (B, LATENT) and z.dtype == F32, (z.shape, z.dtype)

    # Check 1: Pallas kernels vs a pure-jnp mirror of the exact same bf16 math.
    xj, zj = jax.jit(functools.partial(autoencoder_forward, impl="jnp",
                                       compute_dtype=jnp.bfloat16))(params, x)
    assert jnp.allclose(x_prime, xj, atol=5e-3, rtol=5e-3), float(jnp.max(jnp.abs(x_prime - xj)))
    assert jnp.allclose(z, zj, atol=5e-3, rtol=5e-3), float(jnp.max(jnp.abs(z - zj)))

    # Check 2: the NHWC im2col / weight-permutation lowering (run in f32) vs an
    # independent lax.conv NCHW reference of the PyTorch module.
    xf, zf = jax.jit(functools.partial(autoencoder_forward, impl="jnp",
                                       compute_dtype=F32))(params, x)
    xr, zr = jax.jit(reference_forward_lax)(params, x)
    assert jnp.allclose(xf, xr, atol=1e-4, rtol=1e-4), float(jnp.max(jnp.abs(xf - xr)))
    assert jnp.allclose(zf, zr, atol=1e-4, rtol=1e-4), float(jnp.max(jnp.abs(zf - zr)))

    print("KERNEL_OK")
</pallas_src>

<mosaic_0001>
module attributes {stable_mosaic.version = 11 : i64} {
  func.func private @main(%arg0: i32) attributes {dimension_semantics = [#tpu.dimension_semantics<core_parallel>], iteration_bounds = array<i64: 2>, tpu.core_type = #tpu.core_type<sc_scalar_subcore>, window_params = []} {
    return
  }
}

module attributes {stable_mosaic.version = 11 : i64} {
  func.func private @main(%arg0: i32) attributes {dimension_semantics = [#tpu.dimension_semantics<core_parallel>], iteration_bounds = array<i64: 2>, tpu.core_type = #tpu.core_type<sc_scalar_subcore>, window_params = []} {
    return
  }
}

module attributes {stable_mosaic.version = 11 : i64} {
  func.func @_matmul_bias_kernel(%arg0: i32, %arg1: memref<392x16xbf16, #tpu.memory_space<vmem>>, %arg2: memref<16x128xbf16, #tpu.memory_space<vmem>>, %arg3: memref<1x128xf32, #tpu.memory_space<vmem>>, %arg4: memref<392x128xbf16, #tpu.memory_space<vmem>>) attributes {dimension_semantics = [#tpu.dimension_semantics<parallel>], iteration_bounds = array<i64: 1>, scalar_prefetch = 0 : i64, scratch_operands = 0 : i64, tpu.core_type = #tpu.core_type<tc>, window_params = [{transform_indices = @transform_0, window_bounds = array<i64: 392, 16>}, {pipeline_mode = #tpu.pipeline_mode<synchronous>, transform_indices = @transform_1, window_bounds = array<i64: 16, 128>}, {pipeline_mode = #tpu.pipeline_mode<synchronous>, transform_indices = @transform_2, window_bounds = array<i64: 1, 128>}, {transform_indices = @transform_3, window_bounds = array<i64: 392, 128>}]} {
    %c0 = arith.constant 0 : index
    %c0_0 = arith.constant 0 : index
    %0 = vector.load %arg1[%c0, %c0_0] : memref<392x16xbf16, #tpu.memory_space<vmem>>, vector<392x16xbf16>
    %c0_1 = arith.constant 0 : index
    %c0_2 = arith.constant 0 : index
    %1 = vector.load %arg2[%c0_1, %c0_2] : memref<16x128xbf16, #tpu.memory_space<vmem>>, vector<16x128xbf16>
    %cst = arith.constant dense<0.000000e+00> : vector<392x128xf32>
    %2 = tpu.matmul %0, %1, %cst {dimension_numbers = #tpu.dot_dimension_numbers<[1], [0], [0], [1], [0, 0, 1, 1], [], []>} : vector<392x16xbf16>, vector<16x128xbf16>, vector<392x128xf32> -> vector<392x128xf32>
    %c0_3 = arith.constant 0 : index
    %c0_4 = arith.constant 0 : index
    %3 = vector.load %arg3[%c0_3, %c0_4] : memref<1x128xf32, #tpu.memory_space<vmem>>, vector<1x128xf32>
    %4 = vector.broadcast %3 : vector<1x128xf32> to vector<392x128xf32>
    %5 = arith.addf %2, %4 : vector<392x128xf32>
    %cst_5 = arith.constant 0.000000e+00 : f32
    %6 = vector.broadcast %cst_5 : f32 to vector<392x128xf32>
    %7 = arith.maximumf %5, %6 : vector<392x128xf32>
    %8 = arith.truncf %7 : vector<392x128xf32> to vector<392x128xbf16>
    %c0_6 = arith.constant 0 : index
    %c0_7 = arith.constant 0 : index
    %9 = vector.load %arg4[%c0_6, %c0_7] : memref<392x128xbf16, #tpu.memory_space<vmem>>, vector<392x128xbf16>
    tpu.vector_store %arg4[%c0_6, %c0_7], %8 {strides = array<i32>} : memref<392x128xbf16, #tpu.memory_space<vmem>>, vector<392x128xbf16>,
    return
  }
  func.func @transform_0(%arg0: i32) -> (i32, i32) {
    %c0_i32 = arith.constant 0 : i32
    %c0_i32_0 = arith.constant 0 : i32
    return %arg0, %c0_i32 : i32, i32
  }
  func.func @transform_1(%arg0: i32) -> (i32, i32) {
    %c0_i32 = arith.constant 0 : i32
    %c0_i32_0 = arith.constant 0 : i32
    %c0_i32_1 = arith.constant 0 : i32
    return %c0_i32, %c0_i32_0 : i32, i32
  }
  func.func @transform_2(%arg0: i32) -> (i32, i32) {
    %c0_i32 = arith.constant 0 : i32
    %c0_i32_0 = arith.constant 0 : i32
    %c0_i32_1 = arith.constant 0 : i32
    return %c0_i32, %c0_i32_0 : i32, i32
  }
  func.func @transform_3(%arg0: i32) -> (i32, i32) {
    %c0_i32 = arith.constant 0 : i32
    %c0_i32_0 = arith.constant 0 : i32
    return %arg0, %c0_i32 : i32, i32
  }
}

module attributes {stable_mosaic.version = 11 : i64} {
  func.func @_matmul_bias_kernel(%arg0: i32, %arg1: memref<98x256xbf16, #tpu.memory_space<vmem>>, %arg2: memref<256x128xbf16, #tpu.memory_space<vmem>>, %arg3: memref<1x128xf32, #tpu.memory_space<vmem>>, %arg4: memref<98x128xbf16, #tpu.memory_space<vmem>>) attributes {dimension_semantics = [#tpu.dimension_semantics<parallel>], iteration_bounds = array<i64: 1>, scalar_prefetch = 0 : i64, scratch_operands = 0 : i64, tpu.core_type = #tpu.core_type<tc>, window_params = [{transform_indices = @transform_0, window_bounds = array<i64: 98, 256>}, {pipeline_mode = #tpu.pipeline_mode<synchronous>, transform_indices = @transform_1, window_bounds = array<i64: 256, 128>}, {pipeline_mode = #tpu.pipeline_mode<synchronous>, transform_indices = @transform_2, window_bounds = array<i64: 1, 128>}, {transform_indices = @transform_3, window_bounds = array<i64: 98, 128>}]} {
    %c0 = arith.constant 0 : index
    %c0_0 = arith.constant 0 : index
    %0 = vector.load %arg1[%c0, %c0_0] : memref<98x256xbf16, #tpu.memory_space<vmem>>, vector<98x256xbf16>
    %c0_1 = arith.constant 0 : index
    %c0_2 = arith.constant 0 : index
    %1 = vector.load %arg2[%c0_1, %c0_2] : memref<256x128xbf16, #tpu.memory_space<vmem>>, vector<256x128xbf16>
    %cst = arith.constant dense<0.000000e+00> : vector<98x128xf32>
    %2 = tpu.matmul %0, %1, %cst {dimension_numbers = #tpu.dot_dimension_numbers<[1], [0], [0], [1], [0, 0, 1, 1], [], []>} : vector<98x256xbf16>, vector<256x128xbf16>, vector<98x128xf32> -> vector<98x128xf32>
    %c0_3 = arith.constant 0 : index
    %c0_4 = arith.constant 0 : index
    %3 = vector.load %arg3[%c0_3, %c0_4] : memref<1x128xf32, #tpu.memory_space<vmem>>, vector<1x128xf32>
    %4 = vector.broadcast %3 : vector<1x128xf32> to vector<98x128xf32>
    %5 = arith.addf %2, %4 : vector<98x128xf32>
    %cst_5 = arith.constant 0.000000e+00 : f32
    %6 = vector.broadcast %cst_5 : f32 to vector<98x128xf32>
    %7 = arith.maximumf %5, %6 : vector<98x128xf32>
    %8 = arith.truncf %7 : vector<98x128xf32> to vector<98x128xbf16>
    %c0_6 = arith.constant 0 : index
    %c0_7 = arith.constant 0 : index
    %9 = vector.load %arg4[%c0_6, %c0_7] : memref<98x128xbf16, #tpu.memory_space<vmem>>, vector<98x128xbf16>
    tpu.vector_store %arg4[%c0_6, %c0_7], %8 {strides = array<i32>} : memref<98x128xbf16, #tpu.memory_space<vmem>>, vector<98x128xbf16>,
    return
  }
  func.func @transform_0(%arg0: i32) -> (i32, i32) {
    %c0_i32 = arith.constant 0 : i32
    %c0_i32_0 = arith.constant 0 : i32
    return %arg0, %c0_i32 : i32, i32
  }
  func.func @transform_1(%arg0: i32) -> (i32, i32) {
    %c0_i32 = arith.constant 0 : i32
    %c0_i32_0 = arith.constant 0 : i32
    %c0_i32_1 = arith.constant 0 : i32
    return %c0_i32, %c0_i32_0 : i32, i32
  }
  func.func @transform_2(%arg0: i32) -> (i32, i32) {
    %c0_i32 = arith.constant 0 : i32
    %c0_i32_0 = arith.constant 0 : i32
    %c0_i32_1 = arith.constant 0 : i32
    return %c0_i32, %c0_i32_0 : i32, i32
  }
  func.func @transform_3(%arg0: i32) -> (i32, i32) {
    %c0_i32 = arith.constant 0 : i32
    %c0_i32_0 = arith.constant 0 : i32
    return %arg0, %c0_i32 : i32, i32
  }
}

module attributes {stable_mosaic.version = 11 : i64} {
  func.func @_fused_fc_kernel(%arg0: memref<2x1568xbf16, #tpu.memory_space<vmem>>, %arg1: memref<1568x32xbf16, #tpu.memory_space<vmem>>, %arg2: memref<1x32xf32, #tpu.memory_space<vmem>>, %arg3: memref<32x128xbf16, #tpu.memory_space<vmem>>, %arg4: memref<1x128xf32, #tpu.memory_space<vmem>>, %arg5: memref<128x32xbf16, #tpu.memory_space<vmem>>, %arg6: memref<1x32xf32, #tpu.memory_space<vmem>>, %arg7: memref<32x1568xbf16, #tpu.memory_space<vmem>>, %arg8: memref<1x1568xf32, #tpu.memory_space<vmem>>, %arg9: memref<2x128xf32, #tpu.memory_space<vmem>>, %arg10: memref<2x1568xbf16, #tpu.memory_space<vmem>>) attributes {dimension_semantics = [], scalar_prefetch = 0 : i64, scratch_operands = 0 : i64, tpu.core_type = #tpu.core_type<tc>} {
    %c0 = arith.constant 0 : index
    %c0_0 = arith.constant 0 : index
    %0 = vector.load %arg0[%c0, %c0_0] : memref<2x1568xbf16, #tpu.memory_space<vmem>>, vector<2x1568xbf16>
    %c0_1 = arith.constant 0 : index
    %c0_2 = arith.constant 0 : index
    %1 = vector.load %arg1[%c0_1, %c0_2] : memref<1568x32xbf16, #tpu.memory_space<vmem>>, vector<1568x32xbf16>
    %cst = arith.constant dense<0.000000e+00> : vector<2x32xf32>
    %2 = tpu.matmul %0, %1, %cst {dimension_numbers = #tpu.dot_dimension_numbers<[1], [0], [0], [1], [0, 0, 1, 1], [], []>} : vector<2x1568xbf16>, vector<1568x32xbf16>, vector<2x32xf32> -> vector<2x32xf32>
    %c0_3 = arith.constant 0 : index
    %c0_4 = arith.constant 0 : index
    %3 = vector.load %arg2[%c0_3, %c0_4] : memref<1x32xf32, #tpu.memory_space<vmem>>, vector<1x32xf32>
    %4 = vector.broadcast %3 : vector<1x32xf32> to vector<2x32xf32>
    %5 = arith.addf %2, %4 : vector<2x32xf32>
    %cst_5 = arith.constant 0.000000e+00 : f32
    %6 = vector.broadcast %cst_5 : f32 to vector<2x32xf32>
    %7 = arith.maximumf %5, %6 : vector<2x32xf32>
    %8 = arith.truncf %7 : vector<2x32xf32> to vector<2x32xbf16>
    %c0_6 = arith.constant 0 : index
    %c0_7 = arith.constant 0 : index
    %9 = vector.load %arg3[%c0_6, %c0_7] : memref<32x128xbf16, #tpu.memory_space<vmem>>, vector<32x128xbf16>
    %cst_8 = arith.constant dense<0.000000e+00> : vector<2x128xf32>
    %10 = tpu.matmul %8, %9, %cst_8 {dimension_numbers = #tpu.dot_dimension_numbers<[1], [0], [0], [1], [0, 0, 1, 1], [], []>} : vector<2x32xbf16>, vector<32x128xbf16>, vector<2x128xf32> -> vector<2x128xf32>
    %c0_9 = arith.constant 0 : index
    %c0_10 = arith.constant 0 : index
    %11 = vector.load %arg4[%c0_9, %c0_10] : memref<1x128xf32, #tpu.memory_space<vmem>>, vector<1x128xf32>
    %12 = vector.broadcast %11 : vector<1x128xf32> to vector<2x128xf32>
    %13 = arith.addf %10, %12 : vector<2x128xf32>
    %c0_11 = arith.constant 0 : index
    %c0_12 = arith.constant 0 : index
    %14 = vector.load %arg9[%c0_11, %c0_12] : memref<2x128xf32, #tpu.memory_space<vmem>>, vector<2x128xf32>
    tpu.vector_store %arg9[%c0_11, %c0_12], %13 {strides = array<i32>} : memref<2x128xf32, #tpu.memory_space<vmem>>, vector<2x128xf32>,
    %15 = arith.truncf %13 : vector<2x128xf32> to vector<2x128xbf16>
    %c0_13 = arith.constant 0 : index
    %c0_14 = arith.constant 0 : index
    %16 = vector.load %arg5[%c0_13, %c0_14] : memref<128x32xbf16, #tpu.memory_space<vmem>>, vector<128x32xbf16>
    %cst_15 = arith.constant dense<0.000000e+00> : vector<2x32xf32>
    %17 = tpu.matmul %15, %16, %cst_15 {dimension_numbers = #tpu.dot_dimension_numbers<[1], [0], [0], [1], [0, 0, 1, 1], [], []>} : vector<2x128xbf16>, vector<128x32xbf16>, vector<2x32xf32> -> vector<2x32xf32>
    %c0_16 = arith.constant 0 : index
    %c0_17 = arith.constant 0 : index
    %18 = vector.load %arg6[%c0_16, %c0_17] : memref<1x32xf32, #tpu.memory_space<vmem>>, vector<1x32xf32>
    %19 = vector.broadcast %18 : vector<1x32xf32> to vector<2x32xf32>
    %20 = arith.addf %17, %19 : vector<2x32xf32>
    %cst_18 = arith.constant 0.000000e+00 : f32
    %21 = vector.broadcast %cst_18 : f32 to vector<2x32xf32>
    %22 = arith.maximumf %20, %21 : vector<2x32xf32>
    %23 = arith.truncf %22 : vector<2x32xf32> to vector<2x32xbf16>
    %c0_19 = arith.constant 0 : index
    %c0_20 = arith.constant 0 : index
    %24 = vector.load %arg7[%c0_19, %c0_20] : memref<32x1568xbf16, #tpu.memory_space<vmem>>, vector<32x1568xbf16>
    %cst_21 = arith.constant dense<0.000000e+00> : vector<2x1568xf32>
    %25 = tpu.matmul %23, %24, %cst_21 {dimension_numbers = #tpu.dot_dimension_numbers<[1], [0], [0], [1], [0, 0, 1, 1], [], []>} : vector<2x32xbf16>, vector<32x1568xbf16>, vector<2x1568xf32> -> vector<2x1568xf32>
    %c0_22 = arith.constant 0 : index
    %c0_23 = arith.constant 0 : index
    %26 = vector.load %arg8[%c0_22, %c0_23] : memref<1x1568xf32, #tpu.memory_space<vmem>>, vector<1x1568xf32>
    %27 = vector.broadcast %26 : vector<1x1568xf32> to vector<2x1568xf32>
    %28 = arith.addf %25, %27 : vector<2x1568xf32>
    %cst_24 = arith.constant 0.000000e+00 : f32
    %29 = vector.broadcast %cst_24 : f32 to vector<2x1568xf32>
    %30 = arith.maximumf %28, %29 : vector<2x1568xf32>
    %31 = arith.truncf %30 : vector<2x1568xf32> to vector<2x1568xbf16>
    %c0_25 = arith.constant 0 : index
    %c0_26 = arith.constant 0 : index
    %32 = vector.load %arg10[%c0_25, %c0_26] : memref<2x1568xbf16, #tpu.memory_space<vmem>>, vector<2x1568xbf16>
    tpu.vector_store %arg10[%c0_25, %c0_26], %31 {strides = array<i32>} : memref<2x1568xbf16, #tpu.memory_space<vmem>>, vector<2x1568xbf16>,
    return
  }
}

module attributes {stable_mosaic.version = 11 : i64} {
  func.func @_matmul_bias_kernel(%arg0: i32, %arg1: memref<392x512xbf16, #tpu.memory_space<vmem>>, %arg2: memref<512x128xbf16, #tpu.memory_space<vmem>>, %arg3: memref<1x128xf32, #tpu.memory_space<vmem>>, %arg4: memref<392x128xbf16, #tpu.memory_space<vmem>>) attributes {dimension_semantics = [#tpu.dimension_semantics<parallel>], iteration_bounds = array<i64: 1>, scalar_prefetch = 0 : i64, scratch_operands = 0 : i64, tpu.core_type = #tpu.core_type<tc>, window_params = [{transform_indices = @transform_0, window_bounds = array<i64: 392, 512>}, {pipeline_mode = #tpu.pipeline_mode<synchronous>, transform_indices = @transform_1, window_bounds = array<i64: 512, 128>}, {pipeline_mode = #tpu.pipeline_mode<synchronous>, transform_indices = @transform_2, window_bounds = array<i64: 1, 128>}, {transform_indices = @transform_3, window_bounds = array<i64: 392, 128>}]} {
    %c0 = arith.constant 0 : index
    %c0_0 = arith.constant 0 : index
    %0 = vector.load %arg1[%c0, %c0_0] : memref<392x512xbf16, #tpu.memory_space<vmem>>, vector<392x512xbf16>
    %c0_1 = arith.constant 0 : index
    %c0_2 = arith.constant 0 : index
    %1 = vector.load %arg2[%c0_1, %c0_2] : memref<512x128xbf16, #tpu.memory_space<vmem>>, vector<512x128xbf16>
    %cst = arith.constant dense<0.000000e+00> : vector<392x128xf32>
    %2 = tpu.matmul %0, %1, %cst {dimension_numbers = #tpu.dot_dimension_numbers<[1], [0], [0], [1], [0, 0, 1, 1], [], []>} : vector<392x512xbf16>, vector<512x128xbf16>, vector<392x128xf32> -> vector<392x128xf32>
    %c0_3 = arith.constant 0 : index
    %c0_4 = arith.constant 0 : index
    %3 = vector.load %arg3[%c0_3, %c0_4] : memref<1x128xf32, #tpu.memory_space<vmem>>, vector<1x128xf32>
    %4 = vector.broadcast %3 : vector<1x128xf32> to vector<392x128xf32>
    %5 = arith.addf %2, %4 : vector<392x128xf32>
    %cst_5 = arith.constant 0.000000e+00 : f32
    %6 = vector.broadcast %cst_5 : f32 to vector<392x128xf32>
    %7 = arith.maximumf %5, %6 : vector<392x128xf32>
    %8 = arith.truncf %7 : vector<392x128xf32> to vector<392x128xbf16>
    %c0_6 = arith.constant 0 : index
    %c0_7 = arith.constant 0 : index
    %9 = vector.load %arg4[%c0_6, %c0_7] : memref<392x128xbf16, #tpu.memory_space<vmem>>, vector<392x128xbf16>
    tpu.vector_store %arg4[%c0_6, %c0_7], %8 {strides = array<i32>} : memref<392x128xbf16, #tpu.memory_space<vmem>>, vector<392x128xbf16>,
    return
  }
  func.func @transform_0(%arg0: i32) -> (i32, i32) {
    %c0_i32 = arith.constant 0 : i32
    %c0_i32_0 = arith.constant 0 : i32
    return %arg0, %c0_i32 : i32, i32
  }
  func.func @transform_1(%arg0: i32) -> (i32, i32) {
    %c0_i32 = arith.constant 0 : i32
    %c0_i32_0 = arith.constant 0 : i32
    %c0_i32_1 = arith.constant 0 : i32
    return %c0_i32, %c0_i32_0 : i32, i32
  }
  func.func @transform_2(%arg0: i32) -> (i32, i32) {
    %c0_i32 = arith.constant 0 : i32
    %c0_i32_0 = arith.constant 0 : i32
    %c0_i32_1 = arith.constant 0 : i32
    return %c0_i32, %c0_i32_0 : i32, i32
  }
  func.func @transform_3(%arg0: i32) -> (i32, i32) {
    %c0_i32 = arith.constant 0 : i32
    %c0_i32_0 = arith.constant 0 : i32
    return %arg0, %c0_i32 : i32, i32
  }
}

module attributes {stable_mosaic.version = 11 : i64} {
  func.func @_matmul_bias_kernel(%arg0: i32, %arg1: memref<224x256xbf16, #tpu.memory_space<vmem>>, %arg2: memref<256x128xbf16, #tpu.memory_space<vmem>>, %arg3: memref<1x128xf32, #tpu.memory_space<vmem>>, %arg4: memref<224x128xf32, #tpu.memory_space<vmem>>) attributes {dimension_semantics = [#tpu.dimension_semantics<parallel>], iteration_bounds = array<i64: 7>, scalar_prefetch = 0 : i64, scratch_operands = 0 : i64, tpu.core_type = #tpu.core_type<tc>, window_params = [{transform_indices = @transform_0, window_bounds = array<i64: 224, 256>}, {pipeline_mode = #tpu.pipeline_mode<synchronous>, transform_indices = @transform_1, window_bounds = array<i64: 256, 128>}, {pipeline_mode = #tpu.pipeline_mode<synchronous>, transform_indices = @transform_2, window_bounds = array<i64: 1, 128>}, {transform_indices = @transform_3, window_bounds = array<i64: 224, 128>}]} {
    %c0 = arith.constant 0 : index
    %c0_0 = arith.constant 0 : index
    %0 = vector.load %arg1[%c0, %c0_0] : memref<224x256xbf16, #tpu.memory_space<vmem>>, vector<224x256xbf16>
    %c0_1 = arith.constant 0 : index
    %c0_2 = arith.constant 0 : index
    %1 = vector.load %arg2[%c0_1, %c0_2] : memref<256x128xbf16, #tpu.memory_space<vmem>>, vector<256x128xbf16>
    %cst = arith.constant dense<0.000000e+00> : vector<224x128xf32>
    %2 = tpu.matmul %0, %1, %cst {dimension_numbers = #tpu.dot_dimension_numbers<[1], [0], [0], [1], [0, 0, 1, 1], [], []>} : vector<224x256xbf16>, vector<256x128xbf16>, vector<224x128xf32> -> vector<224x128xf32>
    %c0_3 = arith.constant 0 : index
    %c0_4 = arith.constant 0 : index
    %3 = vector.load %arg3[%c0_3, %c0_4] : memref<1x128xf32, #tpu.memory_space<vmem>>, vector<1x128xf32>
    %4 = vector.broadcast %3 : vector<1x128xf32> to vector<224x128xf32>
    %5 = arith.addf %2, %4 : vector<224x128xf32>
    %c0_5 = arith.constant 0 : index
    %c0_6 = arith.constant 0 : index
    %6 = vector.load %arg4[%c0_5, %c0_6] : memref<224x128xf32, #tpu.memory_space<vmem>>, vector<224x128xf32>
    tpu.vector_store %arg4[%c0_5, %c0_6], %5 {strides = array<i32>} : memref<224x128xf32, #tpu.memory_space<vmem>>, vector<224x128xf32>,
    return
  }
  func.func @transform_0(%arg0: i32) -> (i32, i32) {
    %c0_i32 = arith.constant 0 : i32
    %c0_i32_0 = arith.constant 0 : i32
    return %arg0, %c0_i32 : i32, i32
  }
  func.func @transform_1(%arg0: i32) -> (i32, i32) {
    %c0_i32 = arith.constant 0 : i32
    %c0_i32_0 = arith.constant 0 : i32
    %c0_i32_1 = arith.constant 0 : i32
    return %c0_i32, %c0_i32_0 : i32, i32
  }
  func.func @transform_2(%arg0: i32) -> (i32, i32) {
    %c0_i32 = arith.constant 0 : i32
    %c0_i32_0 = arith.constant 0 : i32
    %c0_i32_1 = arith.constant 0 : i32
    return %c0_i32, %c0_i32_0 : i32, i32
  }
  func.func @transform_3(%arg0: i32) -> (i32, i32) {
    %c0_i32 = arith.constant 0 : i32
    %c0_i32_0 = arith.constant 0 : i32
    return %arg0, %c0_i32 : i32, i32
  }
}

</mosaic_0001>

<llo_original>
// kernel: autoencoder_forward.5
$region0: #{autoencoder_forward.5}
  #allocation0 [shape = 'u32[]', space=smem, size = 0x4, offset = 0x4, fixed_abs, tag = 'smem constant byte address 0x4 - core index']
  #allocation1 [shape = 'u32[144,128]{1,0:T(1,128)}', space=vmem, size = 0x12000, scoped, tag = 'internal scratch']
  %s0 = inlined_call_operand.vmem [shape: bf16[392,16], index: 0, kind: input, shape index: {}]
  %s1 = inlined_call_operand.vmem [shape: bf16[16,128], index: 1, kind: input, shape index: {}]
  %s2 = inlined_call_operand.vmem [shape: f32[1,128], index: 2, kind: input, shape index: {}]
  %s3 = inlined_call_operand.vmem [shape: bf16[392,128], index: 3, kind: output, shape index: {}]
  %s4 = sld [smem:[#allocation0]]
  $region22: #{autoencoder_forward.5} parent=0
    _
  %s6 = ssub.s32 1, %s4
  %s7 = scalar_select 0, %s6, %s4
  // Predicated region
  $region2: #{autoencoder_forward.5} parent=0 // pred_check
    _
  $region3: #{autoencoder_forward.5} parent=0 // pred_check_branch
    %9 = sbr.rel (0) target = $region5
  $region4: #{autoencoder_forward.5} parent=0 // pred_region
    _
  $region5: #{autoencoder_forward.5} parent=0 // pred_fallthru
    _
  // Predicated region
  $region6: #{autoencoder_forward.5} parent=0 // pred_check
    _
  $region7: #{autoencoder_forward.5} parent=0 // pred_check_branch
    %11 = sbr.rel (0) target = $region9
  $region8: #{autoencoder_forward.5} parent=0 // pred_region
    _
  $region9: #{autoencoder_forward.5} parent=0 // pred_fallthru
    _
  // Predicated region
  $region10: #{autoencoder_forward.5} parent=0 // pred_check
    _
  $region11: #{autoencoder_forward.5} parent=0 // pred_check_branch
    %13 = sbr.rel (0) target = $region13
  $region12: #{autoencoder_forward.5} parent=0 // pred_region
    _
  $region13: #{autoencoder_forward.5} parent=0 // pred_fallthru
    _
  %v15 = vld [vmem:[%s0] sm:$0xf]
  %v16 = vld [vmem:[%s0 + $0x4] sm:$0xf]
  %v17 = vld [vmem:[%s0 + $0x8] sm:$0xf]
  %v18 = vld [vmem:[%s0 + $0xc] sm:$0xf]
  %v19 = vld [vmem:[%s0 + $0x10] sm:$0xf]
  %v20 = vld [vmem:[%s0 + $0x14] sm:$0xf]
  %v21 = vld [vmem:[%s0 + $0x18] sm:$0xf]
  %v22 = vld [vmem:[%s0 + $0x1c] sm:$0xf]
  %v23 = vld [vmem:[%s0 + $0x20] sm:$0xf]
  %v24 = vld [vmem:[%s0 + $0x24] sm:$0xf]
  %v25 = vld [vmem:[%s0 + $0x28] sm:$0xf]
  %v26 = vld [vmem:[%s0 + $0x2c] sm:$0xf]
  %v27 = vld [vmem:[%s0 + $0x30] sm:$0xf]
  %v28 = vld [vmem:[%s0 + $0x34] sm:$0xf]
  %v29 = vld [vmem:[%s0 + $0x38] sm:$0xf]
  %v30 = vld [vmem:[%s0 + $0x3c] sm:$0xf]
  %v31 = vld [vmem:[%s0 + $0x40] sm:$0xf]
  %v32 = vld [vmem:[%s0 + $0x44] sm:$0xf]
  %v33 = vld [vmem:[%s0 + $0x48] sm:$0xf]
  %v34 = vld [vmem:[%s0 + $0x4c] sm:$0xf]
  %v35 = vld [vmem:[%s0 + $0x50] sm:$0xf]
  %v36 = vld [vmem:[%s0 + $0x54] sm:$0xf]
  %v37 = vld [vmem:[%s0 + $0x58] sm:$0xf]
  %v38 = vld [vmem:[%s0 + $0x5c] sm:$0xf]
  %v39 = vld [vmem:[%s0 + $0x60] sm:$0xf]
  %v40 = vld [vmem:[%s0 + $0x64] sm:$0xf]
  %v41 = vld [vmem:[%s0 + $0x68] sm:$0xf]
  %v42 = vld [vmem:[%s0 + $0x6c] sm:$0xf]
  %v43 = vld [vmem:[%s0 + $0x70] sm:$0xf]
  %v44 = vld [vmem:[%s0 + $0x74] sm:$0xf]
  %v45 = vld [vmem:[%s0 + $0x78] sm:$0xf]
  %v46 = vld [vmem:[%s0 + $0x7c] sm:$0xf]
  %v47 = vld [vmem:[%s0 + $0x80] sm:$0xf]
  %v48 = vld [vmem:[%s0 + $0x84] sm:$0xf]
  %v49 = vld [vmem:[%s0 + $0x88] sm:$0xf]
  %v50 = vld [vmem:[%s0 + $0x8c] sm:$0xf]
  %v51 = vld [vmem:[%s0 + $0x90] sm:$0xf]
  %v52 = vld [vmem:[%s0 + $0x94] sm:$0xf]
  %v53 = vld [vmem:[%s0 + $0x98] sm:$0xf]
  %v54 = vld [vmem:[%s0 + $0x9c] sm:$0xf]
  %v55 = vld [vmem:[%s0 + $0xa0] sm:$0xf]
  %v56 = vld [vmem:[%s0 + $0xa4] sm:$0xf]
  %v57 = vld [vmem:[%s0 + $0xa8] sm:$0xf]
  %v58 = vld [vmem:[%s0 + $0xac] sm:$0xf]
  %v59 = vld [vmem:[%s0 + $0xb0] sm:$0xf]
  %v60 = vld [vmem:[%s0 + $0xb4] sm:$0xf]
  %v61 = vld [vmem:[%s0 + $0xb8] sm:$0xf]
  %v62 = vld [vmem:[%s0 + $0xbc] sm:$0xf]
  %v63 = vld [vmem:[%s0 + $0xc0] sm:$0xf]
  %v64 = vld [vmem:[%s1] sm:$0xf]
  %v65 = vld [vmem:[%s1 + $0x4] sm:$0xf]
  %v66 = vld [vmem:[%s2] sm:$0x1]
  %v68 = vlaneseq
  %v69 = vshrl.u32 %v68, 7
  %v70 = vsub.s32 0, %v69
  %v71 = vrot.slane %v66, %v70
  %v122 = vunpack.c.l.b16 %v15
  %v123 = vunpack.c.l.b16 %v16
  %v124 = vunpack.c.l.b16 %v17
  %v125 = vunpack.c.l.b16 %v18
  %v126 = vunpack.c.l.b16 %v19
  %v127 = vunpack.c.l.b16 %v20
  %v128 = vunpack.c.l.b16 %v21
  %v129 = vunpack.c.l.b16 %v22
  %v130 = vunpack.c.l.b16 %v23
  %v131 = vunpack.c.l.b16 %v24
  %v132 = vunpack.c.l.b16 %v25
  %v133 = vunpack.c.l.b16 %v26
  %v134 = vunpack.c.l.b16 %v27
  %v135 = vunpack.c.l.b16 %v28
  %v136 = vunpack.c.l.b16 %v29
  %v137 = vunpack.c.l.b16 %v30
  %v138 = vunpack.c.l.b16 %v31
  %v139 = vunpack.c.l.b16 %v32
  %v140 = vunpack.c.l.b16 %v33
  %v141 = vunpack.c.l.b16 %v34
  %v142 = vunpack.c.l.b16 %v35
  %v143 = vunpack.c.l.b16 %v36
  %v144 = vunpack.c.l.b16 %v37
  %v145 = vunpack.c.l.b16 %v38
  %v146 = vunpack.c.l.b16 %v39
  %v147 = vunpack.c.l.b16 %v40
  %v148 = vunpack.c.l.b16 %v41
  %v149 = vunpack.c.l.b16 %v42
  %v150 = vunpack.c.l.b16 %v43
  %v151 = vunpack.c.l.b16 %v44
  %v152 = vunpack.c.l.b16 %v45
  %v153 = vunpack.c.l.b16 %v46
  %v154 = vunpack.c.l.b16 %v47
  %v155 = vunpack.c.l.b16 %v48
  %v156 = vunpack.c.l.b16 %v49
  %v157 = vunpack.c.l.b16 %v50
  %v158 = vunpack.c.l.b16 %v51
  %v159 = vunpack.c.l.b16 %v52
  %v160 = vunpack.c.l.b16 %v53
  %v161 = vunpack.c.l.b16 %v54
  %v162 = vunpack.c.l.b16 %v55
  %v163 = vunpack.c.l.b16 %v56
  %v164 = vunpack.c.l.b16 %v57
  %v165 = vunpack.c.l.b16 %v58
  %v166 = vunpack.c.l.b16 %v59
  %v167 = vunpack.c.l.b16 %v60
  %v168 = vunpack.c.l.b16 %v61
  %v169 = vunpack.c.l.b16 %v62
  %v170 = vunpack.c.l.b16 %v63
  %v171 = vpack.c.b16 %v123, %v122
  %v172 = vpack.c.b16 %v125, %v124
  %v173 = vpack.c.b16 %v127, %v126
  %v174 = vpack.c.b16 %v129, %v128
  %v175 = vpack.c.b16 %v131, %v130
  %v176 = vpack.c.b16 %v133, %v132
  %v177 = vpack.c.b16 %v135, %v134
  %v178 = vpack.c.b16 %v137, %v136
  %v179 = vpack.c.b16 %v139, %v138
  %v180 = vpack.c.b16 %v141, %v140
  %v181 = vpack.c.b16 %v143, %v142
  %v182 = vpack.c.b16 %v145, %v144
  %v183 = vpack.c.b16 %v147, %v146
  %v184 = vpack.c.b16 %v149, %v148
  %v185 = vpack.c.b16 %v151, %v150
  %v186 = vpack.c.b16 %v153, %v152
  %v187 = vpack.c.b16 %v155, %v154
  %v188 = vpack.c.b16 %v157, %v156
  %v189 = vpack.c.b16 %v159, %v158
  %v190 = vpack.c.b16 %v161, %v160
  %v191 = vpack.c.b16 %v163, %v162
  %v192 = vpack.c.b16 %v165, %v164
  %v193 = vpack.c.b16 %v167, %v166
  %v194 = vpack.c.b16 %v169, %v168
  %v195 = vpack.c.b16 %v170, %v170
  %v198 = vunpack.c.l.b16 %v64
  %v199 = vunpack.c.l.b16 %v65
  %v200 = vpack.c.b16 %v199, %v198
  %vm202 = vcmask 130048
  %v204 = vsel %vm202, %v171, 0
  %v207 = vsel %vm202, %v172, 0
  %v210 = vsel %vm202, %v173, 0
  %v213 = vsel %vm202, %v174, 0
  %v216 = vsel %vm202, %v175, 0
  %v219 = vsel %vm202, %v176, 0
  %v222 = vsel %vm202, %v177, 0
  %v225 = vsel %vm202, %v178, 0
  %v228 = vsel %vm202, %v179, 0
  %v231 = vsel %vm202, %v180, 0
  %v234 = vsel %vm202, %v181, 0
  %v237 = vsel %vm202, %v182, 0
  %v240 = vsel %vm202, %v183, 0
  %v243 = vsel %vm202, %v184, 0
  %v246 = vsel %vm202, %v185, 0
  %v249 = vsel %vm202, %v186, 0
  %v252 = vsel %vm202, %v187, 0
  %v255 = vsel %vm202, %v188, 0
  %v258 = vsel %vm202, %v189, 0
  %v261 = vsel %vm202, %v190, 0
  %v264 = vsel %vm202, %v191, 0
  %v267 = vsel %vm202, %v192, 0
  %v270 = vsel %vm202, %v193, 0
  %v273 = vsel %vm202, %v194, 0
  %v276 = vsel %vm202, %v195, 0
  %278 = vmatprep.subr.bf16.mxu0 0
  %279 = vmatpush1.bf16.msra.mxu0 %v200
  %280 = vmatprep.subr.bf16.mxu0 0
  %281 = vmatpush1.bf16.msra.mxu0 0
  %282 = vmatprep.subr.bf16.mxu0 0
  %283 = vmatpush1.bf16.msra.mxu0 0
  %284 = vmatprep.subr.bf16.mxu0 0
  %285 = vmatpush1.bf16.msra.mxu0 0
  %286 = vmatprep.subr.bf16.mxu0 0
  %287 = vmatpush1.bf16.msra.mxu0 0
  %288 = vmatprep.subr.bf16.mxu0 0
  %289 = vmatpush1.bf16.msra.mxu0 0
  %290 = vmatprep.subr.bf16.mxu0 0
  %291 = vmatpush1.bf16.msra.mxu0 0
  %292 = vmatprep.subr.bf16.mxu0 0
  %293 = vmatpush1.bf16.msra.mxu0 0
  %294 = vmatprep.subr.bf16.mxu0 0
  %295 = vmatpush1.bf16.msra.mxu0 0
  %296 = vmatprep.subr.bf16.mxu0 0
  %297 = vmatpush1.bf16.msra.mxu0 0
  %298 = vmatprep.subr.bf16.mxu0 0
  %299 = vmatpush1.bf16.msra.mxu0 0
  %300 = vmatprep.subr.bf16.mxu0 0
  %301 = vmatpush1.bf16.msra.mxu0 0
  %302 = vmatprep.subr.bf16.mxu0 0
  %303 = vmatpush1.bf16.msra.mxu0 0
  %304 = vmatprep.subr.bf16.mxu0 0
  %305 = vmatpush1.bf16.msra.mxu0 0
  %306 = vmatprep.subr.bf16.mxu0 0
  %307 = vmatpush1.bf16.msra.mxu0 0
  %308 = vmatprep.subr.bf16.mxu0 0
  %309 = vmatpush1.bf16.msra.mxu0 0
  %310 = vmatprep.mubr.bf16.mxu0 0
  %311 = vmatmul.mubr.bf16.gmra.mrb[0].mxu0 %v204
  %v312 = vpop.f32.mrb[0].mxu0
  %v313 = vadd.f32 %v71, %v312
  %v314 = vpop.f32.mrb[0].mxu0
  %v315 = vpop.f32.mrb[0].mxu0
  %v316 = vadd.f32 %v71, %v315
  %v317 = vpop.f32.mrb[0].mxu0
  %318 = vmatprep.mubr.bf16.mxu0 0
  %319 = vmatmul.mubr.bf16.gmra.mrb[0].mxu0 %v207
  %v320 = vpop.f32.mrb[0].mxu0
  %v321 = vadd.f32 %v71, %v320
  %v322 = vpop.f32.mrb[0].mxu0
  %v323 = vpop.f32.mrb[0].mxu0
  %v324 = vadd.f32 %v71, %v323
  %v325 = vpop.f32.mrb[0].mxu0
  %326 = vmatprep.mubr.bf16.mxu0 0
  %327 = vmatmul.mubr.bf16.gmra.mrb[0].mxu0 %v210
  %v328 = vpop.f32.mrb[0].mxu0
  %v329 = vadd.f32 %v71, %v328
  %v330 = vpop.f32.mrb[0].mxu0
  %v331 = vpop.f32.mrb[0].mxu0
  %v332 = vadd.f32 %v71, %v331
  %v333 = vpop.f32.mrb[0].mxu0
  %334 = vmatprep.mubr.bf16.mxu0 0
  %335 = vmatmul.mubr.bf16.gmra.mrb[0].mxu0 %v213
  %v336 = vpop.f32.mrb[0].mxu0
  %v337 = vadd.f32 %v71, %v336
  %v338 = vpop.f32.mrb[0].mxu0
  %v339 = vpop.f32.mrb[0].mxu0
  %v340 = vadd.f32 %v71, %v339
  %v341 = vpop.f32.mrb[0].mxu0
  %342 = vmatprep.mubr.bf16.mxu0 0
  %343 = vmatmul.mubr.bf16.gmra.mrb[0].mxu0 %v216
  %v344 = vpop.f32.mrb[0].mxu0
  %v345 = vadd.f32 %v71, %v344
  %v346 = vpop.f32.mrb[0].mxu0
  %v347 = vpop.f32.mrb[0].mxu0
  %v348 = vadd.f32 %v71, %v347
  %v349 = vpop.f32.mrb[0].mxu0
  %350 = vmatprep.mubr.bf16.mxu0 0
  %351 = vmatmul.mubr.bf16.gmra.mrb[0].mxu0 %v219
  %v352 = vpop.f32.mrb[0].mxu0
  %v353 = vadd.f32 %v71, %v352
  %v354 = vpop.f32.mrb[0].mxu0
  %v355 = vpop.f32.mrb[0].mxu0
  %v356 = vadd.f32 %v71, %v355
  %v357 = vpop.f32.mrb[0].mxu0
  %358 = vmatprep.mubr.bf16.mxu0 0
  %359 = vmatmul.mubr.bf16.gmra.mrb[0].mxu0 %v222
  %v360 = vpop.f32.mrb[0].mxu0
  %v361 = vadd.f32 %v71, %v360
  %v362 = vpop.f32.mrb[0].mxu0
  %v363 = vpop.f32.mrb[0].mxu0
  %v364 = vadd.f32 %v71, %v363
  %v365 = vpop.f32.mrb[0].mxu0
  %366 = vmatprep.mubr.bf16.mxu0 0
  %367 = vmatmul.mubr.bf16.gmra.mrb[0].mxu0 %v225
  %v368 = vpop.f32.mrb[0].mxu0
  %v369 = vadd.f32 %v71, %v368
  %v370 = vpop.f32.mrb[0].mxu0
  %v371 = vpop.f32.mrb[0].mxu0
  %v372 = vadd.f32 %v71, %v371
  %v373 = vpop.f32.mrb[0].mxu0
  %374 = vmatprep.mubr.bf16.mxu0 0
  %375 = vmatmul.mubr.bf16.gmra.mrb[0].mxu0 %v228
  %v376 = vpop.f32.mrb[0].mxu0
  %v377 = vadd.f32 %v71, %v376
  %v378 = vpop.f32.mrb[0].mxu0
  %v379 = vpop.f32.mrb[0].mxu0
  %v380 = vadd.f32 %v71, %v379
  %v381 = vpop.f32.mrb[0].mxu0
  %382 = vmatprep.mubr.bf16.mxu0 0
  %383 = vmatmul.mubr.bf16.gmra.mrb[0].mxu0 %v231
  %v384 = vpop.f32.mrb[0].mxu0
  %v385 = vadd.f32 %v71, %v384
  %v386 = vpop.f32.mrb[0].mxu0
  %v387 = vpop.f32.mrb[0].mxu0
  %v388 = vadd.f32 %v71, %v387
  %v389 = vpop.f32.mrb[0].mxu0
  %390 = vmatprep.mubr.bf16.mxu0 0
  %391 = vmatmul.mubr.bf16.gmra.mrb[0].mxu0 %v234
  %v392 = vpop.f32.mrb[0].mxu0
  %v393 = vadd.f32 %v71, %v392
  %v394 = vpop.f32.mrb[0].mxu0
  %v395 = vpop.f32.mrb[0].mxu0
  %v396 = vadd.f32 %v71, %v395
  %v397 = vpop.f32.mrb[0].mxu0
  %398 = vmatprep.mubr.bf16.mxu0 0
  %399 = vmatmul.mubr.bf16.gmra.mrb[0].mxu0 %v237
  %v400 = vpop.f32.mrb[0].mxu0
  %v401 = vadd.f32 %v71, %v400
  %v402 = vpop.f32.mrb[0].mxu0
  %v403 = vpop.f32.mrb[0].mxu0
  %v404 = vadd.f32 %v71, %v403
  %v405 = vpop.f32.mrb[0].mxu0
  %406 = vmatprep.mubr.bf16.mxu0 0
  %407 = vmatmul.mubr.bf16.gmra.mrb[0].mxu0 %v240
  %v408 = vpop.f32.mrb[0].mxu0
  %v409 = vadd.f32 %v71, %v408
  %v410 = vpop.f32.mrb[0].mxu0
  %v411 = vpop.f32.mrb[0].mxu0
  %v412 = vadd.f32 %v71, %v411
  %v413 = vpop.f32.mrb[0].mxu0
  %414 = vmatprep.mubr.bf16.mxu0 0
  %415 = vmatmul.mubr.bf16.gmra.mrb[0].mxu0 %v243
  %v416 = vpop.f32.mrb[0].mxu0
  %v417 = vadd.f32 %v71, %v416
  %v418 = vpop.f32.mrb[0].mxu0
  %v419 = vpop.f32.mrb[0].mxu0
  %v420 = vadd.f32 %v71, %v419
  %v421 = vpop.f32.mrb[0].mxu0
  %422 = vmatprep.mubr.bf16.mxu0 0
  %423 = vmatmul.mubr.bf16.gmra.mrb[0].mxu0 %v246
  %v424 = vpop.f32.mrb[0].mxu0
  %v425 = vadd.f32 %v71, %v424
  %v426 = vpop.f32.mrb[0].mxu0
  %v427 = vpop.f32.mrb[0].mxu0
  %v428 = vadd.f32 %v71, %v427
  %v429 = vpop.f32.mrb[0].mxu0
  %430 = vmatprep.mubr.bf16.mxu0 0
  %431 = vmatmul.mubr.bf16.gmra.mrb[0].mxu0 %v249
  %v432 = vpop.f32.mrb[0].mxu0
  %v433 = vadd.f32 %v71, %v432
  %v434 = vpop.f32.mrb[0].mxu0
  %v435 = vpop.f32.mrb[0].mxu0
  %v436 = vadd.f32 %v71, %v435
  %v437 = vpop.f32.mrb[0].mxu0
  %438 = vmatprep.mubr.bf16.mxu0 0
  %439 = vmatmul.mubr.bf16.gmra.mrb[0].mxu0 %v252
  %v440 = vpop.f32.mrb[0].mxu0
  %v441 = vadd.f32 %v71, %v440
  %v442 = vpop.f32.mrb[0].mxu0
  %v443 = vpop.f32.mrb[0].mxu0
  %v444 = vadd.f32 %v71, %v443
  %v445 = vpop.f32.mrb[0].mxu0
  %446 = vmatprep.mubr.bf16.mxu0 0
  %447 = vmatmul.mubr.bf16.gmra.mrb[0].mxu0 %v255
  %v448 = vpop.f32.mrb[0].mxu0
  %v449 = vadd.f32 %v71, %v448
  %v450 = vpop.f32.mrb[0].mxu0
  %v451 = vpop.f32.mrb[0].mxu0
  %v452 = vadd.f32 %v71, %v451
  %v453 = vpop.f32.mrb[0].mxu0
  %454 = vmatprep.mubr.bf16.mxu0 0
  %455 = vmatmul.mubr.bf16.gmra.mrb[0].mxu0 %v258
  %v456 = vpop.f32.mrb[0].mxu0
  %v457 = vadd.f32 %v71, %v456
  %v458 = vpop.f32.mrb[0].mxu0
  %v459 = vpop.f32.mrb[0].mxu0
  %v460 = vadd.f32 %v71, %v459
  %v461 = vpop.f32.mrb[0].mxu0
  %462 = vmatprep.mubr.bf16.mxu0 0
  %463 = vmatmul.mubr.bf16.gmra.mrb[0].mxu0 %v261
  %v464 = vpop.f32.mrb[0].mxu0
  %v465 = vadd.f32 %v71, %v464
  %v466 = vpop.f32.mrb[0].mxu0
  %v467 = vpop.f32.mrb[0].mxu0
  %v468 = vadd.f32 %v71, %v467
  %v469 = vpop.f32.mrb[0].mxu0
  %470 = vmatprep.mubr.bf16.mxu0 0
  %471 = vmatmul.mubr.bf16.gmra.mrb[0].mxu0 %v264
  %v472 = vpop.f32.mrb[0].mxu0
  %v473 = vadd.f32 %v71, %v472
  %v474 = vpop.f32.mrb[0].mxu0
  %v475 = vpop.f32.mrb[0].mxu0
  %v476 = vadd.f32 %v71, %v475
  %v477 = vpop.f32.mrb[0].mxu0
  %478 = vmatprep.mubr.bf16.mxu0 0
  %479 = vmatmul.mubr.bf16.gmra.mrb[0].mxu0 %v267
  %v480 = vpop.f32.mrb[0].mxu0
  %v481 = vadd.f32 %v71, %v480
  %v482 = vpop.f32.mrb[0].mxu0
  %v483 = vpop.f32.mrb[0].mxu0
  %v484 = vadd.f32 %v71, %v483
  %v485 = vpop.f32.mrb[0].mxu0
  %486 = vmatprep.mubr.bf16.mxu0 0
  %487 = vmatmul.mubr.bf16.gmra.mrb[0].mxu0 %v270
  %v488 = vpop.f32.mrb[0].mxu0
  %v489 = vadd.f32 %v71, %v488
  %v490 = vpop.f32.mrb[0].mxu0
  %v491 = vpop.f32.mrb[0].mxu0
  %v492 = vadd.f32 %v71, %v491
  %v493 = vpop.f32.mrb[0].mxu0
  %494 = vmatprep.mubr.bf16.mxu0 0
  %495 = vmatmul.mubr.bf16.gmra.mrb[0].mxu0 %v273
  %v496 = vpop.f32.mrb[0].mxu0
  %v497 = vadd.f32 %v71, %v496
  %v498 = vpop.f32.mrb[0].mxu0
  %v499 = vpop.f32.mrb[0].mxu0
  %v500 = vadd.f32 %v71, %v499
  %v501 = vpop.f32.mrb[0].mxu0
  %502 = vmatprep.mubr.bf16.mxu0 0
  %503 = vmatmul.mubr.bf16.gmra.mrb[0].mxu0 %v276
  %v504 = vpop.f32.mrb[0].mxu0
  %v505 = vadd.f32 %v71, %v504
  %v506 = vpop.f32.mrb[0].mxu0
  %v507 = vpop.f32.mrb[0].mxu0
  %v508 = vpop.f32.mrb[0].mxu0
  %509 = vdwg.mxu0
  %v510 = vmax.f32 %v313, 0.0
  %v511 = vmax.f32 %v316, 0.0
  %v512 = vmax.f32 %v321, 0.0
  %v513 = vmax.f32 %v324, 0.0
  %v514 = vmax.f32 %v329, 0.0
  %v515 = vmax.f32 %v332, 0.0
  %v516 = vmax.f32 %v337, 0.0
  %v517 = vmax.f32 %v340, 0.0
  %v518 = vmax.f32 %v345, 0.0
  %v519 = vmax.f32 %v348, 0.0
  %v520 = vmax.f32 %v353, 0.0
  %v521 = vmax.f32 %v356, 0.0
  %v522 = vmax.f32 %v361, 0.0
  %v523 = vmax.f32 %v364, 0.0
  %v524 = vmax.f32 %v369, 0.0
  %v525 = vmax.f32 %v372, 0.0
  %v526 = vmax.f32 %v377, 0.0
  %v527 = vmax.f32 %v380, 0.0
  %v528 = vmax.f32 %v385, 0.0
  %v529 = vmax.f32 %v388, 0.0
  %v530 = vmax.f32 %v393, 0.0
  %v531 = vmax.f32 %v396, 0.0
  %v532 = vmax.f32 %v401, 0.0
  %v533 = vmax.f32 %v404, 0.0
  %v534 = vmax.f32 %v409, 0.0
  %v535 = vmax.f32 %v412, 0.0
  %v536 = vmax.f32 %v417, 0.0
  %v537 = vmax.f32 %v420, 0.0
  %v538 = vmax.f32 %v425, 0.0
  %v539 = vmax.f32 %v428, 0.0
  %v540 = vmax.f32 %v433, 0.0
  %v541 = vmax.f32 %v436, 0.0
  %v542 = vmax.f32 %v441, 0.0
  %v543 = vmax.f32 %v444, 0.0
  %v544 = vmax.f32 %v449, 0.0
  %v545 = vmax.f32 %v452, 0.0
  %v546 = vmax.f32 %v457, 0.0
  %v547 = vmax.f32 %v460, 0.0
  %v548 = vmax.f32 %v465, 0.0
  %v549 = vmax.f32 %v468, 0.0
  %v550 = vmax.f32 %v473, 0.0
  %v551 = vmax.f32 %v476, 0.0
  %v552 = vmax.f32 %v481, 0.0
  %v553 = vmax.f32 %v484, 0.0
  %v554 = vmax.f32 %v489, 0.0
  %v555 = vmax.f32 %v492, 0.0
  %v556 = vmax.f32 %v497, 0.0
  %v557 = vmax.f32 %v500, 0.0
  %v558 = vmax.f32 %v505, 0.0
  %v559 = vpack.c.bf16 %v511, %v510
  %v560 = vpack.c.bf16 %v513, %v512
  %v561 = vpack.c.bf16 %v515, %v514
  %v562 = vpack.c.bf16 %v517, %v516
  %v563 = vpack.c.bf16 %v519, %v518
  %v564 = vpack.c.bf16 %v521, %v520
  %v565 = vpack.c.bf16 %v523, %v522
  %v566 = vpack.c.bf16 %v525, %v524
  %v567 = vpack.c.bf16 %v527, %v526
  %v568 = vpack.c.bf16 %v529, %v528
  %v569 = vpack.c.bf16 %v531, %v530
  %v570 = vpack.c.bf16 %v533, %v532
  %v571 = vpack.c.bf16 %v535, %v534
  %v572 = vpack.c.bf16 %v537, %v536
  %v573 = vpack.c.bf16 %v539, %v538
  %v574 = vpack.c.bf16 %v541, %v540
  %v575 = vpack.c.bf16 %v543, %v542
  %v576 = vpack.c.bf16 %v545, %v544
  %v577 = vpack.c.bf16 %v547, %v546
  %v578 = vpack.c.bf16 %v549, %v548
  %v579 = vpack.c.bf16 %v551, %v550
  %v580 = vpack.c.bf16 %v553, %v552
  %v581 = vpack.c.bf16 %v555, %v554
  %v582 = vpack.c.bf16 %v557, %v556
  %v583 = vpack.c.bf16 %v558, %v558
  %v609 = vunpack.c.l.b16 %v559
  %v610 = vunpack.c.h.b16 %v559
  %v611 = vunpack.c.l.b16 %v560
  %v612 = vunpack.c.h.b16 %v560
  %v613 = vunpack.c.l.b16 %v561
  %v614 = vunpack.c.h.b16 %v561
  %v615 = vunpack.c.l.b16 %v562
  %v616 = vunpack.c.h.b16 %v562
  %v617 = vunpack.c.l.b16 %v563
  %v618 = vunpack.c.h.b16 %v563
  %v619 = vunpack.c.l.b16 %v564
  %v620 = vunpack.c.h.b16 %v564
  %v621 = vunpack.c.l.b16 %v565
  %v622 = vunpack.c.h.b16 %v565
  %v623 = vunpack.c.l.b16 %v566
  %v624 = vunpack.c.h.b16 %v566
  %v625 = vunpack.c.l.b16 %v567
  %v626 = vunpack.c.h.b16 %v567
  %v627 = vunpack.c.l.b16 %v568
  %v628 = vunpack.c.h.b16 %v568
  %v629 = vunpack.c.l.b16 %v569
  %v630 = vunpack.c.h.b16 %v569
  %v631 = vunpack.c.l.b16 %v570
  %v632 = vunpack.c.h.b16 %v570
  %v633 = vunpack.c.l.b16 %v571
  %v634 = vunpack.c.h.b16 %v571
  %v635 = vunpack.c.l.b16 %v572
  %v636 = vunpack.c.h.b16 %v572
  %v637 = vunpack.c.l.b16 %v573
  %v638 = vunpack.c.h.b16 %v573
  %v639 = vunpack.c.l.b16 %v574
  %v640 = vunpack.c.h.b16 %v574
  %v641 = vunpack.c.l.b16 %v575
  %v642 = vunpack.c.h.b16 %v575
  %v643 = vunpack.c.l.b16 %v576
  %v644 = vunpack.c.h.b16 %v576
  %v645 = vunpack.c.l.b16 %v577
  %v646 = vunpack.c.h.b16 %v577
  %v647 = vunpack.c.l.b16 %v578
  %v648 = vunpack.c.h.b16 %v578
  %v649 = vunpack.c.l.b16 %v579
  %v650 = vunpack.c.h.b16 %v579
  %v651 = vunpack.c.l.b16 %v580
  %v652 = vunpack.c.h.b16 %v580
  %v653 = vunpack.c.l.b16 %v581
  %v654 = vunpack.c.h.b16 %v581
  %v655 = vunpack.c.l.b16 %v582
  %v656 = vunpack.c.h.b16 %v582
  %v657 = vunpack.c.l.b16 %v583
  %v658 = vpack.c.b16 %v609, %v609
  %v659 = vpack.c.b16 %v610, %v610
  %v660 = vpack.c.b16 %v611, %v611
  %v661 = vpack.c.b16 %v612, %v612
  %v662 = vpack.c.b16 %v613, %v613
  %v663 = vpack.c.b16 %v614, %v614
  %v664 = vpack.c.b16 %v615, %v615
  %v665 = vpack.c.b16 %v616, %v616
  %v666 = vpack.c.b16 %v617, %v617
  %v667 = vpack.c.b16 %v618, %v618
  %v668 = vpack.c.b16 %v619, %v619
  %v669 = vpack.c.b16 %v620, %v620
  %v670 = vpack.c.b16 %v621, %v621
  %v671 = vpack.c.b16 %v622, %v622
  %v672 = vpack.c.b16 %v623, %v623
  %v673 = vpack.c.b16 %v624, %v624
  %v674 = vpack.c.b16 %v625, %v625
  %v675 = vpack.c.b16 %v626, %v626
  %v676 = vpack.c.b16 %v627, %v627
  %v677 = vpack.c.b16 %v628, %v628
  %v678 = vpack.c.b16 %v629, %v629
  %v679 = vpack.c.b16 %v630, %v630
  %v680 = vpack.c.b16 %v631, %v631
  %v681 = vpack.c.b16 %v632, %v632
  %v682 = vpack.c.b16 %v633, %v633
  %v683 = vpack.c.b16 %v634, %v634
  %v684 = vpack.c.b16 %v635, %v635
  %v685 = vpack.c.b16 %v636, %v636
  %v686 = vpack.c.b16 %v637, %v637
  %v687 = vpack.c.b16 %v638, %v638
  %v688 = vpack.c.b16 %v639, %v639
  %v689 = vpack.c.b16 %v640, %v640
  %v690 = vpack.c.b16 %v641, %v641
  %v691 = vpack.c.b16 %v642, %v642
  %v692 = vpack.c.b16 %v643, %v643
  %v693 = vpack.c.b16 %v644, %v644
  %v694 = vpack.c.b16 %v645, %v645
  %v695 = vpack.c.b16 %v646, %v646
  %v696 = vpack.c.b16 %v647, %v647
  %v697 = vpack.c.b16 %v648, %v648
  %v698 = vpack.c.b16 %v649, %v649
  %v699 = vpack.c.b16 %v650, %v650
  %v700 = vpack.c.b16 %v651, %v651
  %v701 = vpack.c.b16 %v652, %v652
  %v702 = vpack.c.b16 %v653, %v653
  %v703 = vpack.c.b16 %v654, %v654
  %v704 = vpack.c.b16 %v655, %v655
  %v705 = vpack.c.b16 %v656, %v656
  %v706 = vpack.c.b16 %v657, %v657
  %756 = vst [vmem:[%s3] sm:$0xf] %v658
  %757 = vst [vmem:[%s3 + $0x4] sm:$0xf] %v659
  %758 = vst [vmem:[%s3 + $0x8] sm:$0xf] %v660
  %759 = vst [vmem:[%s3 + $0xc] sm:$0xf] %v661
  %760 = vst [vmem:[%s3 + $0x10] sm:$0xf] %v662
  %761 = vst [vmem:[%s3 + $0x14] sm:$0xf] %v663
  %762 = vst [vmem:[%s3 + $0x18] sm:$0xf] %v664
  %763 = vst [vmem:[%s3 + $0x1c] sm:$0xf] %v665
  %764 = vst [vmem:[%s3 + $0x20] sm:$0xf] %v666
  %765 = vst [vmem:[%s3 + $0x24] sm:$0xf] %v667
  %766 = vst [vmem:[%s3 + $0x28] sm:$0xf] %v668
  %767 = vst [vmem:[%s3 + $0x2c] sm:$0xf] %v669
  %768 = vst [vmem:[%s3 + $0x30] sm:$0xf] %v670
  %769 = vst [vmem:[%s3 + $0x34] sm:$0xf] %v671
  %770 = vst [vmem:[%s3 + $0x38] sm:$0xf] %v672
  %771 = vst [vmem:[%s3 + $0x3c] sm:$0xf] %v673
  %772 = vst [vmem:[%s3 + $0x40] sm:$0xf] %v674
  %773 = vst [vmem:[%s3 + $0x44] sm:$0xf] %v675
  %774 = vst [vmem:[%s3 + $0x48] sm:$0xf] %v676
  %775 = vst [vmem:[%s3 + $0x4c] sm:$0xf] %v677
  %776 = vst [vmem:[%s3 + $0x50] sm:$0xf] %v678
  %777 = vst [vmem:[%s3 + $0x54] sm:$0xf] %v679
  %778 = vst [vmem:[%s3 + $0x58] sm:$0xf] %v680
  %779 = vst [vmem:[%s3 + $0x5c] sm:$0xf] %v681
  %780 = vst [vmem:[%s3 + $0x60] sm:$0xf] %v682
  %781 = vst [vmem:[%s3 + $0x64] sm:$0xf] %v683
  %782 = vst [vmem:[%s3 + $0x68] sm:$0xf] %v684
  %783 = vst [vmem:[%s3 + $0x6c] sm:$0xf] %v685
  %784 = vst [vmem:[%s3 + $0x70] sm:$0xf] %v686
  %785 = vst [vmem:[%s3 + $0x74] sm:$0xf] %v687
  %786 = vst [vmem:[%s3 + $0x78] sm:$0xf] %v688
  %787 = vst [vmem:[%s3 + $0x7c] sm:$0xf] %v689
  %788 = vst [vmem:[%s3 + $0x80] sm:$0xf] %v690
  %789 = vst [vmem:[%s3 + $0x84] sm:$0xf] %v691
  %790 = vst [vmem:[%s3 + $0x88] sm:$0xf] %v692
  %791 = vst [vmem:[%s3 + $0x8c] sm:$0xf] %v693
  %792 = vst [vmem:[%s3 + $0x90] sm:$0xf] %v694
  %793 = vst [vmem:[%s3 + $0x94] sm:$0xf] %v695
  %794 = vst [vmem:[%s3 + $0x98] sm:$0xf] %v696
  %795 = vst [vmem:[%s3 + $0x9c] sm:$0xf] %v697
  %796 = vst [vmem:[%s3 + $0xa0] sm:$0xf] %v698
  %797 = vst [vmem:[%s3 + $0xa4] sm:$0xf] %v699
  %798 = vst [vmem:[%s3 + $0xa8] sm:$0xf] %v700
  %799 = vst [vmem:[%s3 + $0xac] sm:$0xf] %v701
  %800 = vst [vmem:[%s3 + $0xb0] sm:$0xf] %v702
  %801 = vst [vmem:[%s3 + $0xb4] sm:$0xf] %v703
  %802 = vst [vmem:[%s3 + $0xb8] sm:$0xf] %v704
  %803 = vst [vmem:[%s3 + $0xbc] sm:$0xf] %v705
  %804 = vst [vmem:[%s3 + $0xc0] sm:$0xf] %v706
  // Predicated region
  $region14: #{autoencoder_forward.5} parent=0 // pred_check
    _
  $region15: #{autoencoder_forward.5} parent=0 // pred_check_branch
    %806 = sbr.rel (0) target = $region17
  $region16: #{autoencoder_forward.5} parent=0 // pred_region
    _
  $region17: #{autoencoder_forward.5} parent=0 // pred_fallthru
    _
  // Predicated region
  $region18: #{autoencoder_forward.5} parent=0 // pred_check
    _
  $region19: #{autoencoder_forward.5} parent=0 // pred_check_branch
    %808 = sbr.rel (0) target = $region21
  $region20: #{autoencoder_forward.5} parent=0 // pred_region
    _
  $region21: #{autoencoder_forward.5} parent=0 // pred_fallthru
    _

// kernel: autoencoder_forward.6
$region0: #{autoencoder_forward.6}
  #allocation0 [shape = 'u32[]', space=smem, size = 0x4, offset = 0x4, fixed_abs, tag = 'smem constant byte address 0x4 - core index']
  #allocation1 [shape = 'u32[144,128]{1,0:T(1,128)}', space=vmem, size = 0x12000, scoped, tag = 'internal scratch']
  %s0 = inlined_call_operand.vmem [shape: bf16[98,256], index: 0, kind: input, shape index: {}]
  %s1 = inlined_call_operand.vmem [shape: bf16[256,128], index: 1, kind: input, shape index: {}]
  %s2 = inlined_call_operand.vmem [shape: f32[1,128], index: 2, kind: input, shape index: {}]
  %s3 = inlined_call_operand.vmem [shape: bf16[98,128], index: 3, kind: output, shape index: {}]
  %s4 = sld [smem:[#allocation0]]
  $region22: #{autoencoder_forward.6} parent=0
    _
  %s6 = ssub.s32 1, %s4
  %s7 = scalar_select 0, %s6, %s4
  // Predicated region
  $region2: #{autoencoder_forward.6} parent=0 // pred_check
    _
  $region3: #{autoencoder_forward.6} parent=0 // pred_check_branch
    %9 = sbr.rel (0) target = $region5
  $region4: #{autoencoder_forward.6} parent=0 // pred_region
    _
  $region5: #{autoencoder_forward.6} parent=0 // pred_fallthru
    _
  // Predicated region
  $region6: #{autoencoder_forward.6} parent=0 // pred_check
    _
  $region7: #{autoencoder_forward.6} parent=0 // pred_check_branch
    %11 = sbr.rel (0) target = $region9
  $region8: #{autoencoder_forward.6} parent=0 // pred_region
    _
  $region9: #{autoencoder_forward.6} parent=0 // pred_fallthru
    _
  // Predicated region
  $region10: #{autoencoder_forward.6} parent=0 // pred_check
    _
  $region11: #{autoencoder_forward.6} parent=0 // pred_check_branch
    %13 = sbr.rel (0) target = $region13
  $region12: #{autoencoder_forward.6} parent=0 // pred_region
    _
  $region13: #{autoencoder_forward.6} parent=0 // pred_fallthru
    _
  %v15 = vld [vmem:[%s0] sm:$0xff]
  %v16 = vld [vmem:[%s0 + $0x8] sm:$0xff]
  %v17 = vld [vmem:[%s0 + $0x10] sm:$0xff]
  %v18 = vld [vmem:[%s0 + $0x18] sm:$0xff]
  %v19 = vld [vmem:[%s0 + $0x20] sm:$0xff]
  %v20 = vld [vmem:[%s0 + $0x28] sm:$0xff]
  %v21 = vld [vmem:[%s0 + $0x30] sm:$0xff]
  %v22 = vld [vmem:[%s0 + $0x38] sm:$0xff]
  %v23 = vld [vmem:[%s0 + $0x40] sm:$0xff]
  %v24 = vld [vmem:[%s0 + $0x48] sm:$0xff]
  %v25 = vld [vmem:[%s0 + $0x50] sm:$0xff]
  %v26 = vld [vmem:[%s0 + $0x58] sm:$0xff]
  %v27 = vld [vmem:[%s0 + $0x60] sm:$0x11]
  %v28 = vld [vmem:[%s1] sm:$0xf]
  %v29 = vld [vmem:[%s1 + $0x4] sm:$0xf]
  %v30 = vld [vmem:[%s1 + $0x8] sm:$0xf]
  %v31 = vld [vmem:[%s1 + $0xc] sm:$0xf]
  %v32 = vld [vmem:[%s1 + $0x10] sm:$0xf]
  %v33 = vld [vmem:[%s1 + $0x14] sm:$0xf]
  %v34 = vld [vmem:[%s1 + $0x18] sm:$0xf]
  %v35 = vld [vmem:[%s1 + $0x1c] sm:$0xf]
  %v36 = vld [vmem:[%s1 + $0x20] sm:$0xf]
  %v37 = vld [vmem:[%s1 + $0x24] sm:$0xf]
  %v38 = vld [vmem:[%s1 + $0x28] sm:$0xf]
  %v39 = vld [vmem:[%s1 + $0x2c] sm:$0xf]
  %v40 = vld [vmem:[%s1 + $0x30] sm:$0xf]
  %v41 = vld [vmem:[%s1 + $0x34] sm:$0xf]
  %v42 = vld [vmem:[%s1 + $0x38] sm:$0xf]
  %v43 = vld [vmem:[%s1 + $0x3c] sm:$0xf]
  %v44 = vld [vmem:[%s1 + $0x40] sm:$0xf]
  %v45 = vld [vmem:[%s1 + $0x44] sm:$0xf]
  %v46 = vld [vmem:[%s1 + $0x48] sm:$0xf]
  %v47 = vld [vmem:[%s1 + $0x4c] sm:$0xf]
  %v48 = vld [vmem:[%s1 + $0x50] sm:$0xf]
  %v49 = vld [vmem:[%s1 + $0x54] sm:$0xf]
  %v50 = vld [vmem:[%s1 + $0x58] sm:$0xf]
  %v51 = vld [vmem:[%s1 + $0x5c] sm:$0xf]
  %v52 = vld [vmem:[%s1 + $0x60] sm:$0xf]
  %v53 = vld [vmem:[%s1 + $0x64] sm:$0xf]
  %v54 = vld [vmem:[%s1 + $0x68] sm:$0xf]
  %v55 = vld [vmem:[%s1 + $0x6c] sm:$0xf]
  %v56 = vld [vmem:[%s1 + $0x70] sm:$0xf]
  %v57 = vld [vmem:[%s1 + $0x74] sm:$0xf]
  %v58 = vld [vmem:[%s1 + $0x78] sm:$0xf]
  %v59 = vld [vmem:[%s1 + $0x7c] sm:$0xf]
  %v60 = vld [vmem:[%s2] sm:$0x1]
  %v62 = vlaneseq
  %v63 = vshrl.u32 %v62, 7
  %v64 = vsub.s32 0, %v63
  %v65 = vrot.slane %v60, %v64
  %v80 = vunpack.c.l.b16 %v15
  %v81 = vunpack.c.h.b16 %v15
  %v82 = vunpack.c.l.b16 %v16
  %v83 = vunpack.c.h.b16 %v16
  %v84 = vunpack.c.l.b16 %v17
  %v85 = vunpack.c.h.b16 %v17
  %v86 = vunpack.c.l.b16 %v18
  %v87 = vunpack.c.h.b16 %v18
  %v88 = vunpack.c.l.b16 %v19
  %v89 = vunpack.c.h.b16 %v19
  %v90 = vunpack.c.l.b16 %v20
  %v91 = vunpack.c.h.b16 %v20
  %v92 = vunpack.c.l.b16 %v21
  %v93 = vunpack.c.h.b16 %v21
  %v94 = vunpack.c.l.b16 %v22
  %v95 = vunpack.c.h.b16 %v22
  %v96 = vunpack.c.l.b16 %v23
  %v97 = vunpack.c.h.b16 %v23
  %v98 = vunpack.c.l.b16 %v24
  %v99 = vunpack.c.h.b16 %v24
  %v100 = vunpack.c.l.b16 %v25
  %v101 = vunpack.c.h.b16 %v25
  %v102 = vunpack.c.l.b16 %v26
  %v103 = vunpack.c.h.b16 %v26
  %v104 = vunpack.c.l.b16 %v27
  %v105 = vunpack.c.h.b16 %v27
  %v106 = vpack.c.b16 %v82, %v80
  %v107 = vpack.c.b16 %v83, %v81
  %v108 = vpack.c.b16 %v86, %v84
  %v109 = vpack.c.b16 %v87, %v85
  %v110 = vpack.c.b16 %v90, %v88
  %v111 = vpack.c.b16 %v91, %v89
  %v112 = vpack.c.b16 %v94, %v92
  %v113 = vpack.c.b16 %v95, %v93
  %v114 = vpack.c.b16 %v98, %v96
  %v115 = vpack.c.b16 %v99, %v97
  %v116 = vpack.c.b16 %v102, %v100
  %v117 = vpack.c.b16 %v103, %v101
  %v118 = vpack.c.b16 %v104, %v104
  %v119 = vpack.c.b16 %v105, %v105
  %v166 = vunpack.c.l.b16 %v28
  %v167 = vunpack.c.l.b16 %v29
  %v168 = vunpack.c.l.b16 %v30
  %v169 = vunpack.c.l.b16 %v31
  %v170 = vunpack.c.l.b16 %v32
  %v171 = vunpack.c.l.b16 %v33
  %v172 = vunpack.c.l.b16 %v34
  %v173 = vunpack.c.l.b16 %v35
  %v174 = vunpack.c.l.b16 %v36
  %v175 = vunpack.c.l.b16 %v37
  %v176 = vunpack.c.l.b16 %v38
  %v177 = vunpack.c.l.b16 %v39
  %v178 = vunpack.c.l.b16 %v40
  %v179 = vunpack.c.l.b16 %v41
  %v180 = vunpack.c.l.b16 %v42
  %v181 = vunpack.c.l.b16 %v43
  %v182 = vunpack.c.l.b16 %v44
  %v183 = vunpack.c.l.b16 %v45
  %v184 = vunpack.c.l.b16 %v46
  %v185 = vunpack.c.l.b16 %v47
  %v186 = vunpack.c.l.b16 %v48
  %v187 = vunpack.c.l.b16 %v49
  %v188 = vunpack.c.l.b16 %v50
  %v189 = vunpack.c.l.b16 %v51
  %v190 = vunpack.c.l.b16 %v52
  %v191 = vunpack.c.l.b16 %v53
  %v192 = vunpack.c.l.b16 %v54
  %v193 = vunpack.c.l.b16 %v55
  %v194 = vunpack.c.l.b16 %v56
  %v195 = vunpack.c.l.b16 %v57
  %v196 = vunpack.c.l.b16 %v58
  %v197 = vunpack.c.l.b16 %v59
  %v198 = vpack.c.b16 %v167, %v166
  %v199 = vpack.c.b16 %v169, %v168
  %v200 = vpack.c.b16 %v171, %v170
  %v201 = vpack.c.b16 %v173, %v172
  %v202 = vpack.c.b16 %v175, %v174
  %v203 = vpack.c.b16 %v177, %v176
  %v204 = vpack.c.b16 %v179, %v178
  %v205 = vpack.c.b16 %v181, %v180
  %v206 = vpack.c.b16 %v183, %v182
  %v207 = vpack.c.b16 %v185, %v184
  %v208 = vpack.c.b16 %v187, %v186
  %v209 = vpack.c.b16 %v189, %v188
  %v210 = vpack.c.b16 %v191, %v190
  %v211 = vpack.c.b16 %v193, %v192
  %v212 = vpack.c.b16 %v195, %v194
  %v213 = vpack.c.b16 %v197, %v196
  %230 = vmatprep.subr.bf16.mxu0 0
  %231 = vmatpush1.bf16.msra.mxu0 %v198
  %232 = vmatprep.subr.bf16.mxu0 0
  %233 = vmatpush1.bf16.msra.mxu0 %v199
  %234 = vmatprep.subr.bf16.mxu0 0
  %235 = vmatpush1.bf16.msra.mxu0 %v200
  %236 = vmatprep.subr.bf16.mxu0 0
  %237 = vmatpush1.bf16.msra.mxu0 %v201
  %238 = vmatprep.subr.bf16.mxu0 0
  %239 = vmatpush1.bf16.msra.mxu0 %v202
  %240 = vmatprep.subr.bf16.mxu0 0
  %241 = vmatpush1.bf16.msra.mxu0 %v203
  %242 = vmatprep.subr.bf16.mxu0 0
  %243 = vmatpush1.bf16.msra.mxu0 %v204
  %244 = vmatprep.subr.bf16.mxu0 0
  %245 = vmatpush1.bf16.msra.mxu0 %v205
  %246 = vmatprep.subr.bf16.mxu0 0
  %247 = vmatpush1.bf16.msra.mxu0 %v206
  %248 = vmatprep.subr.bf16.mxu0 0
  %249 = vmatpush1.bf16.msra.mxu0 %v207
  %250 = vmatprep.subr.bf16.mxu0 0
  %251 = vmatpush1.bf16.msra.mxu0 %v208
  %252 = vmatprep.subr.bf16.mxu0 0
  %253 = vmatpush1.bf16.msra.mxu0 %v209
  %254 = vmatprep.subr.bf16.mxu0 0
  %255 = vmatpush1.bf16.msra.mxu0 %v210
  %256 = vmatprep.subr.bf16.mxu0 0
  %257 = vmatpush1.bf16.msra.mxu0 %v211
  %258 = vmatprep.subr.bf16.mxu0 0
  %259 = vmatpush1.bf16.msra.mxu0 %v212
  %260 = vmatprep.subr.bf16.mxu0 0
  %261 = vmatpush1.bf16.msra.mxu0 %v213
  %262 = vmatprep.mubr.bf16.mxu0 %v107
  %263 = vmatmul.mubr.bf16.gmra.mrb[0].mxu0 %v106
  %v264 = vpop.f32.mrb[0].mxu0
  %v265 = vadd.f32 %v65, %v264
  %v266 = vpop.f32.mrb[0].mxu0
  %v267 = vpop.f32.mrb[0].mxu0
  %v268 = vadd.f32 %v65, %v267
  %v269 = vpop.f32.mrb[0].mxu0
  %270 = vmatprep.mubr.bf16.mxu0 %v109
  %271 = vmatmul.mubr.bf16.gmra.mrb[0].mxu0 %v108
  %v272 = vpop.f32.mrb[0].mxu0
  %v273 = vadd.f32 %v65, %v272
  %v274 = vpop.f32.mrb[0].mxu0
  %v275 = vpop.f32.mrb[0].mxu0
  %v276 = vadd.f32 %v65, %v275
  %v277 = vpop.f32.mrb[0].mxu0
  %278 = vmatprep.mubr.bf16.mxu0 %v111
  %279 = vmatmul.mubr.bf16.gmra.mrb[0].mxu0 %v110
  %v280 = vpop.f32.mrb[0].mxu0
  %v281 = vadd.f32 %v65, %v280
  %v282 = vpop.f32.mrb[0].mxu0
  %v283 = vpop.f32.mrb[0].mxu0
  %v284 = vadd.f32 %v65, %v283
  %v285 = vpop.f32.mrb[0].mxu0
  %286 = vmatprep.mubr.bf16.mxu0 %v113
  %287 = vmatmul.mubr.bf16.gmra.mrb[0].mxu0 %v112
  %v288 = vpop.f32.mrb[0].mxu0
  %v289 = vadd.f32 %v65, %v288
  %v290 = vpop.f32.mrb[0].mxu0
  %v291 = vpop.f32.mrb[0].mxu0
  %v292 = vadd.f32 %v65, %v291
  %v293 = vpop.f32.mrb[0].mxu0
  %294 = vmatprep.mubr.bf16.mxu0 %v115
  %295 = vmatmul.mubr.bf16.gmra.mrb[0].mxu0 %v114
  %v296 = vpop.f32.mrb[0].mxu0
  %v297 = vadd.f32 %v65, %v296
  %v298 = vpop.f32.mrb[0].mxu0
  %v299 = vpop.f32.mrb[0].mxu0
  %v300 = vadd.f32 %v65, %v299
  %v301 = vpop.f32.mrb[0].mxu0
  %302 = vmatprep.mubr.bf16.mxu0 %v117
  %303 = vmatmul.mubr.bf16.gmra.mrb[0].mxu0 %v116
  %v304 = vpop.f32.mrb[0].mxu0
  %v305 = vadd.f32 %v65, %v304
  %v306 = vpop.f32.mrb[0].mxu0
  %v307 = vpop.f32.mrb[0].mxu0
  %v308 = vadd.f32 %v65, %v307
  %v309 = vpop.f32.mrb[0].mxu0
  %310 = vmatprep.mubr.bf16.mxu0 %v119
  %311 = vmatmul.mubr.bf16.gmra.mrb[0].mxu0 %v118
  %v312 = vpop.f32.mrb[0].mxu0
  %v313 = vadd.f32 %v65, %v312
  %v314 = vpop.f32.mrb[0].mxu0
  %v315 = vpop.f32.mrb[0].mxu0
  %v316 = vpop.f32.mrb[0].mxu0
  %317 = vdwg.mxu0
  %v318 = vmax.f32 %v265, 0.0
  %v319 = vmax.f32 %v268, 0.0
  %v320 = vmax.f32 %v273, 0.0
  %v321 = vmax.f32 %v276, 0.0
  %v322 = vmax.f32 %v281, 0.0
  %v323 = vmax.f32 %v284, 0.0
  %v324 = vmax.f32 %v289, 0.0
  %v325 = vmax.f32 %v292, 0.0
  %v326 = vmax.f32 %v297, 0.0
  %v327 = vmax.f32 %v300, 0.0
  %v328 = vmax.f32 %v305, 0.0
  %v329 = vmax.f32 %v308, 0.0
  %v330 = vmax.f32 %v313, 0.0
  %v331 = vpack.c.bf16 %v319, %v318
  %v332 = vpack.c.bf16 %v321, %v320
  %v333 = vpack.c.bf16 %v323, %v322
  %v334 = vpack.c.bf16 %v325, %v324
  %v335 = vpack.c.bf16 %v327, %v326
  %v336 = vpack.c.bf16 %v329, %v328
  %v337 = vpack.c.bf16 %v330, %v330
  %v345 = vunpack.c.l.b16 %v331
  %v346 = vunpack.c.h.b16 %v331
  %v347 = vunpack.c.l.b16 %v332
  %v348 = vunpack.c.h.b16 %v332
  %v349 = vunpack.c.l.b16 %v333
  %v350 = vunpack.c.h.b16 %v333
  %v351 = vunpack.c.l.b16 %v334
  %v352 = vunpack.c.h.b16 %v334
  %v353 = vunpack.c.l.b16 %v335
  %v354 = vunpack.c.h.b16 %v335
  %v355 = vunpack.c.l.b16 %v336
  %v356 = vunpack.c.h.b16 %v336
  %v357 = vunpack.c.l.b16 %v337
  %v358 = vpack.c.b16 %v345, %v345
  %v359 = vpack.c.b16 %v346, %v346
  %v360 = vpack.c.b16 %v347, %v347
  %v361 = vpack.c.b16 %v348, %v348
  %v362 = vpack.c.b16 %v349, %v349
  %v363 = vpack.c.b16 %v350, %v350
  %v364 = vpack.c.b16 %v351, %v351
  %v365 = vpack.c.b16 %v352, %v352
  %v366 = vpack.c.b16 %v353, %v353
  %v367 = vpack.c.b16 %v354, %v354
  %v368 = vpack.c.b16 %v355, %v355
  %v369 = vpack.c.b16 %v356, %v356
  %v370 = vpack.c.b16 %v357, %v357
  %384 = vst [vmem:[%s3] sm:$0xf] %v358
  %385 = vst [vmem:[%s3 + $0x4] sm:$0xf] %v359
  %386 = vst [vmem:[%s3 + $0x8] sm:$0xf] %v360
  %387 = vst [vmem:[%s3 + $0xc] sm:$0xf] %v361
  %388 = vst [vmem:[%s3 + $0x10] sm:$0xf] %v362
  %389 = vst [vmem:[%s3 + $0x14] sm:$0xf] %v363
  %390 = vst [vmem:[%s3 + $0x18] sm:$0xf] %v364
  %391 = vst [vmem:[%s3 + $0x1c] sm:$0xf] %v365
  %392 = vst [vmem:[%s3 + $0x20] sm:$0xf] %v366
  %393 = vst [vmem:[%s3 + $0x24] sm:$0xf] %v367
  %394 = vst [vmem:[%s3 + $0x28] sm:$0xf] %v368
  %395 = vst [vmem:[%s3 + $0x2c] sm:$0xf] %v369
  %396 = vst [vmem:[%s3 + $0x30] sm:$0x1] %v370
  // Predicated region
  $region14: #{autoencoder_forward.6} parent=0 // pred_check
    _
  $region15: #{autoencoder_forward.6} parent=0 // pred_check_branch
    %398 = sbr.rel (0) target = $region17
  $region16: #{autoencoder_forward.6} parent=0 // pred_region
    _
  $region17: #{autoencoder_forward.6} parent=0 // pred_fallthru
    _
  // Predicated region
  $region18: #{autoencoder_forward.6} parent=0 // pred_check
    _
  $region19: #{autoencoder_forward.6} parent=0 // pred_check_branch
    %400 = sbr.rel (0) target = $region21
  $region20: #{autoencoder_forward.6} parent=0 // pred_region
    _
  $region21: #{autoencoder_forward.6} parent=0 // pred_fallthru
    _

// kernel: autoencoder_forward.7
$region0: #{autoencoder_forward.7}
  #allocation0 [shape = 'u32[]', space=smem, size = 0x4, offset = 0x4, fixed_abs, tag = 'smem constant byte address 0x4 - core index']
  #allocation1 [shape = 'u32[144,128]{1,0:T(1,128)}', space=vmem, size = 0x12000, scoped, tag = 'internal scratch']
  %s0 = inlined_call_operand.vmem [shape: bf16[2,1568], index: 0, kind: input, shape index: {}]
  %s1 = inlined_call_operand.vmem [shape: bf16[1568,32], index: 1, kind: input, shape index: {}]
  %s2 = inlined_call_operand.vmem [shape: f32[1,32], index: 2, kind: input, shape index: {}]
  %s3 = inlined_call_operand.vmem [shape: bf16[32,128], index: 3, kind: input, shape index: {}]
  %s4 = inlined_call_operand.vmem [shape: f32[1,128], index: 4, kind: input, shape index: {}]
  %s5 = inlined_call_operand.vmem [shape: bf16[128,32], index: 5, kind: input, shape index: {}]
  %s6 = inlined_call_operand.vmem [shape: f32[1,32], index: 6, kind: input, shape index: {}]
  %s7 = inlined_call_operand.vmem [shape: bf16[32,1568], index: 7, kind: input, shape index: {}]
  %s8 = inlined_call_operand.vmem [shape: f32[1,1568], index: 8, kind: input, shape index: {}]
  %s9 = inlined_call_operand.hbm [shape: f32[2,128], index: 9, kind: output, shape index: {0}]
  %s10 = inlined_call_operand.vmem [shape: bf16[2,1568], index: 10, kind: output, shape index: {1}]
  %11 = xla_tuple %s9, %s10
  %s12 = sld [smem:[#allocation0]]
  $region54: #{autoencoder_forward.7} parent=0
    _
  %s14 = ssub.s32 1, %s12
  %s15 = scalar_select 0, %s14, %s12
  $region1: #{autoencoder_forward.7} parent=0
    #allocation2 [shape = 'u8[1024]{0}', space=vmem, size = 0x400, scoped, tag = 'output window, operand 0, single buffered']
    #allocation3 [shape = 's32[1]{0}', space=sflag, size = 0x4, scoped, tag = 'scoped memory for autoencoder_forward.7']
    %16 = vsyncpa [#allocation3], 0
    // Predicated region
    $region2: #{autoencoder_forward.7} parent=1 // pred_check
      _
    $region3: #{autoencoder_forward.7} parent=1 // pred_check_branch
      %18 = sbr.rel (0) target = $region5
    $region4: #{autoencoder_forward.7} parent=1 // pred_region
      _
    $region5: #{autoencoder_forward.7} parent=1 // pred_fallthru
      _
    // Predicated region
    $region6: #{autoencoder_forward.7} parent=1 // pred_check
      _
    $region7: #{autoencoder_forward.7} parent=1 // pred_check_branch
      %20 = sbr.rel (0) target = $region9
    $region8: #{autoencoder_forward.7} parent=1 // pred_region
      _
    $region9: #{autoencoder_forward.7} parent=1 // pred_fallthru
      _
    // Predicated region
    $region10: #{autoencoder_forward.7} parent=1 // pred_check
      _
    $region11: #{autoencoder_forward.7} parent=1 // pred_check_branch
      %22 = sbr.rel (0) target = $region13
    $region12: #{autoencoder_forward.7} parent=1 // pred_region
      _
    $region13: #{autoencoder_forward.7} parent=1 // pred_fallthru
      _
    // Predicated region
    $region14: #{autoencoder_forward.7} parent=1 // pred_check
      _
    $region15: #{autoencoder_forward.7} parent=1 // pred_check_branch
      %24 = sbr.rel (0) target = $region17
    $region16: #{autoencoder_forward.7} parent=1 // pred_region
      _
    $region17: #{autoencoder_forward.7} parent=1 // pred_fallthru
      _
    // Predicated region
    $region18: #{autoencoder_forward.7} parent=1 // pred_check
      _
    $region19: #{autoencoder_forward.7} parent=1 // pred_check_branch
      %26 = sbr.rel (0) target = $region21
    $region20: #{autoencoder_forward.7} parent=1 // pred_region
      _
    $region21: #{autoencoder_forward.7} parent=1 // pred_fallthru
      _
    // Predicated region
    $region22: #{autoencoder_forward.7} parent=1 // pred_check
      _
    $region23: #{autoencoder_forward.7} parent=1 // pred_check_branch
      %28 = sbr.rel (0) target = $region25
    $region24: #{autoencoder_forward.7} parent=1 // pred_region
      _
    $region25: #{autoencoder_forward.7} parent=1 // pred_fallthru
      _
    // Predicated region
    $region26: #{autoencoder_forward.7} parent=1 // pred_check
      _
    $region27: #{autoencoder_forward.7} parent=1 // pred_check_branch
      %30 = sbr.rel (0) target = $region29
    $region28: #{autoencoder_forward.7} parent=1 // pred_region
      _
    $region29: #{autoencoder_forward.7} parent=1 // pred_fallthru
      _
    // Predicated region
    $region30: #{autoencoder_forward.7} parent=1 // pred_check
      _
    $region31: #{autoencoder_forward.7} parent=1 // pred_check_branch
      %32 = sbr.rel (0) target = $region33
    $region32: #{autoencoder_forward.7} parent=1 // pred_region
      _
    $region33: #{autoencoder_forward.7} parent=1 // pred_fallthru
      _
    // Predicated region
    $region34: #{autoencoder_forward.7} parent=1 // pred_check
      _
    $region35: #{autoencoder_forward.7} parent=1 // pred_check_branch
      %34 = sbr.rel (0) target = $region37
    $region36: #{autoencoder_forward.7} parent=1 // pred_region
      _
    $region37: #{autoencoder_forward.7} parent=1 // pred_fallthru
      _
    %v36 = vld [vmem:[%s0] sm:$0xff]
    %v37 = vld [vmem:[%s0 + $0x8] sm:$0x1f]
    %v38 = vld [vmem:[%s1] sm:$0xf]
    %v39 = vld [vmem:[%s1 + $0x4] sm:$0xf]
    %v40 = vld [vmem:[%s1 + $0x8] sm:$0xf]
    %v41 = vld [vmem:[%s1 + $0xc] sm:$0xf]
    %v42 = vld [vmem:[%s1 + $0x10] sm:$0xf]
    %v43 = vld [vmem:[%s1 + $0x14] sm:$0xf]
    %v44 = vld [vmem:[%s1 + $0x18] sm:$0xf]
    %v45 = vld [vmem:[%s1 + $0x1c] sm:$0xf]
    %v46 = vld [vmem:[%s1 + $0x20] sm:$0xf]
    %v47 = vld [vmem:[%s1 + $0x24] sm:$0xf]
    %v48 = vld [vmem:[%s1 + $0x28] sm:$0xf]
    %v49 = vld [vmem:[%s1 + $0x2c] sm:$0xf]
    %v50 = vld [vmem:[%s1 + $0x30] sm:$0xf]
    %v51 = vld [vmem:[%s1 + $0x34] sm:$0xf]
    %v52 = vld [vmem:[%s1 + $0x38] sm:$0xf]
    %v53 = vld [vmem:[%s1 + $0x3c] sm:$0xf]
    %v54 = vld [vmem:[%s1 + $0x40] sm:$0xf]
    %v55 = vld [vmem:[%s1 + $0x44] sm:$0xf]
    %v56 = vld [vmem:[%s1 + $0x48] sm:$0xf]
    %v57 = vld [vmem:[%s1 + $0x4c] sm:$0xf]
    %v58 = vld [vmem:[%s1 + $0x50] sm:$0xf]
    %v59 = vld [vmem:[%s1 + $0x54] sm:$0xf]
    %v60 = vld [vmem:[%s1 + $0x58] sm:$0xf]
    %v61 = vld [vmem:[%s1 + $0x5c] sm:$0xf]
    %v62 = vld [vmem:[%s1 + $0x60] sm:$0xf]
    %v63 = vld [vmem:[%s1 + $0x64] sm:$0xf]
    %v64 = vld [vmem:[%s1 + $0x68] sm:$0xf]
    %v65 = vld [vmem:[%s1 + $0x6c] sm:$0xf]
    %v66 = vld [vmem:[%s1 + $0x70] sm:$0xf]
    %v67 = vld [vmem:[%s1 + $0x74] sm:$0xf]
    %v68 = vld [vmem:[%s1 + $0x78] sm:$0xf]
    %v69 = vld [vmem:[%s1 + $0x7c] sm:$0xf]
    %v70 = vld [vmem:[%s1 + $0x80] sm:$0xf]
    %v71 = vld [vmem:[%s1 + $0x84] sm:$0xf]
    %v72 = vld [vmem:[%s1 + $0x88] sm:$0xf]
    %v73 = vld [vmem:[%s1 + $0x8c] sm:$0xf]
    %v74 = vld [vmem:[%s1 + $0x90] sm:$0xf]
    %v75 = vld [vmem:[%s1 + $0x94] sm:$0xf]
    %v76 = vld [vmem:[%s1 + $0x98] sm:$0xf]
    %v77 = vld [vmem:[%s1 + $0x9c] sm:$0xf]
    %v78 = vld [vmem:[%s1 + $0xa0] sm:$0xf]
    %v79 = vld [vmem:[%s1 + $0xa4] sm:$0xf]
    %v80 = vld [vmem:[%s1 + $0xa8] sm:$0xf]
    %v81 = vld [vmem:[%s1 + $0xac] sm:$0xf]
    %v82 = vld [vmem:[%s1 + $0xb0] sm:$0xf]
    %v83 = vld [vmem:[%s1 + $0xb4] sm:$0xf]
    %v84 = vld [vmem:[%s1 + $0xb8] sm:$0xf]
    %v85 = vld [vmem:[%s1 + $0xbc] sm:$0xf]
    %v86 = vld [vmem:[%s1 + $0xc0] sm:$0xf]
    %v87 = vld [vmem:[%s1 + $0xc4] sm:$0xf]
    %v88 = vld [vmem:[%s1 + $0xc8] sm:$0xf]
    %v89 = vld [vmem:[%s1 + $0xcc] sm:$0xf]
    %v90 = vld [vmem:[%s1 + $0xd0] sm:$0xf]
    %v91 = vld [vmem:[%s1 + $0xd4] sm:$0xf]
    %v92 = vld [vmem:[%s1 + $0xd8] sm:$0xf]
    %v93 = vld [vmem:[%s1 + $0xdc] sm:$0xf]
    %v94 = vld [vmem:[%s1 + $0xe0] sm:$0xf]
    %v95 = vld [vmem:[%s1 + $0xe4] sm:$0xf]
    %v96 = vld [vmem:[%s1 + $0xe8] sm:$0xf]
    %v97 = vld [vmem:[%s1 + $0xec] sm:$0xf]
    %v98 = vld [vmem:[%s1 + $0xf0] sm:$0xf]
    %v99 = vld [vmem:[%s1 + $0xf4] sm:$0xf]
    %v100 = vld [vmem:[%s1 + $0xf8] sm:$0xf]
    %v101 = vld [vmem:[%s1 + $0xfc] sm:$0xf]
    %v102 = vld [vmem:[%s1 + $0x100] sm:$0xf]
    %v103 = vld [vmem:[%s1 + $0x104] sm:$0xf]
    %v104 = vld [vmem:[%s1 + $0x108] sm:$0xf]
    %v105 = vld [vmem:[%s1 + $0x10c] sm:$0xf]
    %v106 = vld [vmem:[%s1 + $0x110] sm:$0xf]
    %v107 = vld [vmem:[%s1 + $0x114] sm:$0xf]
    %v108 = vld [vmem:[%s1 + $0x118] sm:$0xf]
    %v109 = vld [vmem:[%s1 + $0x11c] sm:$0xf]
    %v110 = vld [vmem:[%s1 + $0x120] sm:$0xf]
    %v111 = vld [vmem:[%s1 + $0x124] sm:$0xf]
    %v112 = vld [vmem:[%s1 + $0x128] sm:$0xf]
    %v113 = vld [vmem:[%s1 + $0x12c] sm:$0xf]
    %v114 = vld [vmem:[%s1 + $0x130] sm:$0xf]
    %v115 = vld [vmem:[%s1 + $0x134] sm:$0xf]
    %v116 = vld [vmem:[%s1 + $0x138] sm:$0xf]
    %v117 = vld [vmem:[%s1 + $0x13c] sm:$0xf]
    %v118 = vld [vmem:[%s1 + $0x140] sm:$0xf]
    %v119 = vld [vmem:[%s1 + $0x144] sm:$0xf]
    %v120 = vld [vmem:[%s1 + $0x148] sm:$0xf]
    %v121 = vld [vmem:[%s1 + $0x14c] sm:$0xf]
    %v122 = vld [vmem:[%s1 + $0x150] sm:$0xf]
    %v123 = vld [vmem:[%s1 + $0x154] sm:$0xf]
    %v124 = vld [vmem:[%s1 + $0x158] sm:$0xf]
    %v125 = vld [vmem:[%s1 + $0x15c] sm:$0xf]
    %v126 = vld [vmem:[%s1 + $0x160] sm:$0xf]
    %v127 = vld [vmem:[%s1 + $0x164] sm:$0xf]
    %v128 = vld [vmem:[%s1 + $0x168] sm:$0xf]
    %v129 = vld [vmem:[%s1 + $0x16c] sm:$0xf]
    %v130 = vld [vmem:[%s1 + $0x170] sm:$0xf]
    %v131 = vld [vmem:[%s1 + $0x174] sm:$0xf]
    %v132 = vld [vmem:[%s1 + $0x178] sm:$0xf]
    %v133 = vld [vmem:[%s1 + $0x17c] sm:$0xf]
    %v134 = vld [vmem:[%s1 + $0x180] sm:$0xf]
    %v135 = vld [vmem:[%s1 + $0x184] sm:$0xf]
    %v136 = vld [vmem:[%s1 + $0x188] sm:$0xf]
    %v137 = vld [vmem:[%s1 + $0x18c] sm:$0xf]
    %v138 = vld [vmem:[%s1 + $0x190] sm:$0xf]
    %v139 = vld [vmem:[%s1 + $0x194] sm:$0xf]
    %v140 = vld [vmem:[%s1 + $0x198] sm:$0xf]
    %v141 = vld [vmem:[%s1 + $0x19c] sm:$0xf]
    %v142 = vld [vmem:[%s1 + $0x1a0] sm:$0xf]
    %v143 = vld [vmem:[%s1 + $0x1a4] sm:$0xf]
    %v144 = vld [vmem:[%s1 + $0x1a8] sm:$0xf]
    %v145 = vld [vmem:[%s1 + $0x1ac] sm:$0xf]
    %v146 = vld [vmem:[%s1 + $0x1b0] sm:$0xf]
    %v147 = vld [vmem:[%s1 + $0x1b4] sm:$0xf]
    %v148 = vld [vmem:[%s1 + $0x1b8] sm:$0xf]
    %v149 = vld [vmem:[%s1 + $0x1bc] sm:$0xf]
    %v150 = vld [vmem:[%s1 + $0x1c0] sm:$0xf]
    %v151 = vld [vmem:[%s1 + $0x1c4] sm:$0xf]
    %v152 = vld [vmem:[%s1 + $0x1c8] sm:$0xf]
    %v153 = vld [vmem:[%s1 + $0x1cc] sm:$0xf]
    %v154 = vld [vmem:[%s1 + $0x1d0] sm:$0xf]
    %v155 = vld [vmem:[%s1 + $0x1d4] sm:$0xf]
    %v156 = vld [vmem:[%s1 + $0x1d8] sm:$0xf]
    %v157 = vld [vmem:[%s1 + $0x1dc] sm:$0xf]
    %v158 = vld [vmem:[%s1 + $0x1e0] sm:$0xf]
    %v159 = vld [vmem:[%s1 + $0x1e4] sm:$0xf]
    %v160 = vld [vmem:[%s1 + $0x1e8] sm:$0xf]
    %v161 = vld [vmem:[%s1 + $0x1ec] sm:$0xf]
    %v162 = vld [vmem:[%s1 + $0x1f0] sm:$0xf]
    %v163 = vld [vmem:[%s1 + $0x1f4] sm:$0xf]
    %v164 = vld [vmem:[%s1 + $0x1f8] sm:$0xf]
    %v165 = vld [vmem:[%s1 + $0x1fc] sm:$0xf]
    %v166 = vld [vmem:[%s1 + $0x200] sm:$0xf]
    %v167 = vld [vmem:[%s1 + $0x204] sm:$0xf]
    %v168 = vld [vmem:[%s1 + $0x208] sm:$0xf]
    %v169 = vld [vmem:[%s1 + $0x20c] sm:$0xf]
    %v170 = vld [vmem:[%s1 + $0x210] sm:$0xf]
    %v171 = vld [vmem:[%s1 + $0x214] sm:$0xf]
    %v172 = vld [vmem:[%s1 + $0x218] sm:$0xf]
    %v173 = vld [vmem:[%s1 + $0x21c] sm:$0xf]
    %v174 = vld [vmem:[%s1 + $0x220] sm:$0xf]
    %v175 = vld [vmem:[%s1 + $0x224] sm:$0xf]
    %v176 = vld [vmem:[%s1 + $0x228] sm:$0xf]
    %v177 = vld [vmem:[%s1 + $0x22c] sm:$0xf]
    %v178 = vld [vmem:[%s1 + $0x230] sm:$0xf]
    %v179 = vld [vmem:[%s1 + $0x234] sm:$0xf]
    %v180 = vld [vmem:[%s1 + $0x238] sm:$0xf]
    %v181 = vld [vmem:[%s1 + $0x23c] sm:$0xf]
    %v182 = vld [vmem:[%s1 + $0x240] sm:$0xf]
    %v183 = vld [vmem:[%s1 + $0x244] sm:$0xf]
    %v184 = vld [vmem:[%s1 + $0x248] sm:$0xf]
    %v185 = vld [vmem:[%s1 + $0x24c] sm:$0xf]
    %v186 = vld [vmem:[%s1 + $0x250] sm:$0xf]
    %v187 = vld [vmem:[%s1 + $0x254] sm:$0xf]
    %v188 = vld [vmem:[%s1 + $0x258] sm:$0xf]
    %v189 = vld [vmem:[%s1 + $0x25c] sm:$0xf]
    %v190 = vld [vmem:[%s1 + $0x260] sm:$0xf]
    %v191 = vld [vmem:[%s1 + $0x264] sm:$0xf]
    %v192 = vld [vmem:[%s1 + $0x268] sm:$0xf]
    %v193 = vld [vmem:[%s1 + $0x26c] sm:$0xf]
    %v194 = vld [vmem:[%s1 + $0x270] sm:$0xf]
    %v195 = vld [vmem:[%s1 + $0x274] sm:$0xf]
    %v196 = vld [vmem:[%s1 + $0x278] sm:$0xf]
    %v197 = vld [vmem:[%s1 + $0x27c] sm:$0xf]
    %v198 = vld [vmem:[%s1 + $0x280] sm:$0xf]
    %v199 = vld [vmem:[%s1 + $0x284] sm:$0xf]
    %v200 = vld [vmem:[%s1 + $0x288] sm:$0xf]
    %v201 = vld [vmem:[%s1 + $0x28c] sm:$0xf]
    %v202 = vld [vmem:[%s1 + $0x290] sm:$0xf]
    %v203 = vld [vmem:[%s1 + $0x294] sm:$0xf]
    %v204 = vld [vmem:[%s1 + $0x298] sm:$0xf]
    %v205 = vld [vmem:[%s1 + $0x29c] sm:$0xf]
    %v206 = vld [vmem:[%s1 + $0x2a0] sm:$0xf]
    %v207 = vld [vmem:[%s1 + $0x2a4] sm:$0xf]
    %v208 = vld [vmem:[%s1 + $0x2a8] sm:$0xf]
    %v209 = vld [vmem:[%s1 + $0x2ac] sm:$0xf]
    %v210 = vld [vmem:[%s1 + $0x2b0] sm:$0xf]
    %v211 = vld [vmem:[%s1 + $0x2b4] sm:$0xf]
    %v212 = vld [vmem:[%s1 + $0x2b8] sm:$0xf]
    %v213 = vld [vmem:[%s1 + $0x2bc] sm:$0xf]
    %v214 = vld [vmem:[%s1 + $0x2c0] sm:$0xf]
    %v215 = vld [vmem:[%s1 + $0x2c4] sm:$0xf]
    %v216 = vld [vmem:[%s1 + $0x2c8] sm:$0xf]
    %v217 = vld [vmem:[%s1 + $0x2cc] sm:$0xf]
    %v218 = vld [vmem:[%s1 + $0x2d0] sm:$0xf]
    %v219 = vld [vmem:[%s1 + $0x2d4] sm:$0xf]
    %v220 = vld [vmem:[%s1 + $0x2d8] sm:$0xf]
    %v221 = vld [vmem:[%s1 + $0x2dc] sm:$0xf]
    %v222 = vld [vmem:[%s1 + $0x2e0] sm:$0xf]
    %v223 = vld [vmem:[%s1 + $0x2e4] sm:$0xf]
    %v224 = vld [vmem:[%s1 + $0x2e8] sm:$0xf]
    %v225 = vld [vmem:[%s1 + $0x2ec] sm:$0xf]
    %v226 = vld [vmem:[%s1 + $0x2f0] sm:$0xf]
    %v227 = vld [vmem:[%s1 + $0x2f4] sm:$0xf]
    %v228 = vld [vmem:[%s1 + $0x2f8] sm:$0xf]
    %v229 = vld [vmem:[%s1 + $0x2fc] sm:$0xf]
    %v230 = vld [vmem:[%s1 + $0x300] sm:$0xf]
    %v231 = vld [vmem:[%s1 + $0x304] sm:$0xf]
    %v232 = vld [vmem:[%s1 + $0x308] sm:$0xf]
    %v233 = vld [vmem:[%s1 + $0x30c] sm:$0xf]
    %v234 = vld [vmem:[%s2] sm:$0x1]
    %v236 = vlaneseq
    %v237 = vshrl.u32 %v236, 7
    %v238 = vsub.s32 0, %v237
    %v239 = vrot.slane %v234, %v238
    %v243 = vcombine.high %v36, %v36
    %v245 = vunpack.c.l.s4 1966171168
    %v246 = vunpack.c.0.s8 %v245
    %v247 = vlaneseq
    %v248 = vshrl.u32 %v247, 7
    %v249 = vsub.s32 %v246, %v248
    %v250 = vrot.slane %v36, %v249
    %v252 = vunpack.c.l.s4 1966171168
    %v253 = vunpack.c.0.s8 %v252
    %v254 = vlaneseq
    %v255 = vshrl.u32 %v254, 7
    %v256 = vsub.s32 %v253, %v255
    %v257 = vrot.slane %v243, %v256
    %v258 = vcombine.high %v250, %v250
    %v259 = vcombine.high %v257, %v257
    %v261 = vunpack.c.l.s4 1966171168
    %v262 = vunpack.c.0.s8 %v261
    %v263 = vlaneseq
    %v264 = vshrl.u32 %v263, 7
    %v265 = vsub.s32 %v262, %v264
    %v266 = vrot.slane %v250, %v265
    %v268 = vunpack.c.l.s4 1966171168
    %v269 = vunpack.c.0.s8 %v268
    %v270 = vlaneseq
    %v271 = vshrl.u32 %v270, 7
    %v272 = vsub.s32 %v269, %v271
    %v273 = vrot.slane %v257, %v272
    %v275 = vunpack.c.l.s4 1966171168
    %v276 = vunpack.c.0.s8 %v275
    %v277 = vlaneseq
    %v278 = vshrl.u32 %v277, 7
    %v279 = vsub.s32 %v276, %v278
    %v280 = vrot.slane %v258, %v279
    %v282 = vunpack.c.l.s4 1966171168
    %v283 = vunpack.c.0.s8 %v282
    %v284 = vlaneseq
    %v285 = vshrl.u32 %v284, 7
    %v286 = vsub.s32 %v283, %v285
    %v287 = vrot.slane %v259, %v286
    %v288 = vcombine.high %v266, %v266
    %v289 = vcombine.high %v273, %v273
    %v290 = vcombine.high %v280, %v280
    %v291 = vcombine.high %v287, %v287
    %v292 = vcombine.high %v37, %v37
    %v294 = vunpack.c.l.s4 1966171168
    %v295 = vunpack.c.0.s8 %v294
    %v296 = vlaneseq
    %v297 = vshrl.u32 %v296, 7
    %v298 = vsub.s32 %v295, %v297
    %v299 = vrot.slane %v37, %v298
    %v301 = vunpack.c.l.s4 1966171168
    %v302 = vunpack.c.0.s8 %v301
    %v303 = vlaneseq
    %v304 = vshrl.u32 %v303, 7
    %v305 = vsub.s32 %v302, %v304
    %v306 = vrot.slane %v292, %v305
    %v307 = vcombine.high %v299, %v299
    %v309 = vunpack.c.l.s4 1966171168
    %v310 = vunpack.c.0.s8 %v309
    %v311 = vlaneseq
    %v312 = vshrl.u32 %v311, 7
    %v313 = vsub.s32 %v310, %v312
    %v314 = vrot.slane %v299, %v313
    %v316 = vunpack.c.l.s4 1966171168
    %v317 = vunpack.c.0.s8 %v316
    %v318 = vlaneseq
    %v319 = vshrl.u32 %v318, 7
    %v320 = vsub.s32 %v317, %v319
    %v321 = vrot.slane %v306, %v320
    %v323 = vunpack.c.l.s4 1966171168
    %v324 = vunpack.c.0.s8 %v323
    %v325 = vlaneseq
    %v326 = vshrl.u32 %v325, 7
    %v327 = vsub.s32 %v324, %v326
    %v328 = vrot.slane %v307, %v327
    %v329 = vcombine.high %v314, %v314
    %v330 = vcombine.high %v328, %v328
    %v539 = vunpack.c.l.b16 %v38
    %v540 = vunpack.c.l.b16 %v39
    %v541 = vunpack.c.l.b16 %v40
    %v542 = vunpack.c.l.b16 %v41
    %v543 = vunpack.c.l.b16 %v42
    %v544 = vunpack.c.l.b16 %v43
    %v545 = vunpack.c.l.b16 %v44
    %v546 = vunpack.c.l.b16 %v45
    %v547 = vunpack.c.l.b16 %v46
    %v548 = vunpack.c.l.b16 %v47
    %v549 = vunpack.c.l.b16 %v48
    %v550 = vunpack.c.l.b16 %v49
    %v551 = vunpack.c.l.b16 %v50
    %v552 = vunpack.c.l.b16 %v51
    %v553 = vunpack.c.l.b16 %v52
    %v554 = vunpack.c.l.b16 %v53
    %v555 = vunpack.c.l.b16 %v54
    %v556 = vunpack.c.l.b16 %v55
    %v557 = vunpack.c.l.b16 %v56
    %v558 = vunpack.c.l.b16 %v57
    %v559 = vunpack.c.l.b16 %v58
    %v560 = vunpack.c.l.b16 %v59
    %v561 = vunpack.c.l.b16 %v60
    %v562 = vunpack.c.l.b16 %v61
    %v563 = vunpack.c.l.b16 %v62
    %v564 = vunpack.c.l.b16 %v63
    %v565 = vunpack.c.l.b16 %v64
    %v566 = vunpack.c.l.b16 %v65
    %v567 = vunpack.c.l.b16 %v66
    %v568 = vunpack.c.l.b16 %v67
    %v569 = vunpack.c.l.b16 %v68
    %v570 = vunpack.c.l.b16 %v69
    %v571 = vunpack.c.l.b16 %v70
    %v572 = vunpack.c.l.b16 %v71
    %v573 = vunpack.c.l.b16 %v72
    %v574 = vunpack.c.l.b16 %v73
    %v575 = vunpack.c.l.b16 %v74
    %v576 = vunpack.c.l.b16 %v75
    %v577 = vunpack.c.l.b16 %v76
    %v578 = vunpack.c.l.b16 %v77
    %v579 = vunpack.c.l.b16 %v78
    %v580 = vunpack.c.l.b16 %v79
    %v581 = vunpack.c.l.b16 %v80
    %v582 = vunpack.c.l.b16 %v81
    %v583 = vunpack.c.l.b16 %v82
    %v584 = vunpack.c.l.b16 %v83
    %v585 = vunpack.c.l.b16 %v84
    %v586 = vunpack.c.l.b16 %v85
    %v587 = vunpack.c.l.b16 %v86
    %v588 = vunpack.c.l.b16 %v87
    %v589 = vunpack.c.l.b16 %v88
    %v590 = vunpack.c.l.b16 %v89
    %v591 = vunpack.c.l.b16 %v90
    %v592 = vunpack.c.l.b16 %v91
    %v593 = vunpack.c.l.b16 %v92
    %v594 = vunpack.c.l.b16 %v93
    %v595 = vunpack.c.l.b16 %v94
    %v596 = vunpack.c.l.b16 %v95
    %v597 = vunpack.c.l.b16 %v96
    %v598 = vunpack.c.l.b16 %v97
    %v599 = vunpack.c.l.b16 %v98
    %v600 = vunpack.c.l.b16 %v99
    %v601 = vunpack.c.l.b16 %v100
    %v602 = vunpack.c.l.b16 %v101
    %v603 = vunpack.c.l.b16 %v102
    %v604 = vunpack.c.l.b16 %v103
    %v605 = vunpack.c.l.b16 %v104
    %v606 = vunpack.c.l.b16 %v105
    %v607 = vunpack.c.l.b16 %v106
    %v608 = vunpack.c.l.b16 %v107
    %v609 = vunpack.c.l.b16 %v108
    %v610 = vunpack.c.l.b16 %v109
    %v611 = vunpack.c.l.b16 %v110
    %v612 = vunpack.c.l.b16 %v111
    %v613 = vunpack.c.l.b16 %v112
    %v614 = vunpack.c.l.b16 %v113
    %v615 = vunpack.c.l.b16 %v114
    %v616 = vunpack.c.l.b16 %v115
    %v617 = vunpack.c.l.b16 %v116
    %v618 = vunpack.c.l.b16 %v117
    %v619 = vunpack.c.l.b16 %v118
    %v620 = vunpack.c.l.b16 %v119
    %v621 = vunpack.c.l.b16 %v120
    %v622 = vunpack.c.l.b16 %v121
    %v623 = vunpack.c.l.b16 %v122
    %v624 = vunpack.c.l.b16 %v123
    %v625 = vunpack.c.l.b16 %v124
    %v626 = vunpack.c.l.b16 %v125
    %v627 = vunpack.c.l.b16 %v126
    %v628 = vunpack.c.l.b16 %v127
    %v629 = vunpack.c.l.b16 %v128
    %v630 = vunpack.c.l.b16 %v129
    %v631 = vunpack.c.l.b16 %v130
    %v632 = vunpack.c.l.b16 %v131
    %v633 = vunpack.c.l.b16 %v132
    %v634 = vunpack.c.l.b16 %v133
    %v635 = vunpack.c.l.b16 %v134
    %v636 = vunpack.c.l.b16 %v135
    %v637 = vunpack.c.l.b16 %v136
    %v638 = vunpack.c.l.b16 %v137
    %v639 = vunpack.c.l.b16 %v138
    %v640 = vunpack.c.l.b16 %v139
    %v641 = vunpack.c.l.b16 %v140
    %v642 = vunpack.c.l.b16 %v141
    %v643 = vunpack.c.l.b16 %v142
    %v644 = vunpack.c.l.b16 %v143
    %v645 = vunpack.c.l.b16 %v144
    %v646 = vunpack.c.l.b16 %v145
    %v647 = vunpack.c.l.b16 %v146
    %v648 = vunpack.c.l.b16 %v147
    %v649 = vunpack.c.l.b16 %v148
    %v650 = vunpack.c.l.b16 %v149
    %v651 = vunpack.c.l.b16 %v150
    %v652 = vunpack.c.l.b16 %v151
    %v653 = vunpack.c.l.b16 %v152
    %v654 = vunpack.c.l.b16 %v153
    %v655 = vunpack.c.l.b16 %v154
    %v656 = vunpack.c.l.b16 %v155
    %v657 = vunpack.c.l.b16 %v156
    %v658 = vunpack.c.l.b16 %v157
    %v659 = vunpack.c.l.b16 %v158
    %v660 = vunpack.c.l.b16 %v159
    %v661 = vunpack.c.l.b16 %v160
    %v662 = vunpack.c.l.b16 %v161
    %v663 = vunpack.c.l.b16 %v162
    %v664 = vunpack.c.l.b16 %v163
    %v665 = vunpack.c.l.b16 %v164
    %v666 = vunpack.c.l.b16 %v165
    %v667 = vunpack.c.l.b16 %v166
    %v668 = vunpack.c.l.b16 %v167
    %v669 = vunpack.c.l.b16 %v168
    %v670 = vunpack.c.l.b16 %v169
    %v671 = vunpack.c.l.b16 %v170
    %v672 = vunpack.c.l.b16 %v171
    %v673 = vunpack.c.l.b16 %v172
    %v674 = vunpack.c.l.b16 %v173
    %v675 = vunpack.c.l.b16 %v174
    %v676 = vunpack.c.l.b16 %v175
    %v677 = vunpack.c.l.b16 %v176
    %v678 = vunpack.c.l.b16 %v177
    %v679 = vunpack.c.l.b16 %v178
    %v680 = vunpack.c.l.b16 %v179
    %v681 = vunpack.c.l.b16 %v180
    %v682 = vunpack.c.l.b16 %v181
    %v683 = vunpack.c.l.b16 %v182
    %v684 = vunpack.c.l.b16 %v183
    %v685 = vunpack.c.l.b16 %v184
    %v686 = vunpack.c.l.b16 %v185
    %v687 = vunpack.c.l.b16 %v186
    %v688 = vunpack.c.l.b16 %v187
    %v689 = vunpack.c.l.b16 %v188
    %v690 = vunpack.c.l.b16 %v189
    %v691 = vunpack.c.l.b16 %v190
    %v692 = vunpack.c.l.b16 %v191
    %v693 = vunpack.c.l.b16 %v192
    %v694 = vunpack.c.l.b16 %v193
    %v695 = vunpack.c.l.b16 %v194
    %v696 = vunpack.c.l.b16 %v195
    %v697 = vunpack.c.l.b16 %v196
    %v698 = vunpack.c.l.b16 %v197
    %v699 = vunpack.c.l.b16 %v198
    %v700 = vunpack.c.l.b16 %v199
    %v701 = vunpack.c.l.b16 %v200
    %v702 = vunpack.c.l.b16 %v201
    %v703 = vunpack.c.l.b16 %v202
    %v704 = vunpack.c.l.b16 %v203
    %v705 = vunpack.c.l.b16 %v204
    %v706 = vunpack.c.l.b16 %v205
    %v707 = vunpack.c.l.b16 %v206
    %v708 = vunpack.c.l.b16 %v207
    %v709 = vunpack.c.l.b16 %v208
    %v710 = vunpack.c.l.b16 %v209
    %v711 = vunpack.c.l.b16 %v210
    %v712 = vunpack.c.l.b16 %v211
    %v713 = vunpack.c.l.b16 %v212
    %v714 = vunpack.c.l.b16 %v213
    %v715 = vunpack.c.l.b16 %v214
    %v716 = vunpack.c.l.b16 %v215
    %v717 = vunpack.c.l.b16 %v216
    %v718 = vunpack.c.l.b16 %v217
    %v719 = vunpack.c.l.b16 %v218
    %v720 = vunpack.c.l.b16 %v219
    %v721 = vunpack.c.l.b16 %v220
    %v722 = vunpack.c.l.b16 %v221
    %v723 = vunpack.c.l.b16 %v222
    %v724 = vunpack.c.l.b16 %v223
    %v725 = vunpack.c.l.b16 %v224
    %v726 = vunpack.c.l.b16 %v225
    %v727 = vunpack.c.l.b16 %v226
    %v728 = vunpack.c.l.b16 %v227
    %v729 = vunpack.c.l.b16 %v228
    %v730 = vunpack.c.l.b16 %v229
    %v731 = vunpack.c.l.b16 %v230
    %v732 = vunpack.c.l.b16 %v231
    %v733 = vunpack.c.l.b16 %v232
    %v734 = vunpack.c.l.b16 %v233
    %v735 = vpack.c.b16 %v540, %v539
    %v736 = vpack.c.b16 %v542, %v541
    %v737 = vpack.c.b16 %v544, %v543
    %v738 = vpack.c.b16 %v546, %v545
    %v739 = vpack.c.b16 %v548, %v547
    %v740 = vpack.c.b16 %v550, %v549
    %v741 = vpack.c.b16 %v552, %v551
    %v742 = vpack.c.b16 %v554, %v553
    %v743 = vpack.c.b16 %v556, %v555
    %v744 = vpack.c.b16 %v558, %v557
    %v745 = vpack.c.b16 %v560, %v559
    %v746 = vpack.c.b16 %v562, %v561
    %v747 = vpack.c.b16 %v564, %v563
    %v748 = vpack.c.b16 %v566, %v565
    %v749 = vpack.c.b16 %v568, %v567
    %v750 = vpack.c.b16 %v570, %v569
    %v751 = vpack.c.b16 %v572, %v571
    %v752 = vpack.c.b16 %v574, %v573
    %v753 = vpack.c.b16 %v576, %v575
    %v754 = vpack.c.b16 %v578, %v577
    %v755 = vpack.c.b16 %v580, %v579
    %v756 = vpack.c.b16 %v582, %v581
    %v757 = vpack.c.b16 %v584, %v583
    %v758 = vpack.c.b16 %v586, %v585
    %v759 = vpack.c.b16 %v588, %v587
    %v760 = vpack.c.b16 %v590, %v589
    %v761 = vpack.c.b16 %v592, %v591
    %v762 = vpack.c.b16 %v594, %v593
    %v763 = vpack.c.b16 %v596, %v595
    %v764 = vpack.c.b16 %v598, %v597
    %v765 = vpack.c.b16 %v600, %v599
    %v766 = vpack.c.b16 %v602, %v601
    %v767 = vpack.c.b16 %v604, %v603
    %v768 = vpack.c.b16 %v606, %v605
    %v769 = vpack.c.b16 %v608, %v607
    %v770 = vpack.c.b16 %v610, %v609
    %v771 = vpack.c.b16 %v612, %v611
    %v772 = vpack.c.b16 %v614, %v613
    %v773 = vpack.c.b16 %v616, %v615
    %v774 = vpack.c.b16 %v618, %v617
    %v775 = vpack.c.b16 %v620, %v619
    %v776 = vpack.c.b16 %v622, %v621
    %v777 = vpack.c.b16 %v624, %v623
    %v778 = vpack.c.b16 %v626, %v625
    %v779 = vpack.c.b16 %v628, %v627
    %v780 = vpack.c.b16 %v630, %v629
    %v781 = vpack.c.b16 %v632, %v631
    %v782 = vpack.c.b16 %v634, %v633
    %v783 = vpack.c.b16 %v636, %v635
    %v784 = vpack.c.b16 %v638, %v637
    %v785 = vpack.c.b16 %v640, %v639
    %v786 = vpack.c.b16 %v642, %v641
    %v787 = vpack.c.b16 %v644, %v643
    %v788 = vpack.c.b16 %v646, %v645
    %v789 = vpack.c.b16 %v648, %v647
    %v790 = vpack.c.b16 %v650, %v649
    %v791 = vpack.c.b16 %v652, %v651
    %v792 = vpack.c.b16 %v654, %v653
    %v793 = vpack.c.b16 %v656, %v655
    %v794 = vpack.c.b16 %v658, %v657
    %v795 = vpack.c.b16 %v660, %v659
    %v796 = vpack.c.b16 %v662, %v661
    %v797 = vpack.c.b16 %v664, %v663
    %v798 = vpack.c.b16 %v666, %v665
    %v799 = vpack.c.b16 %v668, %v667
    %v800 = vpack.c.b16 %v670, %v669
    %v801 = vpack.c.b16 %v672, %v671
    %v802 = vpack.c.b16 %v674, %v673
    %v803 = vpack.c.b16 %v676, %v675
    %v804 = vpack.c.b16 %v678, %v677
    %v805 = vpack.c.b16 %v680, %v679
    %v806 = vpack.c.b16 %v682, %v681
    %v807 = vpack.c.b16 %v684, %v683
    %v808 = vpack.c.b16 %v686, %v685
    %v809 = vpack.c.b16 %v688, %v687
    %v810 = vpack.c.b16 %v690, %v689
    %v811 = vpack.c.b16 %v692, %v691
    %v812 = vpack.c.b16 %v694, %v693
    %v813 = vpack.c.b16 %v696, %v695
    %v814 = vpack.c.b16 %v698, %v697
    %v815 = vpack.c.b16 %v700, %v699
    %v816 = vpack.c.b16 %v702, %v701
    %v817 = vpack.c.b16 %v704, %v703
    %v818 = vpack.c.b16 %v706, %v705
    %v819 = vpack.c.b16 %v708, %v707
    %v820 = vpack.c.b16 %v710, %v709
    %v821 = vpack.c.b16 %v712, %v711
    %v822 = vpack.c.b16 %v714, %v713
    %v823 = vpack.c.b16 %v716, %v715
    %v824 = vpack.c.b16 %v718, %v717
    %v825 = vpack.c.b16 %v720, %v719
    %v826 = vpack.c.b16 %v722, %v721
    %v827 = vpack.c.b16 %v724, %v723
    %v828 = vpack.c.b16 %v726, %v725
    %v829 = vpack.c.b16 %v728, %v727
    %v830 = vpack.c.b16 %v730, %v729
    %v831 = vpack.c.b16 %v732, %v731
    %v832 = vpack.c.b16 %v734, %v733
    %vm931 = vcmask 261120
    %v933 = vsel %vm931, %v321, 0
    %935 = vmatprep.subr.bf16.mxu0 0
    %936 = vmatpush1.bf16.msra.mxu0 %v735
    %937 = vmatprep.subr.bf16.mxu0 0
    %938 = vmatpush1.bf16.msra.mxu0 %v736
    %939 = vmatprep.subr.bf16.mxu0 0
    %940 = vmatpush1.bf16.msra.mxu0 %v737
    %941 = vmatprep.subr.bf16.mxu0 0
    %942 = vmatpush1.bf16.msra.mxu0 %v738
    %943 = vmatprep.subr.bf16.mxu0 0
    %944 = vmatpush1.bf16.msra.mxu0 %v739
    %945 = vmatprep.subr.bf16.mxu0 0
    %946 = vmatpush1.bf16.msra.mxu0 %v740
    %947 = vmatprep.subr.bf16.mxu0 0
    %948 = vmatpush1.bf16.msra.mxu0 %v741
    %949 = vmatprep.subr.bf16.mxu0 0
    %950 = vmatpush1.bf16.msra.mxu0 %v742
    %951 = vmatprep.subr.bf16.mxu0 0
    %952 = vmatpush1.bf16.msra.mxu0 %v743
    %953 = vmatprep.subr.bf16.mxu0 0
    %954 = vmatpush1.bf16.msra.mxu0 %v744
    %955 = vmatprep.subr.bf16.mxu0 0
    %956 = vmatpush1.bf16.msra.mxu0 %v745
    %957 = vmatprep.subr.bf16.mxu0 0
    %958 = vmatpush1.bf16.msra.mxu0 %v746
    %959 = vmatprep.subr.bf16.mxu0 0
    %960 = vmatpush1.bf16.msra.mxu0 %v747
    %961 = vmatprep.subr.bf16.mxu0 0
    %962 = vmatpush1.bf16.msra.mxu0 %v748
    %963 = vmatprep.subr.bf16.mxu0 0
    %964 = vmatpush1.bf16.msra.mxu0 %v749
    %965 = vmatprep.subr.bf16.mxu0 0
    %966 = vmatpush1.bf16.msra.mxu0 %v750
    %967 = vmatprep.mubr.bf16.mxu0 %v280
    %968 = vmatmul.mubr.bf16.gmra.mrb[0].mxu0 %v266
    %v969 = vpop.f32.mrb[0].mxu0
    %v970 = vadd.f32 %v239, %v969
    %v971 = vpop.f32.mrb[0].mxu0
    %v972 = vpop.f32.mrb[0].mxu0
    %v973 = vpop.f32.mrb[0].mxu0
    %974 = vdwg.mxu0
    %975 = vmatprep.subr.bf16.mxu0 0
    %976 = vmatpush1.bf16.msra.mxu0 %v751
    %977 = vmatprep.subr.bf16.mxu0 0
    %978 = vmatpush1.bf16.msra.mxu0 %v752
    %979 = vmatprep.subr.bf16.mxu0 0
    %980 = vmatpush1.bf16.msra.mxu0 %v753
    %981 = vmatprep.subr.bf16.mxu0 0
    %982 = vmatpush1.bf16.msra.mxu0 %v754
    %983 = vmatprep.subr.bf16.mxu0 0
    %984 = vmatpush1.bf16.msra.mxu0 %v755
    %985 = vmatprep.subr.bf16.mxu0 0
    %986 = vmatpush1.bf16.msra.mxu0 %v756
    %987 = vmatprep.subr.bf16.mxu0 0
    %988 = vmatpush1.bf16.msra.mxu0 %v757
    %989 = vmatprep.subr.bf16.mxu0 0
    %990 = vmatpush1.bf16.msra.mxu0 %v758
    %991 = vmatprep.subr.bf16.mxu0 0
    %992 = vmatpush1.bf16.msra.mxu0 %v759
    %993 = vmatprep.subr.bf16.mxu0 0
    %994 = vmatpush1.bf16.msra.mxu0 %v760
    %995 = vmatprep.subr.bf16.mxu0 0
    %996 = vmatpush1.bf16.msra.mxu0 %v761
    %997 = vmatprep.subr.bf16.mxu0 0
    %998 = vmatpush1.bf16.msra.mxu0 %v762
    %999 = vmatprep.subr.bf16.mxu0 0
    %1000 = vmatpush1.bf16.msra.mxu0 %v763
    %1001 = vmatprep.subr.bf16.mxu0 0
    %1002 = vmatpush1.bf16.msra.mxu0 %v764
    %1003 = vmatprep.subr.bf16.mxu0 0
    %1004 = vmatpush1.bf16.msra.mxu0 %v765
    %1005 = vmatprep.subr.bf16.mxu0 0
    %1006 = vmatpush1.bf16.msra.mxu0 %v766
    %1007 = vmatprep.mubr.bf16.mxu0 %v290
    %1008 = vmatmul.mubr.bf16.gmra.mrb[0].mxu0 %v288
    %v1009 = vpop.f32.mrb[0].mxu0
    %v1010 = vadd.f32 %v970, %v1009
    %v1011 = vpop.f32.mrb[0].mxu0
    %v1012 = vpop.f32.mrb[0].mxu0
    %v1013 = vpop.f32.mrb[0].mxu0
    %1014 = vdwg.mxu0
    %1015 = vmatprep.subr.bf16.mxu0 0
    %1016 = vmatpush1.bf16.msra.mxu0 %v767
    %1017 = vmatprep.subr.bf16.mxu0 0
    %1018 = vmatpush1.bf16.msra.mxu0 %v768
    %1019 = vmatprep.subr.bf16.mxu0 0
    %1020 = vmatpush1.bf16.msra.mxu0 %v769
    %1021 = vmatprep.subr.bf16.mxu0 0
    %1022 = vmatpush1.bf16.msra.mxu0 %v770
    %1023 = vmatprep.subr.bf16.mxu0 0
    %1024 = vmatpush1.bf16.msra.mxu0 %v771
    %1025 = vmatprep.subr.bf16.mxu0 0
    %1026 = vmatpush1.bf16.msra.mxu0 %v772
    %1027 = vmatprep.subr.bf16.mxu0 0
    %1028 = vmatpush1.bf16.msra.mxu0 %v773
    %1029 = vmatprep.subr.bf16.mxu0 0
    %1030 = vmatpush1.bf16.msra.mxu0 %v774
    %1031 = vmatprep.subr.bf16.mxu0 0
    %1032 = vmatpush1.bf16.msra.mxu0 %v775
    %1033 = vmatprep.subr.bf16.mxu0 0
    %1034 = vmatpush1.bf16.msra.mxu0 %v776
    %1035 = vmatprep.subr.bf16.mxu0 0
    %1036 = vmatpush1.bf16.msra.mxu0 %v777
    %1037 = vmatprep.subr.bf16.mxu0 0
    %1038 = vmatpush1.bf16.msra.mxu0 %v778
    %1039 = vmatprep.subr.bf16.mxu0 0
    %1040 = vmatpush1.bf16.msra.mxu0 %v779
    %1041 = vmatprep.subr.bf16.mxu0 0
    %1042 = vmatpush1.bf16.msra.mxu0 %v780
    %1043 = vmatprep.subr.bf16.mxu0 0
    %1044 = vmatpush1.bf16.msra.mxu0 %v781
    %1045 = vmatprep.subr.bf16.mxu0 0
    %1046 = vmatpush1.bf16.msra.mxu0 %v782
    %1047 = vmatprep.mubr.bf16.mxu0 %v287
    %1048 = vmatmul.mubr.bf16.gmra.mrb[0].mxu0 %v273
    %v1049 = vpop.f32.mrb[0].mxu0
    %v1050 = vadd.f32 %v1010, %v1049
    %v1051 = vpop.f32.mrb[0].mxu0
    %v1052 = vpop.f32.mrb[0].mxu0
    %v1053 = vpop.f32.mrb[0].mxu0
    %1054 = vdwg.mxu0
    %1055 = vmatprep.subr.bf16.mxu0 0
    %1056 = vmatpush1.bf16.msra.mxu0 %v783
    %1057 = vmatprep.subr.bf16.mxu0 0
    %1058 = vmatpush1.bf16.msra.mxu0 %v784
    %1059 = vmatprep.subr.bf16.mxu0 0
    %1060 = vmatpush1.bf16.msra.mxu0 %v785
    %1061 = vmatprep.subr.bf16.mxu0 0
    %1062 = vmatpush1.bf16.msra.mxu0 %v786
    %1063 = vmatprep.subr.bf16.mxu0 0
    %1064 = vmatpush1.bf16.msra.mxu0 %v787
    %1065 = vmatprep.subr.bf16.mxu0 0
    %1066 = vmatpush1.bf16.msra.mxu0 %v788
    %1067 = vmatprep.subr.bf16.mxu0 0
    %1068 = vmatpush1.bf16.msra.mxu0 %v789
    %1069 = vmatprep.subr.bf16.mxu0 0
    %1070 = vmatpush1.bf16.msra.mxu0 %v790
    %1071 = vmatprep.subr.bf16.mxu0 0
    %1072 = vmatpush1.bf16.msra.mxu0 %v791
    %1073 = vmatprep.subr.bf16.mxu0 0
    %1074 = vmatpush1.bf16.msra.mxu0 %v792
    %1075 = vmatprep.subr.bf16.mxu0 0
    %1076 = vmatpush1.bf16.msra.mxu0 %v793
    %1077 = vmatprep.subr.bf16.mxu0 0
    %1078 = vmatpush1.bf16.msra.mxu0 %v794
    %1079 = vmatprep.subr.bf16.mxu0 0
    %1080 = vmatpush1.bf16.msra.mxu0 %v795
    %1081 = vmatprep.subr.bf16.mxu0 0
    %1082 = vmatpush1.bf16.msra.mxu0 %v796
    %1083 = vmatprep.subr.bf16.mxu0 0
    %1084 = vmatpush1.bf16.msra.mxu0 %v797
    %1085 = vmatprep.subr.bf16.mxu0 0
    %1086 = vmatpush1.bf16.msra.mxu0 %v798
    %1087 = vmatprep.mubr.bf16.mxu0 %v291
    %1088 = vmatmul.mubr.bf16.gmra.mrb[0].mxu0 %v289
    %v1089 = vpop.f32.mrb[0].mxu0
    %v1090 = vadd.f32 %v1050, %v1089
    %v1091 = vpop.f32.mrb[0].mxu0
    %v1092 = vpop.f32.mrb[0].mxu0
    %v1093 = vpop.f32.mrb[0].mxu0
    %1094 = vdwg.mxu0
    %1095 = vmatprep.subr.bf16.mxu0 0
    %1096 = vmatpush1.bf16.msra.mxu0 %v799
    %1097 = vmatprep.subr.bf16.mxu0 0
    %1098 = vmatpush1.bf16.msra.mxu0 %v800
    %1099 = vmatprep.subr.bf16.mxu0 0
    %1100 = vmatpush1.bf16.msra.mxu0 %v801
    %1101 = vmatprep.subr.bf16.mxu0 0
    %1102 = vmatpush1.bf16.msra.mxu0 %v802
    %1103 = vmatprep.subr.bf16.mxu0 0
    %1104 = vmatpush1.bf16.msra.mxu0 %v803
    %1105 = vmatprep.subr.bf16.mxu0 0
    %1106 = vmatpush1.bf16.msra.mxu0 %v804
    %1107 = vmatprep.subr.bf16.mxu0 0
    %1108 = vmatpush1.bf16.msra.mxu0 %v805
    %1109 = vmatprep.subr.bf16.mxu0 0
    %1110 = vmatpush1.bf16.msra.mxu0 %v806
    %1111 = vmatprep.subr.bf16.mxu0 0
    %1112 = vmatpush1.bf16.msra.mxu0 %v807
    %1113 = vmatprep.subr.bf16.mxu0 0
    %1114 = vmatpush1.bf16.msra.mxu0 %v808
    %1115 = vmatprep.subr.bf16.mxu0 0
    %1116 = vmatpush1.bf16.msra.mxu0 %v809
    %1117 = vmatprep.subr.bf16.mxu0 0
    %1118 = vmatpush1.bf16.msra.mxu0 %v810
    %1119 = vmatprep.subr.bf16.mxu0 0
    %1120 = vmatpush1.bf16.msra.mxu0 %v811
    %1121 = vmatprep.subr.bf16.mxu0 0
    %1122 = vmatpush1.bf16.msra.mxu0 %v812
    %1123 = vmatprep.subr.bf16.mxu0 0
    %1124 = vmatpush1.bf16.msra.mxu0 %v813
    %1125 = vmatprep.subr.bf16.mxu0 0
    %1126 = vmatpush1.bf16.msra.mxu0 %v814
    %1127 = vmatprep.mubr.bf16.mxu0 %v328
    %1128 = vmatmul.mubr.bf16.gmra.mrb[0].mxu0 %v314
    %v1129 = vpop.f32.mrb[0].mxu0
    %v1130 = vadd.f32 %v1090, %v1129
    %v1131 = vpop.f32.mrb[0].mxu0
    %v1132 = vpop.f32.mrb[0].mxu0
    %v1133 = vpop.f32.mrb[0].mxu0
    %1134 = vdwg.mxu0
    %1135 = vmatprep.subr.bf16.mxu0 0
    %1136 = vmatpush1.bf16.msra.mxu0 %v815
    %1137 = vmatprep.subr.bf16.mxu0 0
    %1138 = vmatpush1.bf16.msra.mxu0 %v816
    %1139 = vmatprep.subr.bf16.mxu0 0
    %1140 = vmatpush1.bf16.msra.mxu0 %v817
    %1141 = vmatprep.subr.bf16.mxu0 0
    %1142 = vmatpush1.bf16.msra.mxu0 %v818
    %1143 = vmatprep.subr.bf16.mxu0 0
    %1144 = vmatpush1.bf16.msra.mxu0 %v819
    %1145 = vmatprep.subr.bf16.mxu0 0
    %1146 = vmatpush1.bf16.msra.mxu0 %v820
    %1147 = vmatprep.subr.bf16.mxu0 0
    %1148 = vmatpush1.bf16.msra.mxu0 %v821
    %1149 = vmatprep.subr.bf16.mxu0 0
    %1150 = vmatpush1.bf16.msra.mxu0 %v822
    %1151 = vmatprep.subr.bf16.mxu0 0
    %1152 = vmatpush1.bf16.msra.mxu0 %v823
    %1153 = vmatprep.subr.bf16.mxu0 0
    %1154 = vmatpush1.bf16.msra.mxu0 %v824
    %1155 = vmatprep.subr.bf16.mxu0 0
    %1156 = vmatpush1.bf16.msra.mxu0 %v825
    %1157 = vmatprep.subr.bf16.mxu0 0
    %1158 = vmatpush1.bf16.msra.mxu0 %v826
    %1159 = vmatprep.subr.bf16.mxu0 0
    %1160 = vmatpush1.bf16.msra.mxu0 %v827
    %1161 = vmatprep.subr.bf16.mxu0 0
    %1162 = vmatpush1.bf16.msra.mxu0 %v828
    %1163 = vmatprep.subr.bf16.mxu0 0
    %1164 = vmatpush1.bf16.msra.mxu0 %v829
    %1165 = vmatprep.subr.bf16.mxu0 0
    %1166 = vmatpush1.bf16.msra.mxu0 %v830
    %1167 = vmatprep.mubr.bf16.mxu0 %v330
    %1168 = vmatmul.mubr.bf16.gmra.mrb[0].mxu0 %v329
    %v1169 = vpop.f32.mrb[0].mxu0
    %v1170 = vadd.f32 %v1130, %v1169
    %v1171 = vpop.f32.mrb[0].mxu0
    %v1172 = vpop.f32.mrb[0].mxu0
    %v1173 = vpop.f32.mrb[0].mxu0
    %1174 = vdwg.mxu0
    %1175 = vmatprep.subr.bf16.mxu0 0
    %1176 = vmatpush1.bf16.msra.mxu0 %v831
    %1177 = vmatprep.subr.bf16.mxu0 0
    %1178 = vmatpush1.bf16.msra.mxu0 %v832
    %1179 = vmatprep.subr.bf16.mxu0 0
    %1180 = vmatpush1.bf16.msra.mxu0 0
    %1181 = vmatprep.subr.bf16.mxu0 0
    %1182 = vmatpush1.bf16.msra.mxu0 0
    %1183 = vmatprep.subr.bf16.mxu0 0
    %1184 = vmatpush1.bf16.msra.mxu0 0
    %1185 = vmatprep.subr.bf16.mxu0 0
    %1186 = vmatpush1.bf16.msra.mxu0 0
    %1187 = vmatprep.subr.bf16.mxu0 0
    %1188 = vmatpush1.bf16.msra.mxu0 0
    %1189 = vmatprep.subr.bf16.mxu0 0
    %1190 = vmatpush1.bf16.msra.mxu0 0
    %1191 = vmatprep.subr.bf16.mxu0 0
    %1192 = vmatpush1.bf16.msra.mxu0 0
    %1193 = vmatprep.subr.bf16.mxu0 0
    %1194 = vmatpush1.bf16.msra.mxu0 0
    %1195 = vmatprep.subr.bf16.mxu0 0
    %1196 = vmatpush1.bf16.msra.mxu0 0
    %1197 = vmatprep.subr.bf16.mxu0 0
    %1198 = vmatpush1.bf16.msra.mxu0 0
    %1199 = vmatprep.subr.bf16.mxu0 0
    %1200 = vmatpush1.bf16.msra.mxu0 0
    %1201 = vmatprep.subr.bf16.mxu0 0
    %1202 = vmatpush1.bf16.msra.mxu0 0
    %1203 = vmatprep.subr.bf16.mxu0 0
    %1204 = vmatpush1.bf16.msra.mxu0 0
    %1205 = vmatprep.subr.bf16.mxu0 0
    %1206 = vmatpush1.bf16.msra.mxu0 0
    %1207 = vmatprep.mubr.bf16.mxu0 0
    %1208 = vmatmul.mubr.bf16.gmra.mrb[0].mxu0 %v933
    %v1209 = vpop.f32.mrb[0].mxu0
    %v1210 = vadd.f32 %v1170, %v1209
    %v1211 = vpop.f32.mrb[0].mxu0
    %v1212 = vpop.f32.mrb[0].mxu0
    %v1213 = vpop.f32.mrb[0].mxu0
    %1214 = vdwg.mxu0
    %v1215 = vmax.f32 %v1210, 0.0
    %v1216 = vpack.c.bf16 %v1215, %v1215
    %v1217 = vld [vmem:[%s3] sm:$0xf]
    %v1218 = vld [vmem:[%s3 + $0x4] sm:$0xf]
    %v1219 = vld [vmem:[%s3 + $0x8] sm:$0xf]
    %v1220 = vld [vmem:[%s3 + $0xc] sm:$0xf]
    %v1221 = vld [vmem:[%s4] sm:$0x1]
    %v1223 = vlaneseq
    %v1224 = vshrl.u32 %v1223, 7
    %v1225 = vsub.s32 0, %v1224
    %v1226 = vrot.slane %v1221, %v1225
    %v1232 = vunpack.c.l.b16 %v1217
    %v1233 = vunpack.c.l.b16 %v1218
    %v1234 = vunpack.c.l.b16 %v1219
    %v1235 = vunpack.c.l.b16 %v1220
    %v1236 = vpack.c.b16 %v1233, %v1232
    %v1237 = vpack.c.b16 %v1235, %v1234
    %v1241 = vsel %vm931, %v1216, 0
    %1243 = vmatprep.subr.bf16.mxu0 0
    %1244 = vmatpush1.bf16.msra.mxu0 %v1236
    %1245 = vmatprep.subr.bf16.mxu0 0
    %1246 = vmatpush1.bf16.msra.mxu0 %v1237
    %1247 = vmatprep.subr.bf16.mxu0 0
    %1248 = vmatpush1.bf16.msra.mxu0 0
    %1249 = vmatprep.subr.bf16.mxu0 0
    %1250 = vmatpush1.bf16.msra.mxu0 0
    %1251 = vmatprep.subr.bf16.mxu0 0
    %1252 = vmatpush1.bf16.msra.mxu0 0
    %1253 = vmatprep.subr.bf16.mxu0 0
    %1254 = vmatpush1.bf16.msra.mxu0 0
    %1255 = vmatprep.subr.bf16.mxu0 0
    %1256 = vmatpush1.bf16.msra.mxu0 0
    %1257 = vmatprep.subr.bf16.mxu0 0
    %1258 = vmatpush1.bf16.msra.mxu0 0
    %1259 = vmatprep.subr.bf16.mxu0 0
    %1260 = vmatpush1.bf16.msra.mxu0 0
    %1261 = vmatprep.subr.bf16.mxu0 0
    %1262 = vmatpush1.bf16.msra.mxu0 0
    %1263 = vmatprep.subr.bf16.mxu0 0
    %1264 = vmatpush1.bf16.msra.mxu0 0
    %1265 = vmatprep.subr.bf16.mxu0 0
    %1266 = vmatpush1.bf16.msra.mxu0 0
    %1267 = vmatprep.subr.bf16.mxu0 0
    %1268 = vmatpush1.bf16.msra.mxu0 0
    %1269 = vmatprep.subr.bf16.mxu0 0
    %1270 = vmatpush1.bf16.msra.mxu0 0
    %1271 = vmatprep.subr.bf16.mxu0 0
    %1272 = vmatpush1.bf16.msra.mxu0 0
    %1273 = vmatprep.subr.bf16.mxu0 0
    %1274 = vmatpush1.bf16.msra.mxu0 0
    %1275 = vmatprep.mubr.bf16.mxu0 0
    %1276 = vmatmul.mubr.bf16.gmra.mrb[0].mxu0 %v1241
    %v1277 = vpop.f32.mrb[0].mxu0
    %v1278 = vadd.f32 %v1226, %v1277
    %v1279 = vpop.f32.mrb[0].mxu0
    %v1280 = vpop.f32.mrb[0].mxu0
    %v1281 = vpop.f32.mrb[0].mxu0
    %1282 = vdwg.mxu0
    %1283 = vst [vmem:[#allocation2] sm:$0x3] %v1278
    %v1284 = vpack.c.bf16 %v1278, %v1278
    %v1285 = vld [vmem:[%s5] sm:$0xf]
    %v1286 = vld [vmem:[%s5 + $0x4] sm:$0xf]
    %v1287 = vld [vmem:[%s5 + $0x8] sm:$0xf]
    %v1288 = vld [vmem:[%s5 + $0xc] sm:$0xf]
    %v1289 = vld [vmem:[%s5 + $0x10] sm:$0xf]
    %v1290 = vld [vmem:[%s5 + $0x14] sm:$0xf]
    %v1291 = vld [vmem:[%s5 + $0x18] sm:$0xf]
    %v1292 = vld [vmem:[%s5 + $0x1c] sm:$0xf]
    %v1293 = vld [vmem:[%s5 + $0x20] sm:$0xf]
    %v1294 = vld [vmem:[%s5 + $0x24] sm:$0xf]
    %v1295 = vld [vmem:[%s5 + $0x28] sm:$0xf]
    %v1296 = vld [vmem:[%s5 + $0x2c] sm:$0xf]
    %v1297 = vld [vmem:[%s5 + $0x30] sm:$0xf]
    %v1298 = vld [vmem:[%s5 + $0x34] sm:$0xf]
    %v1299 = vld [vmem:[%s5 + $0x38] sm:$0xf]
    %v1300 = vld [vmem:[%s5 + $0x3c] sm:$0xf]
    %v1301 = vld [vmem:[%s6] sm:$0x1]
    %v1303 = vlaneseq
    %v1304 = vshrl.u32 %v1303, 7
    %v1305 = vsub.s32 0, %v1304
    %v1306 = vrot.slane %v1301, %v1305
    %v1324 = vunpack.c.l.b16 %v1285
    %v1325 = vunpack.c.l.b16 %v1286
    %v1326 = vunpack.c.l.b16 %v1287
    %v1327 = vunpack.c.l.b16 %v1288
    %v1328 = vunpack.c.l.b16 %v1289
    %v1329 = vunpack.c.l.b16 %v1290
    %v1330 = vunpack.c.l.b16 %v1291
    %v1331 = vunpack.c.l.b16 %v1292
    %v1332 = vunpack.c.l.b16 %v1293
    %v1333 = vunpack.c.l.b16 %v1294
    %v1334 = vunpack.c.l.b16 %v1295
    %v1335 = vunpack.c.l.b16 %v1296
    %v1336 = vunpack.c.l.b16 %v1297
    %v1337 = vunpack.c.l.b16 %v1298
    %v1338 = vunpack.c.l.b16 %v1299
    %v1339 = vunpack.c.l.b16 %v1300
    %v1340 = vpack.c.b16 %v1325, %v1324
    %v1341 = vpack.c.b16 %v1327, %v1326
    %v1342 = vpack.c.b16 %v1329, %v1328
    %v1343 = vpack.c.b16 %v1331, %v1330
    %v1344 = vpack.c.b16 %v1333, %v1332
    %v1345 = vpack.c.b16 %v1335, %v1334
    %v1346 = vpack.c.b16 %v1337, %v1336
    %v1347 = vpack.c.b16 %v1339, %v1338
    %1356 = vmatprep.subr.bf16.mxu0 0
    %1357 = vmatpush1.bf16.msra.mxu0 %v1340
    %1358 = vmatprep.subr.bf16.mxu0 0
    %1359 = vmatpush1.bf16.msra.mxu0 %v1341
    %1360 = vmatprep.subr.bf16.mxu0 0
    %1361 = vmatpush1.bf16.msra.mxu0 %v1342
    %1362 = vmatprep.subr.bf16.mxu0 0
    %1363 = vmatpush1.bf16.msra.mxu0 %v1343
    %1364 = vmatprep.subr.bf16.mxu0 0
    %1365 = vmatpush1.bf16.msra.mxu0 %v1344
    %1366 = vmatprep.subr.bf16.mxu0 0
    %1367 = vmatpush1.bf16.msra.mxu0 %v1345
    %1368 = vmatprep.subr.bf16.mxu0 0
    %1369 = vmatpush1.bf16.msra.mxu0 %v1346
    %1370 = vmatprep.subr.bf16.mxu0 0
    %1371 = vmatpush1.bf16.msra.mxu0 %v1347
    %1372 = vmatprep.subr.bf16.mxu0 0
    %1373 = vmatpush1.bf16.msra.mxu0 0
    %1374 = vmatprep.subr.bf16.mxu0 0
    %1375 = vmatpush1.bf16.msra.mxu0 0
    %1376 = vmatprep.subr.bf16.mxu0 0
    %1377 = vmatpush1.bf16.msra.mxu0 0
    %1378 = vmatprep.subr.bf16.mxu0 0
    %1379 = vmatpush1.bf16.msra.mxu0 0
    %1380 = vmatprep.subr.bf16.mxu0 0
    %1381 = vmatpush1.bf16.msra.mxu0 0
    %1382 = vmatprep.subr.bf16.mxu0 0
    %1383 = vmatpush1.bf16.msra.mxu0 0
    %1384 = vmatprep.subr.bf16.mxu0 0
    %1385 = vmatpush1.bf16.msra.mxu0 0
    %1386 = vmatprep.subr.bf16.mxu0 0
    %1387 = vmatpush1.bf16.msra.mxu0 0
    %1388 = vmatprep.mubr.bf16.mxu0 0
    %1389 = vmatmul.mubr.bf16.gmra.mrb[0].mxu0 %v1284
    %v1390 = vpop.f32.mrb[0].mxu0
    %v1391 = vadd.f32 %v1306, %v1390
    %v1392 = vpop.f32.mrb[0].mxu0
    %v1393 = vpop.f32.mrb[0].mxu0
    %v1394 = vpop.f32.mrb[0].mxu0
    %1395 = vdwg.mxu0
    %v1396 = vmax.f32 %v1391, 0.0
    %v1397 = vpack.c.bf16 %v1396, %v1396
    %v1398 = vld [vmem:[%s7] sm:$0xff]
    %v1399 = vld [vmem:[%s7 + $0x8] sm:$0xff]
    %v1400 = vld [vmem:[%s7 + $0x10] sm:$0xff]
    %v1401 = vld [vmem:[%s7 + $0x18] sm:$0xff]
    %v1402 = vld [vmem:[%s7 + $0x20] sm:$0xff]
    %v1403 = vld [vmem:[%s7 + $0x28] sm:$0xff]
    %v1404 = vld [vmem:[%s7 + $0x30] sm:$0xf]
    %v1405 = vld [vmem:[%s7 + $0x34] sm:$0xff]
    %v1406 = vld [vmem:[%s7 + $0x3c] sm:$0xff]
    %v1407 = vld [vmem:[%s7 + $0x44] sm:$0xff]
    %v1408 = vld [vmem:[%s7 + $0x4c] sm:$0xff]
    %v1409 = vld [vmem:[%s7 + $0x54] sm:$0xff]
    %v1410 = vld [vmem:[%s7 + $0x5c] sm:$0xff]
    %v1411 = vld [vmem:[%s7 + $0x64] sm:$0xf]
    %v1412 = vld [vmem:[%s7 + $0x68] sm:$0xff]
    %v1413 = vld [vmem:[%s7 + $0x70] sm:$0xff]
    %v1414 = vld [vmem:[%s7 + $0x78] sm:$0xff]
    %v1415 = vld [vmem:[%s7 + $0x80] sm:$0xff]
    %v1416 = vld [vmem:[%s7 + $0x88] sm:$0xff]
    %v1417 = vld [vmem:[%s7 + $0x90] sm:$0xff]
    %v1418 = vld [vmem:[%s7 + $0x98] sm:$0xf]
    %v1419 = vld [vmem:[%s7 + $0x9c] sm:$0xff]
    %v1420 = vld [vmem:[%s7 + $0xa4] sm:$0xff]
    %v1421 = vld [vmem:[%s7 + $0xac] sm:$0xff]
    %v1422 = vld [vmem:[%s7 + $0xb4] sm:$0xff]
    %v1423 = vld [vmem:[%s7 + $0xbc] sm:$0xff]
    %v1424 = vld [vmem:[%s7 + $0xc4] sm:$0xff]
    %v1425 = vld [vmem:[%s7 + $0xcc] sm:$0xf]
    %v1426 = vld [vmem:[%s8] sm:$0xff]
    %v1427 = vld [vmem:[%s8 + $0x8] sm:$0x1f]
    %v1430 = vlaneseq
    %v1431 = vshrl.u32 %v1430, 7
    %v1432 = vsub.s32 0, %v1431
    %v1433 = vrot.slane %v1426, %v1432
    %v1434 = vlaneseq
    %v1435 = vshrl.u32 %v1434, 7
    %v1436 = vsub.s32 1, %v1435
    %v1437 = vrot.slane %v1426, %v1436
    %v1438 = vlaneseq
    %v1439 = vshrl.u32 %v1438, 7
    %v1440 = vsub.s32 2, %v1439
    %v1441 = vrot.slane %v1426, %v1440
    %v1442 = vlaneseq
    %v1443 = vshrl.u32 %v1442, 7
    %v1444 = vsub.s32 3, %v1443
    %v1445 = vrot.slane %v1426, %v1444
    %v1446 = vlaneseq
    %v1447 = vshrl.u32 %v1446, 7
    %v1448 = vsub.s32 4, %v1447
    %v1449 = vrot.slane %v1426, %v1448
    %v1450 = vlaneseq
    %v1451 = vshrl.u32 %v1450, 7
    %v1452 = vsub.s32 5, %v1451
    %v1453 = vrot.slane %v1426, %v1452
    %v1454 = vlaneseq
    %v1455 = vshrl.u32 %v1454, 7
    %v1456 = vsub.s32 6, %v1455
    %v1457 = vrot.slane %v1426, %v1456
    %v1458 = vlaneseq
    %v1459 = vshrl.u32 %v1458, 7
    %v1460 = vsub.s32 7, %v1459
    %v1461 = vrot.slane %v1426, %v1460
    %v1462 = vlaneseq
    %v1463 = vshrl.u32 %v1462, 7
    %v1464 = vsub.s32 0, %v1463
    %v1465 = vrot.slane %v1427, %v1464
    %v1466 = vlaneseq
    %v1467 = vshrl.u32 %v1466, 7
    %v1468 = vsub.s32 1, %v1467
    %v1469 = vrot.slane %v1427, %v1468
    %v1470 = vlaneseq
    %v1471 = vshrl.u32 %v1470, 7
    %v1472 = vsub.s32 2, %v1471
    %v1473 = vrot.slane %v1427, %v1472
    %v1474 = vlaneseq
    %v1475 = vshrl.u32 %v1474, 7
    %v1476 = vsub.s32 3, %v1475
    %v1477 = vrot.slane %v1427, %v1476
    %v1478 = vlaneseq
    %v1479 = vshrl.u32 %v1478, 7
    %v1480 = vsub.s32 4, %v1479
    %v1481 = vrot.slane %v1427, %v1480
    %v1523 = vunpack.c.l.b16 %v1398
    %v1524 = vunpack.c.h.b16 %v1398
    %v1525 = vunpack.c.l.b16 %v1399
    %v1526 = vunpack.c.h.b16 %v1399
    %v1527 = vunpack.c.l.b16 %v1400
    %v1528 = vunpack.c.h.b16 %v1400
    %v1529 = vunpack.c.l.b16 %v1401
    %v1530 = vunpack.c.h.b16 %v1401
    %v1531 = vunpack.c.l.b16 %v1402
    %v1532 = vunpack.c.h.b16 %v1402
    %v1533 = vunpack.c.l.b16 %v1403
    %v1534 = vunpack.c.h.b16 %v1403
    %v1535 = vunpack.c.l.b16 %v1404
    %v1536 = vunpack.c.l.b16 %v1405
    %v1537 = vunpack.c.h.b16 %v1405
    %v1538 = vunpack.c.l.b16 %v1406
    %v1539 = vunpack.c.h.b16 %v1406
    %v1540 = vunpack.c.l.b16 %v1407
    %v1541 = vunpack.c.h.b16 %v1407
    %v1542 = vunpack.c.l.b16 %v1408
    %v1543 = vunpack.c.h.b16 %v1408
    %v1544 = vunpack.c.l.b16 %v1409
    %v1545 = vunpack.c.h.b16 %v1409
    %v1546 = vunpack.c.l.b16 %v1410
    %v1547 = vunpack.c.h.b16 %v1410
    %v1548 = vunpack.c.l.b16 %v1411
    %v1549 = vunpack.c.l.b16 %v1412
    %v1550 = vunpack.c.h.b16 %v1412
    %v1551 = vunpack.c.l.b16 %v1413
    %v1552 = vunpack.c.h.b16 %v1413
    %v1553 = vunpack.c.l.b16 %v1414
    %v1554 = vunpack.c.h.b16 %v1414
    %v1555 = vunpack.c.l.b16 %v1415
    %v1556 = vunpack.c.h.b16 %v1415
    %v1557 = vunpack.c.l.b16 %v1416
    %v1558 = vunpack.c.h.b16 %v1416
    %v1559 = vunpack.c.l.b16 %v1417
    %v1560 = vunpack.c.h.b16 %v1417
    %v1561 = vunpack.c.l.b16 %v1418
    %v1562 = vunpack.c.l.b16 %v1419
    %v1563 = vunpack.c.h.b16 %v1419
    %v1564 = vunpack.c.l.b16 %v1420
    %v1565 = vunpack.c.h.b16 %v1420
    %v1566 = vunpack.c.l.b16 %v1421
    %v1567 = vunpack.c.h.b16 %v1421
    %v1568 = vunpack.c.l.b16 %v1422
    %v1569 = vunpack.c.h.b16 %v1422
    %v1570 = vunpack.c.l.b16 %v1423
    %v1571 = vunpack.c.h.b16 %v1423
    %v1572 = vunpack.c.l.b16 %v1424
    %v1573 = vunpack.c.h.b16 %v1424
    %v1574 = vunpack.c.l.b16 %v1425
    %v1575 = vpack.c.b16 %v1536, %v1523
    %v1576 = vpack.c.b16 %v1537, %v1524
    %v1577 = vpack.c.b16 %v1538, %v1525
    %v1578 = vpack.c.b16 %v1539, %v1526
    %v1579 = vpack.c.b16 %v1540, %v1527
    %v1580 = vpack.c.b16 %v1541, %v1528
    %v1581 = vpack.c.b16 %v1542, %v1529
    %v1582 = vpack.c.b16 %v1543, %v1530
    %v1583 = vpack.c.b16 %v1544, %v1531
    %v1584 = vpack.c.b16 %v1545, %v1532
    %v1585 = vpack.c.b16 %v1546, %v1533
    %v1586 = vpack.c.b16 %v1547, %v1534
    %v1587 = vpack.c.b16 %v1548, %v1535
    %v1588 = vpack.c.b16 %v1562, %v1549
    %v1589 = vpack.c.b16 %v1563, %v1550
    %v1590 = vpack.c.b16 %v1564, %v1551
    %v1591 = vpack.c.b16 %v1565, %v1552
    %v1592 = vpack.c.b16 %v1566, %v1553
    %v1593 = vpack.c.b16 %v1567, %v1554
    %v1594 = vpack.c.b16 %v1568, %v1555
    %v1595 = vpack.c.b16 %v1569, %v1556
    %v1596 = vpack.c.b16 %v1570, %v1557
    %v1597 = vpack.c.b16 %v1571, %v1558
    %v1598 = vpack.c.b16 %v1572, %v1559
    %v1599 = vpack.c.b16 %v1573, %v1560
    %v1600 = vpack.c.b16 %v1574, %v1561
    %v1628 = vsel %vm931, %v1397, 0
    %1630 = vmatprep.subr.bf16.mxu0 %v1576
    %1631 = vmatpush1.bf16.msra.mxu0 %v1575
    %1632 = vmatprep.subr.bf16.mxu0 %v1589
    %1633 = vmatpush1.bf16.msra.mxu0 %v1588
    %1634 = vmatprep.subr.bf16.mxu0 0
    %1635 = vmatpush1.bf16.msra.mxu0 0
    %1636 = vmatprep.subr.bf16.mxu0 0
    %1637 = vmatpush1.bf16.msra.mxu0 0
    %1638 = vmatprep.subr.bf16.mxu0 0
    %1639 = vmatpush1.bf16.msra.mxu0 0
    %1640 = vmatprep.subr.bf16.mxu0 0
    %1641 = vmatpush1.bf16.msra.mxu0 0
    %1642 = vmatprep.subr.bf16.mxu0 0
    %1643 = vmatpush1.bf16.msra.mxu0 0
    %1644 = vmatprep.subr.bf16.mxu0 0
    %1645 = vmatpush1.bf16.msra.mxu0 0
    %1646 = vmatprep.subr.bf16.mxu0 0
    %1647 = vmatpush1.bf16.msra.mxu0 0
    %1648 = vmatprep.subr.bf16.mxu0 0
    %1649 = vmatpush1.bf16.msra.mxu0 0
    %1650 = vmatprep.subr.bf16.mxu0 0
    %1651 = vmatpush1.bf16.msra.mxu0 0
    %1652 = vmatprep.subr.bf16.mxu0 0
    %1653 = vmatpush1.bf16.msra.mxu0 0
    %1654 = vmatprep.subr.bf16.mxu0 0
    %1655 = vmatpush1.bf16.msra.mxu0 0
    %1656 = vmatprep.subr.bf16.mxu0 0
    %1657 = vmatpush1.bf16.msra.mxu0 0
    %1658 = vmatprep.subr.bf16.mxu0 0
    %1659 = vmatpush1.bf16.msra.mxu0 0
    %1660 = vmatprep.subr.bf16.mxu0 0
    %1661 = vmatpush1.bf16.msra.mxu0 0
    %1662 = vmatprep.mubr.bf16.mxu0 0
    %1663 = vmatmul.mubr.bf16.gmra.mrb[0].mxu0 %v1628
    %v1664 = vpop.f32.mrb[0].mxu0
    %v1665 = vadd.f32 %v1433, %v1664
    %v1666 = vpop.f32.mrb[0].mxu0
    %v1667 = vadd.f32 %v1437, %v1666
    %v1668 = vpop.f32.mrb[0].mxu0
    %v1669 = vpop.f32.mrb[0].mxu0
    %1670 = vdwg.mxu0
    %1671 = vmatprep.subr.bf16.mxu0 %v1578
    %1672 = vmatpush1.bf16.msra.mxu0 %v1577
    %1673 = vmatprep.subr.bf16.mxu0 %v1591
    %1674 = vmatpush1.bf16.msra.mxu0 %v1590
    %1675 = vmatprep.subr.bf16.mxu0 0
    %1676 = vmatpush1.bf16.msra.mxu0 0
    %1677 = vmatprep.subr.bf16.mxu0 0
    %1678 = vmatpush1.bf16.msra.mxu0 0
    %1679 = vmatprep.subr.bf16.mxu0 0
    %1680 = vmatpush1.bf16.msra.mxu0 0
    %1681 = vmatprep.subr.bf16.mxu0 0
    %1682 = vmatpush1.bf16.msra.mxu0 0
    %1683 = vmatprep.subr.bf16.mxu0 0
    %1684 = vmatpush1.bf16.msra.mxu0 0
    %1685 = vmatprep.subr.bf16.mxu0 0
    %1686 = vmatpush1.bf16.msra.mxu0 0
    %1687 = vmatprep.subr.bf16.mxu0 0
    %1688 = vmatpush1.bf16.msra.mxu0 0
    %1689 = vmatprep.subr.bf16.mxu0 0
    %1690 = vmatpush1.bf16.msra.mxu0 0
    %1691 = vmatprep.subr.bf16.mxu0 0
    %1692 = vmatpush1.bf16.msra.mxu0 0
    %1693 = vmatprep.subr.bf16.mxu0 0
    %1694 = vmatpush1.bf16.msra.mxu0 0
    %1695 = vmatprep.subr.bf16.mxu0 0
    %1696 = vmatpush1.bf16.msra.mxu0 0
    %1697 = vmatprep.subr.bf16.mxu0 0
    %1698 = vmatpush1.bf16.msra.mxu0 0
    %1699 = vmatprep.subr.bf16.mxu0 0
    %1700 = vmatpush1.bf16.msra.mxu0 0
    %1701 = vmatprep.subr.bf16.mxu0 0
    %1702 = vmatpush1.bf16.msra.mxu0 0
    %1703 = vmatprep.mubr.bf16.mxu0 0
    %1704 = vmatmul.mubr.bf16.gmra.mrb[0].mxu0 %v1628
    %v1705 = vpop.f32.mrb[0].mxu0
    %v1706 = vadd.f32 %v1441, %v1705
    %v1707 = vpop.f32.mrb[0].mxu0
    %v1708 = vadd.f32 %v1445, %v1707
    %v1709 = vpop.f32.mrb[0].mxu0
    %v1710 = vpop.f32.mrb[0].mxu0
    %1711 = vdwg.mxu0
    %1712 = vmatprep.subr.bf16.mxu0 %v1580
    %1713 = vmatpush1.bf16.msra.mxu0 %v1579
    %1714 = vmatprep.subr.bf16.mxu0 %v1593
    %1715 = vmatpush1.bf16.msra.mxu0 %v1592
    %1716 = vmatprep.subr.bf16.mxu0 0
    %1717 = vmatpush1.bf16.msra.mxu0 0
    %1718 = vmatprep.subr.bf16.mxu0 0
    %1719 = vmatpush1.bf16.msra.mxu0 0
    %1720 = vmatprep.subr.bf16.mxu0 0
    %1721 = vmatpush1.bf16.msra.mxu0 0
    %1722 = vmatprep.subr.bf16.mxu0 0
    %1723 = vmatpush1.bf16.msra.mxu0 0
    %1724 = vmatprep.subr.bf16.mxu0 0
    %1725 = vmatpush1.bf16.msra.mxu0 0
    %1726 = vmatprep.subr.bf16.mxu0 0
    %1727 = vmatpush1.bf16.msra.mxu0 0
    %1728 = vmatprep.subr.bf16.mxu0 0
    %1729 = vmatpush1.bf16.msra.mxu0 0
    %1730 = vmatprep.subr.bf16.mxu0 0
    %1731 = vmatpush1.bf16.msra.mxu0 0
    %1732 = vmatprep.subr.bf16.mxu0 0
    %1733 = vmatpush1.bf16.msra.mxu0 0
    %1734 = vmatprep.subr.bf16.mxu0 0
    %1735 = vmatpush1.bf16.msra.mxu0 0
    %1736 = vmatprep.subr.bf16.mxu0 0
    %1737 = vmatpush1.bf16.msra.mxu0 0
    %1738 = vmatprep.subr.bf16.mxu0 0
    %1739 = vmatpush1.bf16.msra.mxu0 0
    %1740 = vmatprep.subr.bf16.mxu0 0
    %1741 = vmatpush1.bf16.msra.mxu0 0
    %1742 = vmatprep.subr.bf16.mxu0 0
    %1743 = vmatpush1.bf16.msra.mxu0 0
    %1744 = vmatprep.mubr.bf16.mxu0 0
    %1745 = vmatmul.mubr.bf16.gmra.mrb[0].mxu0 %v1628
    %v1746 = vpop.f32.mrb[0].mxu0
    %v1747 = vadd.f32 %v1449, %v1746
    %v1748 = vpop.f32.mrb[0].mxu0
    %v1749 = vadd.f32 %v1453, %v1748
    %v1750 = vpop.f32.mrb[0].mxu0
    %v1751 = vpop.f32.mrb[0].mxu0
    %1752 = vdwg.mxu0
    %1753 = vmatprep.subr.bf16.mxu0 %v1582
    %1754 = vmatpush1.bf16.msra.mxu0 %v1581
    %1755 = vmatprep.subr.bf16.mxu0 %v1595
    %1756 = vmatpush1.bf16.msra.mxu0 %v1594
    %1757 = vmatprep.subr.bf16.mxu0 0
    %1758 = vmatpush1.bf16.msra.mxu0 0
    %1759 = vmatprep.subr.bf16.mxu0 0
    %1760 = vmatpush1.bf16.msra.mxu0 0
    %1761 = vmatprep.subr.bf16.mxu0 0
    %1762 = vmatpush1.bf16.msra.mxu0 0
    %1763 = vmatprep.subr.bf16.mxu0 0
    %1764 = vmatpush1.bf16.msra.mxu0 0
    %1765 = vmatprep.subr.bf16.mxu0 0
    %1766 = vmatpush1.bf16.msra.mxu0 0
    %1767 = vmatprep.subr.bf16.mxu0 0
    %1768 = vmatpush1.bf16.msra.mxu0 0
    %1769 = vmatprep.subr.bf16.mxu0 0
    %1770 = vmatpush1.bf16.msra.mxu0 0
    %1771 = vmatprep.subr.bf16.mxu0 0
    %1772 = vmatpush1.bf16.msra.mxu0 0
    %1773 = vmatprep.subr.bf16.mxu0 0
    %1774 = vmatpush1.bf16.msra.mxu0 0
    %1775 = vmatprep.subr.bf16.mxu0 0
    %1776 = vmatpush1.bf16.msra.mxu0 0
    %1777 = vmatprep.subr.bf16.mxu0 0
    %1778 = vmatpush1.bf16.msra.mxu0 0
    %1779 = vmatprep.subr.bf16.mxu0 0
    %1780 = vmatpush1.bf16.msra.mxu0 0
    %1781 = vmatprep.subr.bf16.mxu0 0
    %1782 = vmatpush1.bf16.msra.mxu0 0
    %1783 = vmatprep.subr.bf16.mxu0 0
    %1784 = vmatpush1.bf16.msra.mxu0 0
    %1785 = vmatprep.mubr.bf16.mxu0 0
    %1786 = vmatmul.mubr.bf16.gmra.mrb[0].mxu0 %v1628
    %v1787 = vpop.f32.mrb[0].mxu0
    %v1788 = vadd.f32 %v1457, %v1787
    %v1789 = vpop.f32.mrb[0].mxu0
    %v1790 = vadd.f32 %v1461, %v1789
    %v1791 = vpop.f32.mrb[0].mxu0
    %v1792 = vpop.f32.mrb[0].mxu0
    %1793 = vdwg.mxu0
    %1794 = vmatprep.subr.bf16.mxu0 %v1584
    %1795 = vmatpush1.bf16.msra.mxu0 %v1583
    %1796 = vmatprep.subr.bf16.mxu0 %v1597
    %1797 = vmatpush1.bf16.msra.mxu0 %v1596
    %1798 = vmatprep.subr.bf16.mxu0 0
    %1799 = vmatpush1.bf16.msra.mxu0 0
    %1800 = vmatprep.subr.bf16.mxu0 0
    %1801 = vmatpush1.bf16.msra.mxu0 0
    %1802 = vmatprep.subr.bf16.mxu0 0
    %1803 = vmatpush1.bf16.msra.mxu0 0
    %1804 = vmatprep.subr.bf16.mxu0 0
    %1805 = vmatpush1.bf16.msra.mxu0 0
    %1806 = vmatprep.subr.bf16.mxu0 0
    %1807 = vmatpush1.bf16.msra.mxu0 0
    %1808 = vmatprep.subr.bf16.mxu0 0
    %1809 = vmatpush1.bf16.msra.mxu0 0
    %1810 = vmatprep.subr.bf16.mxu0 0
    %1811 = vmatpush1.bf16.msra.mxu0 0
    %1812 = vmatprep.subr.bf16.mxu0 0
    %1813 = vmatpush1.bf16.msra.mxu0 0
    %1814 = vmatprep.subr.bf16.mxu0 0
    %1815 = vmatpush1.bf16.msra.mxu0 0
    %1816 = vmatprep.subr.bf16.mxu0 0
    %1817 = vmatpush1.bf16.msra.mxu0 0
    %1818 = vmatprep.subr.bf16.mxu0 0
    %1819 = vmatpush1.bf16.msra.mxu0 0
    %1820 = vmatprep.subr.bf16.mxu0 0
    %1821 = vmatpush1.bf16.msra.mxu0 0
    %1822 = vmatprep.subr.bf16.mxu0 0
    %1823 = vmatpush1.bf16.msra.mxu0 0
    %1824 = vmatprep.subr.bf16.mxu0 0
    %1825 = vmatpush1.bf16.msra.mxu0 0
    %1826 = vmatprep.mubr.bf16.mxu0 0
    %1827 = vmatmul.mubr.bf16.gmra.mrb[0].mxu0 %v1628
    %v1828 = vpop.f32.mrb[0].mxu0
    %v1829 = vadd.f32 %v1465, %v1828
    %v1830 = vpop.f32.mrb[0].mxu0
    %v1831 = vadd.f32 %v1469, %v1830
    %v1832 = vpop.f32.mrb[0].mxu0
    %v1833 = vpop.f32.mrb[0].mxu0
    %1834 = vdwg.mxu0
    %1835 = vmatprep.subr.bf16.mxu0 %v1586
    %1836 = vmatpush1.bf16.msra.mxu0 %v1585
    %1837 = vmatprep.subr.bf16.mxu0 %v1599
    %1838 = vmatpush1.bf16.msra.mxu0 %v1598
    %1839 = vmatprep.subr.bf16.mxu0 0
    %1840 = vmatpush1.bf16.msra.mxu0 0
    %1841 = vmatprep.subr.bf16.mxu0 0
    %1842 = vmatpush1.bf16.msra.mxu0 0
    %1843 = vmatprep.subr.bf16.mxu0 0
    %1844 = vmatpush1.bf16.msra.mxu0 0
    %1845 = vmatprep.subr.bf16.mxu0 0
    %1846 = vmatpush1.bf16.msra.mxu0 0
    %1847 = vmatprep.subr.bf16.mxu0 0
    %1848 = vmatpush1.bf16.msra.mxu0 0
    %1849 = vmatprep.subr.bf16.mxu0 0
    %1850 = vmatpush1.bf16.msra.mxu0 0
    %1851 = vmatprep.subr.bf16.mxu0 0
    %1852 = vmatpush1.bf16.msra.mxu0 0
    %1853 = vmatprep.subr.bf16.mxu0 0
    %1854 = vmatpush1.bf16.msra.mxu0 0
    %1855 = vmatprep.subr.bf16.mxu0 0
    %1856 = vmatpush1.bf16.msra.mxu0 0
    %1857 = vmatprep.subr.bf16.mxu0 0
    %1858 = vmatpush1.bf16.msra.mxu0 0
    %1859 = vmatprep.subr.bf16.mxu0 0
    %1860 = vmatpush1.bf16.msra.mxu0 0
    %1861 = vmatprep.subr.bf16.mxu0 0
    %1862 = vmatpush1.bf16.msra.mxu0 0
    %1863 = vmatprep.subr.bf16.mxu0 0
    %1864 = vmatpush1.bf16.msra.mxu0 0
    %1865 = vmatprep.subr.bf16.mxu0 0
    %1866 = vmatpush1.bf16.msra.mxu0 0
    %1867 = vmatprep.mubr.bf16.mxu0 0
    %1868 = vmatmul.mubr.bf16.gmra.mrb[0].mxu0 %v1628
    %v1869 = vpop.f32.mrb[0].mxu0
    %v1870 = vadd.f32 %v1473, %v1869
    %v1871 = vpop.f32.mrb[0].mxu0
    %v1872 = vadd.f32 %v1477, %v1871
    %v1873 = vpop.f32.mrb[0].mxu0
    %v1874 = vpop.f32.mrb[0].mxu0
    %1875 = vdwg.mxu0
    %1876 = vmatprep.subr.bf16.mxu0 0
    %1877 = vmatpush1.bf16.msra.mxu0 %v1587
    %1878 = vmatprep.subr.bf16.mxu0 0
    %1879 = vmatpush1.bf16.msra.mxu0 %v1600
    %1880 = vmatprep.subr.bf16.mxu0 0
    %1881 = vmatpush1.bf16.msra.mxu0 0
    %1882 = vmatprep.subr.bf16.mxu0 0
    %1883 = vmatpush1.bf16.msra.mxu0 0
    %1884 = vmatprep.subr.bf16.mxu0 0
    %1885 = vmatpush1.bf16.msra.mxu0 0
    %1886 = vmatprep.subr.bf16.mxu0 0
    %1887 = vmatpush1.bf16.msra.mxu0 0
    %1888 = vmatprep.subr.bf16.mxu0 0
    %1889 = vmatpush1.bf16.msra.mxu0 0
    %1890 = vmatprep.subr.bf16.mxu0 0
    %1891 = vmatpush1.bf16.msra.mxu0 0
    %1892 = vmatprep.subr.bf16.mxu0 0
    %1893 = vmatpush1.bf16.msra.mxu0 0
    %1894 = vmatprep.subr.bf16.mxu0 0
    %1895 = vmatpush1.bf16.msra.mxu0 0
    %1896 = vmatprep.subr.bf16.mxu0 0
    %1897 = vmatpush1.bf16.msra.mxu0 0
    %1898 = vmatprep.subr.bf16.mxu0 0
    %1899 = vmatpush1.bf16.msra.mxu0 0
    %1900 = vmatprep.subr.bf16.mxu0 0
    %1901 = vmatpush1.bf16.msra.mxu0 0
    %1902 = vmatprep.subr.bf16.mxu0 0
    %1903 = vmatpush1.bf16.msra.mxu0 0
    %1904 = vmatprep.subr.bf16.mxu0 0
    %1905 = vmatpush1.bf16.msra.mxu0 0
    %1906 = vmatprep.subr.bf16.mxu0 0
    %1907 = vmatpush1.bf16.msra.mxu0 0
    %1908 = vmatprep.mubr.bf16.mxu0 0
    %1909 = vmatmul.mubr.bf16.gmra.mrb[0].mxu0 %v1628
    %v1910 = vpop.f32.mrb[0].mxu0
    %v1911 = vadd.f32 %v1481, %v1910
    %v1912 = vpop.f32.mrb[0].mxu0
    %v1913 = vpop.f32.mrb[0].mxu0
    %v1914 = vpop.f32.mrb[0].mxu0
    %1915 = vdwg.mxu0
    %v1916 = vmax.f32 %v1665, 0.0
    %v1917 = vmax.f32 %v1667, 0.0
    %v1918 = vmax.f32 %v1706, 0.0
    %v1919 = vmax.f32 %v1708, 0.0
    %v1920 = vmax.f32 %v1747, 0.0
    %v1921 = vmax.f32 %v1749, 0.0
    %v1922 = vmax.f32 %v1788, 0.0
    %v1923 = vmax.f32 %v1790, 0.0
    %v1924 = vmax.f32 %v1829, 0.0
    %v1925 = vmax.f32 %v1831, 0.0
    %v1926 = vmax.f32 %v1870, 0.0
    %v1927 = vmax.f32 %v1872, 0.0
    %v1928 = vmax.f32 %v1911, 0.0
    %v1929 = vpack.c.bf16 %v1916, %v1916
    %v1930 = vpack.c.bf16 %v1917, %v1917
    %v1931 = vpack.c.bf16 %v1918, %v1918
    %v1932 = vpack.c.bf16 %v1919, %v1919
    %v1933 = vpack.c.bf16 %v1920, %v1920
    %v1934 = vpack.c.bf16 %v1921, %v1921
    %v1935 = vpack.c.bf16 %v1922, %v1922
    %v1936 = vpack.c.bf16 %v1923, %v1923
    %v1937 = vpack.c.bf16 %v1924, %v1924
    %v1938 = vpack.c.bf16 %v1925, %v1925
    %v1939 = vpack.c.bf16 %v1926, %v1926
    %v1940 = vpack.c.bf16 %v1927, %v1927
    %v1941 = vpack.c.bf16 %v1928, %v1928
    %v1955 = vcombine.low %v1929, %v1930
    %v1956 = vcombine.low %v1931, %v1932
    %v1957 = vcombine.low %v1933, %v1934
    %v1958 = vcombine.low %v1935, %v1936
    %v1960 = vunpack.c.l.s4 1966171168
    %v1961 = vunpack.c.0.s8 %v1960
    %v1962 = vlaneseq
    %v1963 = vshrl.u32 %v1962, 7
    %v1964 = vsub.s32 %v1961, %v1963
    %v1965 = vrot.slane %v1955, %v1964
    %v1967 = vunpack.c.l.s4 1966171168
    %v1968 = vunpack.c.0.s8 %v1967
    %v1969 = vlaneseq
    %v1970 = vshrl.u32 %v1969, 7
    %v1971 = vsub.s32 %v1968, %v1970
    %v1972 = vrot.slane %v1956, %v1971
    %v1974 = vunpack.c.l.s4 1966171168
    %v1975 = vunpack.c.0.s8 %v1974
    %v1976 = vlaneseq
    %v1977 = vshrl.u32 %v1976, 7
    %v1978 = vsub.s32 %v1975, %v1977
    %v1979 = vrot.slane %v1957, %v1978
    %v1981 = vunpack.c.l.s4 1966171168
    %v1982 = vunpack.c.0.s8 %v1981
    %v1983 = vlaneseq
    %v1984 = vshrl.u32 %v1983, 7
    %v1985 = vsub.s32 %v1982, %v1984
    %v1986 = vrot.slane %v1958, %v1985
    %v1987 = vcombine.low %v1965, %v1972
    %v1988 = vcombine.low %v1979, %v1986
    %v1990 = vunpack.c.l.s4 1966171168
    %v1991 = vunpack.c.0.s8 %v1990
    %v1992 = vlaneseq
    %v1993 = vshrl.u32 %v1992, 7
    %v1994 = vsub.s32 %v1991, %v1993
    %v1995 = vrot.slane %v1987, %v1994
    %v1997 = vunpack.c.l.s4 1966171168
    %v1998 = vunpack.c.0.s8 %v1997
    %v1999 = vlaneseq
    %v2000 = vshrl.u32 %v1999, 7
    %v2001 = vsub.s32 %v1998, %v2000
    %v2002 = vrot.slane %v1988, %v2001
    %v2003 = vcombine.low %v1995, %v2002
    %v2004 = vcombine.low %v1937, %v1938
    %v2005 = vcombine.low %v1939, %v1940
    %v2007 = vunpack.c.l.s4 1966171168
    %v2008 = vunpack.c.0.s8 %v2007
    %v2009 = vlaneseq
    %v2010 = vshrl.u32 %v2009, 7
    %v2011 = vsub.s32 %v2008, %v2010
    %v2012 = vrot.slane %v2004, %v2011
    %v2014 = vunpack.c.l.s4 1966171168
    %v2015 = vunpack.c.0.s8 %v2014
    %v2016 = vlaneseq
    %v2017 = vshrl.u32 %v2016, 7
    %v2018 = vsub.s32 %v2015, %v2017
    %v2019 = vrot.slane %v2005, %v2018
    %v2021 = vunpack.c.l.s4 1966171168
    %v2022 = vunpack.c.0.s8 %v2021
    %v2023 = vlaneseq
    %v2024 = vshrl.u32 %v2023, 7
    %v2025 = vsub.s32 %v2022, %v2024
    %v2026 = vrot.slane %v1941, %v2025
    %v2027 = vcombine.low %v2012, %v2019
    %v2029 = vunpack.c.l.s4 1966171168
    %v2030 = vunpack.c.0.s8 %v2029
    %v2031 = vlaneseq
    %v2032 = vshrl.u32 %v2031, 7
    %v2033 = vsub.s32 %v2030, %v2032
    %v2034 = vrot.slane %v2027, %v2033
    %v2036 = vunpack.c.l.s4 1966171168
    %v2037 = vunpack.c.0.s8 %v2036
    %v2038 = vlaneseq
    %v2039 = vshrl.u32 %v2038, 7
    %v2040 = vsub.s32 %v2037, %v2039
    %v2041 = vrot.slane %v2026, %v2040
    %v2042 = vcombine.low %v2034, %v2041
    %2045 = vst [vmem:[%s10] sm:$0xff] %v2003
    %vm2046 = vcmask 1040384
    %vm2047 = vcmask 1041409
    %vm2048 = vmor %vm2047, %vm2046
    %vm2049 = vcmask 1042434
    %vm2050 = vmor %vm2049, %vm2048
    %vm2051 = vcmask 1043459
    %vm2052 = vmor %vm2051, %vm2050
    %vm2053 = vcmask 258052
    %vm2054 = vmor %vm2053, %vm2052
    %2055 = vst.msk [vmem:[%s10 + $0x8] sm:$0x1f] %vm2054, %v2042
    // Predicated region
    $region38: #{autoencoder_forward.7} parent=1 // pred_check
      _
    $region39: #{autoencoder_forward.7} parent=1 // pred_check_branch
      %2057 = sbr.rel (0) target = $region41
    $region40: #{autoencoder_forward.7} parent=1 // pred_region
      %s2059 = ssub.s32 32, 32
      %2060 = vsyncadd [#allocation3], %s2059
      %s2062 = sshll.u32 [#allocation2], 4
      %s2063 = int_to_ptr.vmem [resolvable:$true] %s2062
      %2065 = dma.vmem_to_hbm [thread:$0]  %s2063, 32, %s9, [#allocation3]
    $region41: #{autoencoder_forward.7} parent=1 // pred_fallthru
      _
    // Predicated region
    $region42: #{autoencoder_forward.7} parent=1 // pred_check
      _
    $region43: #{autoencoder_forward.7} parent=1 // pred_check_branch
      %2067 = sbr.rel (0) target = $region45
    $region44: #{autoencoder_forward.7} parent=1 // pred_region
      _
    $region45: #{autoencoder_forward.7} parent=1 // pred_fallthru
      _
    // Predicated region
    $region46: #{autoencoder_forward.7} parent=1 // pred_check
      _
    $region47: #{autoencoder_forward.7} parent=1 // pred_check_branch
      %2069 = sbr.rel (0) target = $region49
    $region48: #{autoencoder_forward.7} parent=1 // pred_region
      %2070 = dma.done [#allocation3], 32
    $region49: #{autoencoder_forward.7} parent=1 // pred_fallthru
      _
    // Predicated region
    $region50: #{autoencoder_forward.7} parent=1 // pred_check
      _
    $region51: #{autoencoder_forward.7} parent=1 // pred_check_branch
      %2072 = sbr.rel (0) target = $region53
    $region52: #{autoencoder_forward.7} parent=1 // pred_region
      _
    $region53: #{autoencoder_forward.7} parent=1 // pred_fallthru
      _
    %2073 = vsyncpa [#allocation3], 1

// kernel: autoencoder_forward.8
$region0: #{autoencoder_forward.8}
  #allocation0 [shape = 'u32[]', space=smem, size = 0x4, offset = 0x4, fixed_abs, tag = 'smem constant byte address 0x4 - core index']
  #allocation1 [shape = 'u32[144,128]{1,0:T(1,128)}', space=vmem, size = 0x12000, scoped, tag = 'internal scratch']
  %s0 = inlined_call_operand.vmem [shape: bf16[392,512], index: 0, kind: input, shape index: {}]
  %s1 = inlined_call_operand.vmem [shape: bf16[512,128], index: 1, kind: input, shape index: {}]
  %s2 = inlined_call_operand.vmem [shape: f32[1,128], index: 2, kind: input, shape index: {}]
  %s3 = inlined_call_operand.vmem [shape: bf16[392,128], index: 3, kind: output, shape index: {}]
  %s4 = sld [smem:[#allocation0]]
  $region22: #{autoencoder_forward.8} parent=0
    _
  %s6 = ssub.s32 1, %s4
  %s7 = scalar_select 0, %s6, %s4
  // Predicated region
  $region2: #{autoencoder_forward.8} parent=0 // pred_check
    _
  $region3: #{autoencoder_forward.8} parent=0 // pred_check_branch
    %9 = sbr.rel (0) target = $region5
  $region4: #{autoencoder_forward.8} parent=0 // pred_region
    _
  $region5: #{autoencoder_forward.8} parent=0 // pred_fallthru
    _
  // Predicated region
  $region6: #{autoencoder_forward.8} parent=0 // pred_check
    _
  $region7: #{autoencoder_forward.8} parent=0 // pred_check_branch
    %11 = sbr.rel (0) target = $region9
  $region8: #{autoencoder_forward.8} parent=0 // pred_region
    _
  $region9: #{autoencoder_forward.8} parent=0 // pred_fallthru
    _
  // Predicated region
  $region10: #{autoencoder_forward.8} parent=0 // pred_check
    _
  $region11: #{autoencoder_forward.8} parent=0 // pred_check_branch
    %13 = sbr.rel (0) target = $region13
  $region12: #{autoencoder_forward.8} parent=0 // pred_region
    _
  $region13: #{autoencoder_forward.8} parent=0 // pred_fallthru
    _
  %v15 = vld [vmem:[%s0] sm:$0xff]
  %v16 = vld [vmem:[%s0 + $0x8] sm:$0xff]
  %v17 = vld [vmem:[%s0 + $0x10] sm:$0xff]
  %v18 = vld [vmem:[%s0 + $0x18] sm:$0xff]
  %v19 = vld [vmem:[%s0 + $0x20] sm:$0xff]
  %v20 = vld [vmem:[%s0 + $0x28] sm:$0xff]
  %v21 = vld [vmem:[%s0 + $0x30] sm:$0xff]
  %v22 = vld [vmem:[%s0 + $0x38] sm:$0xff]
  %v23 = vld [vmem:[%s0 + $0x40] sm:$0xff]
  %v24 = vld [vmem:[%s0 + $0x48] sm:$0xff]
  %v25 = vld [vmem:[%s0 + $0x50] sm:$0xff]
  %v26 = vld [vmem:[%s0 + $0x58] sm:$0xff]
  %v27 = vld [vmem:[%s0 + $0x60] sm:$0xff]
  %v28 = vld [vmem:[%s0 + $0x68] sm:$0xff]
  %v29 = vld [vmem:[%s0 + $0x70] sm:$0xff]
  %v30 = vld [vmem:[%s0 + $0x78] sm:$0xff]
  %v31 = vld [vmem:[%s0 + $0x80] sm:$0xff]
  %v32 = vld [vmem:[%s0 + $0x88] sm:$0xff]
  %v33 = vld [vmem:[%s0 + $0x90] sm:$0xff]
  %v34 = vld [vmem:[%s0 + $0x98] sm:$0xff]
  %v35 = vld [vmem:[%s0 + $0xa0] sm:$0xff]
  %v36 = vld [vmem:[%s0 + $0xa8] sm:$0xff]
  %v37 = vld [vmem:[%s0 + $0xb0] sm:$0xff]
  %v38 = vld [vmem:[%s0 + $0xb8] sm:$0xff]
  %v39 = vld [vmem:[%s0 + $0xc0] sm:$0xff]
  %v40 = vld [vmem:[%s0 + $0xc8] sm:$0xff]
  %v41 = vld [vmem:[%s0 + $0xd0] sm:$0xff]
  %v42 = vld [vmem:[%s0 + $0xd8] sm:$0xff]
  %v43 = vld [vmem:[%s0 + $0xe0] sm:$0xff]
  %v44 = vld [vmem:[%s0 + $0xe8] sm:$0xff]
  %v45 = vld [vmem:[%s0 + $0xf0] sm:$0xff]
  %v46 = vld [vmem:[%s0 + $0xf8] sm:$0xff]
  %v47 = vld [vmem:[%s0 + $0x100] sm:$0xff]
  %v48 = vld [vmem:[%s0 + $0x108] sm:$0xff]
  %v49 = vld [vmem:[%s0 + $0x110] sm:$0xff]
  %v50 = vld [vmem:[%s0 + $0x118] sm:$0xff]
  %v51 = vld [vmem:[%s0 + $0x120] sm:$0xff]
  %v52 = vld [vmem:[%s0 + $0x128] sm:$0xff]
  %v53 = vld [vmem:[%s0 + $0x130] sm:$0xff]
  %v54 = vld [vmem:[%s0 + $0x138] sm:$0xff]
  %v55 = vld [vmem:[%s0 + $0x140] sm:$0xff]
  %v56 = vld [vmem:[%s0 + $0x148] sm:$0xff]
  %v57 = vld [vmem:[%s0 + $0x150] sm:$0xff]
  %v58 = vld [vmem:[%s0 + $0x158] sm:$0xff]
  %v59 = vld [vmem:[%s0 + $0x160] sm:$0xff]
  %v60 = vld [vmem:[%s0 + $0x168] sm:$0xff]
  %v61 = vld [vmem:[%s0 + $0x170] sm:$0xff]
  %v62 = vld [vmem:[%s0 + $0x178] sm:$0xff]
  %v63 = vld [vmem:[%s0 + $0x180] sm:$0xff]
  %v64 = vld [vmem:[%s0 + $0x188] sm:$0xff]
  %v65 = vld [vmem:[%s0 + $0x190] sm:$0xff]
  %v66 = vld [vmem:[%s0 + $0x198] sm:$0xff]
  %v67 = vld [vmem:[%s0 + $0x1a0] sm:$0xff]
  %v68 = vld [vmem:[%s0 + $0x1a8] sm:$0xff]
  %v69 = vld [vmem:[%s0 + $0x1b0] sm:$0xff]
  %v70 = vld [vmem:[%s0 + $0x1b8] sm:$0xff]
  %v71 = vld [vmem:[%s0 + $0x1c0] sm:$0xff]
  %v72 = vld [vmem:[%s0 + $0x1c8] sm:$0xff]
  %v73 = vld [vmem:[%s0 + $0x1d0] sm:$0xff]
  %v74 = vld [vmem:[%s0 + $0x1d8] sm:$0xff]
  %v75 = vld [vmem:[%s0 + $0x1e0] sm:$0xff]
  %v76 = vld [vmem:[%s0 + $0x1e8] sm:$0xff]
  %v77 = vld [vmem:[%s0 + $0x1f0] sm:$0xff]
  %v78 = vld [vmem:[%s0 + $0x1f8] sm:$0xff]
  %v79 = vld [vmem:[%s0 + $0x200] sm:$0xff]
  %v80 = vld [vmem:[%s0 + $0x208] sm:$0xff]
  %v81 = vld [vmem:[%s0 + $0x210] sm:$0xff]
  %v82 = vld [vmem:[%s0 + $0x218] sm:$0xff]
  %v83 = vld [vmem:[%s0 + $0x220] sm:$0xff]
  %v84 = vld [vmem:[%s0 + $0x228] sm:$0xff]
  %v85 = vld [vmem:[%s0 + $0x230] sm:$0xff]
  %v86 = vld [vmem:[%s0 + $0x238] sm:$0xff]
  %v87 = vld [vmem:[%s0 + $0x240] sm:$0xff]
  %v88 = vld [vmem:[%s0 + $0x248] sm:$0xff]
  %v89 = vld [vmem:[%s0 + $0x250] sm:$0xff]
  %v90 = vld [vmem:[%s0 + $0x258] sm:$0xff]
  %v91 = vld [vmem:[%s0 + $0x260] sm:$0xff]
  %v92 = vld [vmem:[%s0 + $0x268] sm:$0xff]
  %v93 = vld [vmem:[%s0 + $0x270] sm:$0xff]
  %v94 = vld [vmem:[%s0 + $0x278] sm:$0xff]
  %v95 = vld [vmem:[%s0 + $0x280] sm:$0xff]
  %v96 = vld [vmem:[%s0 + $0x288] sm:$0xff]
  %v97 = vld [vmem:[%s0 + $0x290] sm:$0xff]
  %v98 = vld [vmem:[%s0 + $0x298] sm:$0xff]
  %v99 = vld [vmem:[%s0 + $0x2a0] sm:$0xff]
  %v100 = vld [vmem:[%s0 + $0x2a8] sm:$0xff]
  %v101 = vld [vmem:[%s0 + $0x2b0] sm:$0xff]
  %v102 = vld [vmem:[%s0 + $0x2b8] sm:$0xff]
  %v103 = vld [vmem:[%s0 + $0x2c0] sm:$0xff]
  %v104 = vld [vmem:[%s0 + $0x2c8] sm:$0xff]
  %v105 = vld [vmem:[%s0 + $0x2d0] sm:$0xff]
  %v106 = vld [vmem:[%s0 + $0x2d8] sm:$0xff]
  %v107 = vld [vmem:[%s0 + $0x2e0] sm:$0xff]
  %v108 = vld [vmem:[%s0 + $0x2e8] sm:$0xff]
  %v109 = vld [vmem:[%s0 + $0x2f0] sm:$0xff]
  %v110 = vld [vmem:[%s0 + $0x2f8] sm:$0xff]
  %v111 = vld [vmem:[%s0 + $0x300] sm:$0xff]
  %v112 = vld [vmem:[%s0 + $0x308] sm:$0xff]
  %v113 = vld [vmem:[%s1] sm:$0xf]
  %v114 = vld [vmem:[%s1 + $0x4] sm:$0xf]
  %v115 = vld [vmem:[%s1 + $0x8] sm:$0xf]
  %v116 = vld [vmem:[%s1 + $0xc] sm:$0xf]
  %v117 = vld [vmem:[%s1 + $0x10] sm:$0xf]
  %v118 = vld [vmem:[%s1 + $0x14] sm:$0xf]
  %v119 = vld [vmem:[%s1 + $0x18] sm:$0xf]
  %v120 = vld [vmem:[%s1 + $0x1c] sm:$0xf]
  %v121 = vld [vmem:[%s1 + $0x20] sm:$0xf]
  %v122 = vld [vmem:[%s1 + $0x24] sm:$0xf]
  %v123 = vld [vmem:[%s1 + $0x28] sm:$0xf]
  %v124 = vld [vmem:[%s1 + $0x2c] sm:$0xf]
  %v125 = vld [vmem:[%s1 + $0x30] sm:$0xf]
  %v126 = vld [vmem:[%s1 + $0x34] sm:$0xf]
  %v127 = vld [vmem:[%s1 + $0x38] sm:$0xf]
  %v128 = vld [vmem:[%s1 + $0x3c] sm:$0xf]
  %v129 = vld [vmem:[%s1 + $0x40] sm:$0xf]
  %v130 = vld [vmem:[%s1 + $0x44] sm:$0xf]
  %v131 = vld [vmem:[%s1 + $0x48] sm:$0xf]
  %v132 = vld [vmem:[%s1 + $0x4c] sm:$0xf]
  %v133 = vld [vmem:[%s1 + $0x50] sm:$0xf]
  %v134 = vld [vmem:[%s1 + $0x54] sm:$0xf]
  %v135 = vld [vmem:[%s1 + $0x58] sm:$0xf]
  %v136 = vld [vmem:[%s1 + $0x5c] sm:$0xf]
  %v137 = vld [vmem:[%s1 + $0x60] sm:$0xf]
  %v138 = vld [vmem:[%s1 + $0x64] sm:$0xf]
  %v139 = vld [vmem:[%s1 + $0x68] sm:$0xf]
  %v140 = vld [vmem:[%s1 + $0x6c] sm:$0xf]
  %v141 = vld [vmem:[%s1 + $0x70] sm:$0xf]
  %v142 = vld [vmem:[%s1 + $0x74] sm:$0xf]
  %v143 = vld [vmem:[%s1 + $0x78] sm:$0xf]
  %v144 = vld [vmem:[%s1 + $0x7c] sm:$0xf]
  %v145 = vld [vmem:[%s1 + $0x80] sm:$0xf]
  %v146 = vld [vmem:[%s1 + $0x84] sm:$0xf]
  %v147 = vld [vmem:[%s1 + $0x88] sm:$0xf]
  %v148 = vld [vmem:[%s1 + $0x8c] sm:$0xf]
  %v149 = vld [vmem:[%s1 + $0x90] sm:$0xf]
  %v150 = vld [vmem:[%s1 + $0x94] sm:$0xf]
  %v151 = vld [vmem:[%s1 + $0x98] sm:$0xf]
  %v152 = vld [vmem:[%s1 + $0x9c] sm:$0xf]
  %v153 = vld [vmem:[%s1 + $0xa0] sm:$0xf]
  %v154 = vld [vmem:[%s1 + $0xa4] sm:$0xf]
  %v155 = vld [vmem:[%s1 + $0xa8] sm:$0xf]
  %v156 = vld [vmem:[%s1 + $0xac] sm:$0xf]
  %v157 = vld [vmem:[%s1 + $0xb0] sm:$0xf]
  %v158 = vld [vmem:[%s1 + $0xb4] sm:$0xf]
  %v159 = vld [vmem:[%s1 + $0xb8] sm:$0xf]
  %v160 = vld [vmem:[%s1 + $0xbc] sm:$0xf]
  %v161 = vld [vmem:[%s1 + $0xc0] sm:$0xf]
  %v162 = vld [vmem:[%s1 + $0xc4] sm:$0xf]
  %v163 = vld [vmem:[%s1 + $0xc8] sm:$0xf]
  %v164 = vld [vmem:[%s1 + $0xcc] sm:$0xf]
  %v165 = vld [vmem:[%s1 + $0xd0] sm:$0xf]
  %v166 = vld [vmem:[%s1 + $0xd4] sm:$0xf]
  %v167 = vld [vmem:[%s1 + $0xd8] sm:$0xf]
  %v168 = vld [vmem:[%s1 + $0xdc] sm:$0xf]
  %v169 = vld [vmem:[%s1 + $0xe0] sm:$0xf]
  %v170 = vld [vmem:[%s1 + $0xe4] sm:$0xf]
  %v171 = vld [vmem:[%s1 + $0xe8] sm:$0xf]
  %v172 = vld [vmem:[%s1 + $0xec] sm:$0xf]
  %v173 = vld [vmem:[%s1 + $0xf0] sm:$0xf]
  %v174 = vld [vmem:[%s1 + $0xf4] sm:$0xf]
  %v175 = vld [vmem:[%s1 + $0xf8] sm:$0xf]
  %v176 = vld [vmem:[%s1 + $0xfc] sm:$0xf]
  %v177 = vld [vmem:[%s2] sm:$0x1]
  %v179 = vlaneseq
  %v180 = vshrl.u32 %v179, 7
  %v181 = vsub.s32 0, %v180
  %v182 = vrot.slane %v177, %v181
  %v282 = vunpack.c.l.b16 %v15
  %v283 = vunpack.c.h.b16 %v15
  %v284 = vunpack.c.l.b16 %v16
  %v285 = vunpack.c.h.b16 %v16
  %v286 = vunpack.c.l.b16 %v17
  %v287 = vunpack.c.h.b16 %v17
  %v288 = vunpack.c.l.b16 %v18
  %v289 = vunpack.c.h.b16 %v18
  %v290 = vunpack.c.l.b16 %v19
  %v291 = vunpack.c.h.b16 %v19
  %v292 = vunpack.c.l.b16 %v20
  %v293 = vunpack.c.h.b16 %v20
  %v294 = vunpack.c.l.b16 %v21
  %v295 = vunpack.c.h.b16 %v21
  %v296 = vunpack.c.l.b16 %v22
  %v297 = vunpack.c.h.b16 %v22
  %v298 = vunpack.c.l.b16 %v23
  %v299 = vunpack.c.h.b16 %v23
  %v300 = vunpack.c.l.b16 %v24
  %v301 = vunpack.c.h.b16 %v24
  %v302 = vunpack.c.l.b16 %v25
  %v303 = vunpack.c.h.b16 %v25
  %v304 = vunpack.c.l.b16 %v26
  %v305 = vunpack.c.h.b16 %v26
  %v306 = vunpack.c.l.b16 %v27
  %v307 = vunpack.c.h.b16 %v27
  %v308 = vunpack.c.l.b16 %v28
  %v309 = vunpack.c.h.b16 %v28
  %v310 = vunpack.c.l.b16 %v29
  %v311 = vunpack.c.h.b16 %v29
  %v312 = vunpack.c.l.b16 %v30
  %v313 = vunpack.c.h.b16 %v30
  %v314 = vunpack.c.l.b16 %v31
  %v315 = vunpack.c.h.b16 %v31
  %v316 = vunpack.c.l.b16 %v32
  %v317 = vunpack.c.h.b16 %v32
  %v318 = vunpack.c.l.b16 %v33
  %v319 = vunpack.c.h.b16 %v33
  %v320 = vunpack.c.l.b16 %v34
  %v321 = vunpack.c.h.b16 %v34
  %v322 = vunpack.c.l.b16 %v35
  %v323 = vunpack.c.h.b16 %v35
  %v324 = vunpack.c.l.b16 %v36
  %v325 = vunpack.c.h.b16 %v36
  %v326 = vunpack.c.l.b16 %v37
  %v327 = vunpack.c.h.b16 %v37
  %v328 = vunpack.c.l.b16 %v38
  %v329 = vunpack.c.h.b16 %v38
  %v330 = vunpack.c.l.b16 %v39
  %v331 = vunpack.c.h.b16 %v39
  %v332 = vunpack.c.l.b16 %v40
  %v333 = vunpack.c.h.b16 %v40
  %v334 = vunpack.c.l.b16 %v41
  %v335 = vunpack.c.h.b16 %v41
  %v336 = vunpack.c.l.b16 %v42
  %v337 = vunpack.c.h.b16 %v42
  %v338 = vunpack.c.l.b16 %v43
  %v339 = vunpack.c.h.b16 %v43
  %v340 = vunpack.c.l.b16 %v44
  %v341 = vunpack.c.h.b16 %v44
  %v342 = vunpack.c.l.b16 %v45
  %v343 = vunpack.c.h.b16 %v45
  %v344 = vunpack.c.l.b16 %v46
  %v345 = vunpack.c.h.b16 %v46
  %v346 = vunpack.c.l.b16 %v47
  %v347 = vunpack.c.h.b16 %v47
  %v348 = vunpack.c.l.b16 %v48
  %v349 = vunpack.c.h.b16 %v48
  %v350 = vunpack.c.l.b16 %v49
  %v351 = vunpack.c.h.b16 %v49
  %v352 = vunpack.c.l.b16 %v50
  %v353 = vunpack.c.h.b16 %v50
  %v354 = vunpack.c.l.b16 %v51
  %v355 = vunpack.c.h.b16 %v51
  %v356 = vunpack.c.l.b16 %v52
  %v357 = vunpack.c.h.b16 %v52
  %v358 = vunpack.c.l.b16 %v53
  %v359 = vunpack.c.h.b16 %v53
  %v360 = vunpack.c.l.b16 %v54
  %v361 = vunpack.c.h.b16 %v54
  %v362 = vunpack.c.l.b16 %v55
  %v363 = vunpack.c.h.b16 %v55
  %v364 = vunpack.c.l.b16 %v56
  %v365 = vunpack.c.h.b16 %v56
  %v366 = vunpack.c.l.b16 %v57
  %v367 = vunpack.c.h.b16 %v57
  %v368 = vunpack.c.l.b16 %v58
  %v369 = vunpack.c.h.b16 %v58
  %v370 = vunpack.c.l.b16 %v59
  %v371 = vunpack.c.h.b16 %v59
  %v372 = vunpack.c.l.b16 %v60
  %v373 = vunpack.c.h.b16 %v60
  %v374 = vunpack.c.l.b16 %v61
  %v375 = vunpack.c.h.b16 %v61
  %v376 = vunpack.c.l.b16 %v62
  %v377 = vunpack.c.h.b16 %v62
  %v378 = vunpack.c.l.b16 %v63
  %v379 = vunpack.c.h.b16 %v63
  %v380 = vunpack.c.l.b16 %v64
  %v381 = vunpack.c.h.b16 %v64
  %v382 = vunpack.c.l.b16 %v65
  %v383 = vunpack.c.h.b16 %v65
  %v384 = vunpack.c.l.b16 %v66
  %v385 = vunpack.c.h.b16 %v66
  %v386 = vunpack.c.l.b16 %v67
  %v387 = vunpack.c.h.b16 %v67
  %v388 = vunpack.c.l.b16 %v68
  %v389 = vunpack.c.h.b16 %v68
  %v390 = vunpack.c.l.b16 %v69
  %v391 = vunpack.c.h.b16 %v69
  %v392 = vunpack.c.l.b16 %v70
  %v393 = vunpack.c.h.b16 %v70
  %v394 = vunpack.c.l.b16 %v71
  %v395 = vunpack.c.h.b16 %v71
  %v396 = vunpack.c.l.b16 %v72
  %v397 = vunpack.c.h.b16 %v72
  %v398 = vunpack.c.l.b16 %v73
  %v399 = vunpack.c.h.b16 %v73
  %v400 = vunpack.c.l.b16 %v74
  %v401 = vunpack.c.h.b16 %v74
  %v402 = vunpack.c.l.b16 %v75
  %v403 = vunpack.c.h.b16 %v75
  %v404 = vunpack.c.l.b16 %v76
  %v405 = vunpack.c.h.b16 %v76
  %v406 = vunpack.c.l.b16 %v77
  %v407 = vunpack.c.h.b16 %v77
  %v408 = vunpack.c.l.b16 %v78
  %v409 = vunpack.c.h.b16 %v78
  %v410 = vunpack.c.l.b16 %v79
  %v411 = vunpack.c.h.b16 %v79
  %v412 = vunpack.c.l.b16 %v80
  %v413 = vunpack.c.h.b16 %v80
  %v414 = vunpack.c.l.b16 %v81
  %v415 = vunpack.c.h.b16 %v81
  %v416 = vunpack.c.l.b16 %v82
  %v417 = vunpack.c.h.b16 %v82
  %v418 = vunpack.c.l.b16 %v83
  %v419 = vunpack.c.h.b16 %v83
  %v420 = vunpack.c.l.b16 %v84
  %v421 = vunpack.c.h.b16 %v84
  %v422 = vunpack.c.l.b16 %v85
  %v423 = vunpack.c.h.b16 %v85
  %v424 = vunpack.c.l.b16 %v86
  %v425 = vunpack.c.h.b16 %v86
  %v426 = vunpack.c.l.b16 %v87
  %v427 = vunpack.c.h.b16 %v87
  %v428 = vunpack.c.l.b16 %v88
  %v429 = vunpack.c.h.b16 %v88
  %v430 = vunpack.c.l.b16 %v89
  %v431 = vunpack.c.h.b16 %v89
  %v432 = vunpack.c.l.b16 %v90
  %v433 = vunpack.c.h.b16 %v90
  %v434 = vunpack.c.l.b16 %v91
  %v435 = vunpack.c.h.b16 %v91
  %v436 = vunpack.c.l.b16 %v92
  %v437 = vunpack.c.h.b16 %v92
  %v438 = vunpack.c.l.b16 %v93
  %v439 = vunpack.c.h.b16 %v93
  %v440 = vunpack.c.l.b16 %v94
  %v441 = vunpack.c.h.b16 %v94
  %v442 = vunpack.c.l.b16 %v95
  %v443 = vunpack.c.h.b16 %v95
  %v444 = vunpack.c.l.b16 %v96
  %v445 = vunpack.c.h.b16 %v96
  %v446 = vunpack.c.l.b16 %v97
  %v447 = vunpack.c.h.b16 %v97
  %v448 = vunpack.c.l.b16 %v98
  %v449 = vunpack.c.h.b16 %v98
  %v450 = vunpack.c.l.b16 %v99
  %v451 = vunpack.c.h.b16 %v99
  %v452 = vunpack.c.l.b16 %v100
  %v453 = vunpack.c.h.b16 %v100
  %v454 = vunpack.c.l.b16 %v101
  %v455 = vunpack.c.h.b16 %v101
  %v456 = vunpack.c.l.b16 %v102
  %v457 = vunpack.c.h.b16 %v102
  %v458 = vunpack.c.l.b16 %v103
  %v459 = vunpack.c.h.b16 %v103
  %v460 = vunpack.c.l.b16 %v104
  %v461 = vunpack.c.h.b16 %v104
  %v462 = vunpack.c.l.b16 %v105
  %v463 = vunpack.c.h.b16 %v105
  %v464 = vunpack.c.l.b16 %v106
  %v465 = vunpack.c.h.b16 %v106
  %v466 = vunpack.c.l.b16 %v107
  %v467 = vunpack.c.h.b16 %v107
  %v468 = vunpack.c.l.b16 %v108
  %v469 = vunpack.c.h.b16 %v108
  %v470 = vunpack.c.l.b16 %v109
  %v471 = vunpack.c.h.b16 %v109
  %v472 = vunpack.c.l.b16 %v110
  %v473 = vunpack.c.h.b16 %v110
  %v474 = vunpack.c.l.b16 %v111
  %v475 = vunpack.c.h.b16 %v111
  %v476 = vunpack.c.l.b16 %v112
  %v477 = vunpack.c.h.b16 %v112
  %v478 = vpack.c.b16 %v286, %v282
  %v479 = vpack.c.b16 %v287, %v283
  %v480 = vpack.c.b16 %v288, %v284
  %v481 = vpack.c.b16 %v289, %v285
  %v482 = vpack.c.b16 %v294, %v290
  %v483 = vpack.c.b16 %v295, %v291
  %v484 = vpack.c.b16 %v296, %v292
  %v485 = vpack.c.b16 %v297, %v293
  %v486 = vpack.c.b16 %v302, %v298
  %v487 = vpack.c.b16 %v303, %v299
  %v488 = vpack.c.b16 %v304, %v300
  %v489 = vpack.c.b16 %v305, %v301
  %v490 = vpack.c.b16 %v310, %v306
  %v491 = vpack.c.b16 %v311, %v307
  %v492 = vpack.c.b16 %v312, %v308
  %v493 = vpack.c.b16 %v313, %v309
  %v494 = vpack.c.b16 %v318, %v314
  %v495 = vpack.c.b16 %v319, %v315
  %v496 = vpack.c.b16 %v320, %v316
  %v497 = vpack.c.b16 %v321, %v317
  %v498 = vpack.c.b16 %v326, %v322
  %v499 = vpack.c.b16 %v327, %v323
  %v500 = vpack.c.b16 %v328, %v324
  %v501 = vpack.c.b16 %v329, %v325
  %v502 = vpack.c.b16 %v334, %v330
  %v503 = vpack.c.b16 %v335, %v331
  %v504 = vpack.c.b16 %v336, %v332
  %v505 = vpack.c.b16 %v337, %v333
  %v506 = vpack.c.b16 %v342, %v338
  %v507 = vpack.c.b16 %v343, %v339
  %v508 = vpack.c.b16 %v344, %v340
  %v509 = vpack.c.b16 %v345, %v341
  %v510 = vpack.c.b16 %v350, %v346
  %v511 = vpack.c.b16 %v351, %v347
  %v512 = vpack.c.b16 %v352, %v348
  %v513 = vpack.c.b16 %v353, %v349
  %v514 = vpack.c.b16 %v358, %v354
  %v515 = vpack.c.b16 %v359, %v355
  %v516 = vpack.c.b16 %v360, %v356
  %v517 = vpack.c.b16 %v361, %v357
  %v518 = vpack.c.b16 %v366, %v362
  %v519 = vpack.c.b16 %v367, %v363
  %v520 = vpack.c.b16 %v368, %v364
  %v521 = vpack.c.b16 %v369, %v365
  %v522 = vpack.c.b16 %v374, %v370
  %v523 = vpack.c.b16 %v375, %v371
  %v524 = vpack.c.b16 %v376, %v372
  %v525 = vpack.c.b16 %v377, %v373
  %v526 = vpack.c.b16 %v382, %v378
  %v527 = vpack.c.b16 %v383, %v379
  %v528 = vpack.c.b16 %v384, %v380
  %v529 = vpack.c.b16 %v385, %v381
  %v530 = vpack.c.b16 %v390, %v386
  %v531 = vpack.c.b16 %v391, %v387
  %v532 = vpack.c.b16 %v392, %v388
  %v533 = vpack.c.b16 %v393, %v389
  %v534 = vpack.c.b16 %v398, %v394
  %v535 = vpack.c.b16 %v399, %v395
  %v536 = vpack.c.b16 %v400, %v396
  %v537 = vpack.c.b16 %v401, %v397
  %v538 = vpack.c.b16 %v406, %v402
  %v539 = vpack.c.b16 %v407, %v403
  %v540 = vpack.c.b16 %v408, %v404
  %v541 = vpack.c.b16 %v409, %v405
  %v542 = vpack.c.b16 %v414, %v410
  %v543 = vpack.c.b16 %v415, %v411
  %v544 = vpack.c.b16 %v416, %v412
  %v545 = vpack.c.b16 %v417, %v413
  %v546 = vpack.c.b16 %v422, %v418
  %v547 = vpack.c.b16 %v423, %v419
  %v548 = vpack.c.b16 %v424, %v420
  %v549 = vpack.c.b16 %v425, %v421
  %v550 = vpack.c.b16 %v430, %v426
  %v551 = vpack.c.b16 %v431, %v427
  %v552 = vpack.c.b16 %v432, %v428
  %v553 = vpack.c.b16 %v433, %v429
  %v554 = vpack.c.b16 %v438, %v434
  %v555 = vpack.c.b16 %v439, %v435
  %v556 = vpack.c.b16 %v440, %v436
  %v557 = vpack.c.b16 %v441, %v437
  %v558 = vpack.c.b16 %v446, %v442
  %v559 = vpack.c.b16 %v447, %v443
  %v560 = vpack.c.b16 %v448, %v444
  %v561 = vpack.c.b16 %v449, %v445
  %v562 = vpack.c.b16 %v454, %v450
  %v563 = vpack.c.b16 %v455, %v451
  %v564 = vpack.c.b16 %v456, %v452
  %v565 = vpack.c.b16 %v457, %v453
  %v566 = vpack.c.b16 %v462, %v458
  %v567 = vpack.c.b16 %v463, %v459
  %v568 = vpack.c.b16 %v464, %v460
  %v569 = vpack.c.b16 %v465, %v461
  %v570 = vpack.c.b16 %v470, %v466
  %v571 = vpack.c.b16 %v471, %v467
  %v572 = vpack.c.b16 %v472, %v468
  %v573 = vpack.c.b16 %v473, %v469
  %v574 = vpack.c.b16 %v474, %v474
  %v575 = vpack.c.b16 %v475, %v475
  %v576 = vpack.c.b16 %v476, %v476
  %v577 = vpack.c.b16 %v477, %v477
  %v742 = vunpack.c.l.b16 %v113
  %v743 = vunpack.c.l.b16 %v114
  %v744 = vunpack.c.l.b16 %v115
  %v745 = vunpack.c.l.b16 %v116
  %v746 = vunpack.c.l.b16 %v117
  %v747 = vunpack.c.l.b16 %v118
  %v748 = vunpack.c.l.b16 %v119
  %v749 = vunpack.c.l.b16 %v120
  %v750 = vunpack.c.l.b16 %v121
  %v751 = vunpack.c.l.b16 %v122
  %v752 = vunpack.c.l.b16 %v123
  %v753 = vunpack.c.l.b16 %v124
  %v754 = vunpack.c.l.b16 %v125
  %v755 = vunpack.c.l.b16 %v126
  %v756 = vunpack.c.l.b16 %v127
  %v757 = vunpack.c.l.b16 %v128
  %v758 = vunpack.c.l.b16 %v129
  %v759 = vunpack.c.l.b16 %v130
  %v760 = vunpack.c.l.b16 %v131
  %v761 = vunpack.c.l.b16 %v132
  %v762 = vunpack.c.l.b16 %v133
  %v763 = vunpack.c.l.b16 %v134
  %v764 = vunpack.c.l.b16 %v135
  %v765 = vunpack.c.l.b16 %v136
  %v766 = vunpack.c.l.b16 %v137
  %v767 = vunpack.c.l.b16 %v138
  %v768 = vunpack.c.l.b16 %v139
  %v769 = vunpack.c.l.b16 %v140
  %v770 = vunpack.c.l.b16 %v141
  %v771 = vunpack.c.l.b16 %v142
  %v772 = vunpack.c.l.b16 %v143
  %v773 = vunpack.c.l.b16 %v144
  %v774 = vunpack.c.l.b16 %v145
  %v775 = vunpack.c.l.b16 %v146
  %v776 = vunpack.c.l.b16 %v147
  %v777 = vunpack.c.l.b16 %v148
  %v778 = vunpack.c.l.b16 %v149
  %v779 = vunpack.c.l.b16 %v150
  %v780 = vunpack.c.l.b16 %v151
  %v781 = vunpack.c.l.b16 %v152
  %v782 = vunpack.c.l.b16 %v153
  %v783 = vunpack.c.l.b16 %v154
  %v784 = vunpack.c.l.b16 %v155
  %v785 = vunpack.c.l.b16 %v156
  %v786 = vunpack.c.l.b16 %v157
  %v787 = vunpack.c.l.b16 %v158
  %v788 = vunpack.c.l.b16 %v159
  %v789 = vunpack.c.l.b16 %v160
  %v790 = vunpack.c.l.b16 %v161
  %v791 = vunpack.c.l.b16 %v162
  %v792 = vunpack.c.l.b16 %v163
  %v793 = vunpack.c.l.b16 %v164
  %v794 = vunpack.c.l.b16 %v165
  %v795 = vunpack.c.l.b16 %v166
  %v796 = vunpack.c.l.b16 %v167
  %v797 = vunpack.c.l.b16 %v168
  %v798 = vunpack.c.l.b16 %v169
  %v799 = vunpack.c.l.b16 %v170
  %v800 = vunpack.c.l.b16 %v171
  %v801 = vunpack.c.l.b16 %v172
  %v802 = vunpack.c.l.b16 %v173
  %v803 = vunpack.c.l.b16 %v174
  %v804 = vunpack.c.l.b16 %v175
  %v805 = vunpack.c.l.b16 %v176
  %v806 = vpack.c.b16 %v743, %v742
  %v807 = vpack.c.b16 %v745, %v744
  %v808 = vpack.c.b16 %v747, %v746
  %v809 = vpack.c.b16 %v749, %v748
  %v810 = vpack.c.b16 %v751, %v750
  %v811 = vpack.c.b16 %v753, %v752
  %v812 = vpack.c.b16 %v755, %v754
  %v813 = vpack.c.b16 %v757, %v756
  %v814 = vpack.c.b16 %v759, %v758
  %v815 = vpack.c.b16 %v761, %v760
  %v816 = vpack.c.b16 %v763, %v762
  %v817 = vpack.c.b16 %v765, %v764
  %v818 = vpack.c.b16 %v767, %v766
  %v819 = vpack.c.b16 %v769, %v768
  %v820 = vpack.c.b16 %v771, %v770
  %v821 = vpack.c.b16 %v773, %v772
  %v822 = vpack.c.b16 %v775, %v774
  %v823 = vpack.c.b16 %v777, %v776
  %v824 = vpack.c.b16 %v779, %v778
  %v825 = vpack.c.b16 %v781, %v780
  %v826 = vpack.c.b16 %v783, %v782
  %v827 = vpack.c.b16 %v785, %v784
  %v828 = vpack.c.b16 %v787, %v786
  %v829 = vpack.c.b16 %v789, %v788
  %v830 = vpack.c.b16 %v791, %v790
  %v831 = vpack.c.b16 %v793, %v792
  %v832 = vpack.c.b16 %v795, %v794
  %v833 = vpack.c.b16 %v797, %v796
  %v834 = vpack.c.b16 %v799, %v798
  %v835 = vpack.c.b16 %v801, %v800
  %v836 = vpack.c.b16 %v803, %v802
  %v837 = vpack.c.b16 %v805, %v804
  %870 = vmatprep.subr.bf16.mxu0 0
  %871 = vmatpush1.bf16.msra.mxu0 %v806
  %872 = vmatprep.subr.bf16.mxu0 0
  %873 = vmatpush1.bf16.msra.mxu0 %v807
  %874 = vmatprep.subr.bf16.mxu0 0
  %875 = vmatpush1.bf16.msra.mxu0 %v808
  %876 = vmatprep.subr.bf16.mxu0 0
  %877 = vmatpush1.bf16.msra.mxu0 %v809
  %878 = vmatprep.subr.bf16.mxu0 0
  %879 = vmatpush1.bf16.msra.mxu0 %v810
  %880 = vmatprep.subr.bf16.mxu0 0
  %881 = vmatpush1.bf16.msra.mxu0 %v811
  %882 = vmatprep.subr.bf16.mxu0 0
  %883 = vmatpush1.bf16.msra.mxu0 %v812
  %884 = vmatprep.subr.bf16.mxu0 0
  %885 = vmatpush1.bf16.msra.mxu0 %v813
  %886 = vmatprep.subr.bf16.mxu0 0
  %887 = vmatpush1.bf16.msra.mxu0 %v814
  %888 = vmatprep.subr.bf16.mxu0 0
  %889 = vmatpush1.bf16.msra.mxu0 %v815
  %890 = vmatprep.subr.bf16.mxu0 0
  %891 = vmatpush1.bf16.msra.mxu0 %v816
  %892 = vmatprep.subr.bf16.mxu0 0
  %893 = vmatpush1.bf16.msra.mxu0 %v817
  %894 = vmatprep.subr.bf16.mxu0 0
  %895 = vmatpush1.bf16.msra.mxu0 %v818
  %896 = vmatprep.subr.bf16.mxu0 0
  %897 = vmatpush1.bf16.msra.mxu0 %v819
  %898 = vmatprep.subr.bf16.mxu0 0
  %899 = vmatpush1.bf16.msra.mxu0 %v820
  %900 = vmatprep.subr.bf16.mxu0 0
  %901 = vmatpush1.bf16.msra.mxu0 %v821
  %902 = vmatprep.mubr.bf16.mxu0 %v479
  %903 = vmatmul.mubr.bf16.gmra.mrb[0].mxu0 %v478
  %v904 = vpop.f32.mrb[0].mxu0
  %v905 = vadd.f32 %v182, %v904
  %v906 = vpop.f32.mrb[0].mxu0
  %v907 = vpop.f32.mrb[0].mxu0
  %v908 = vadd.f32 %v182, %v907
  %v909 = vpop.f32.mrb[0].mxu0
  %910 = vmatprep.mubr.bf16.mxu0 %v483
  %911 = vmatmul.mubr.bf16.gmra.mrb[0].mxu0 %v482
  %v912 = vpop.f32.mrb[0].mxu0
  %v913 = vadd.f32 %v182, %v912
  %v914 = vpop.f32.mrb[0].mxu0
  %v915 = vpop.f32.mrb[0].mxu0
  %v916 = vadd.f32 %v182, %v915
  %v917 = vpop.f32.mrb[0].mxu0
  %918 = vmatprep.mubr.bf16.mxu0 %v487
  %919 = vmatmul.mubr.bf16.gmra.mrb[0].mxu0 %v486
  %v920 = vpop.f32.mrb[0].mxu0
  %v921 = vadd.f32 %v182, %v920
  %v922 = vpop.f32.mrb[0].mxu0
  %v923 = vpop.f32.mrb[0].mxu0
  %v924 = vadd.f32 %v182, %v923
  %v925 = vpop.f32.mrb[0].mxu0
  %926 = vmatprep.mubr.bf16.mxu0 %v491
  %927 = vmatmul.mubr.bf16.gmra.mrb[0].mxu0 %v490
  %v928 = vpop.f32.mrb[0].mxu0
  %v929 = vadd.f32 %v182, %v928
  %v930 = vpop.f32.mrb[0].mxu0
  %v931 = vpop.f32.mrb[0].mxu0
  %v932 = vadd.f32 %v182, %v931
  %v933 = vpop.f32.mrb[0].mxu0
  %934 = vmatprep.mubr.bf16.mxu0 %v495
  %935 = vmatmul.mubr.bf16.gmra.mrb[0].mxu0 %v494
  %v936 = vpop.f32.mrb[0].mxu0
  %v937 = vadd.f32 %v182, %v936
  %v938 = vpop.f32.mrb[0].mxu0
  %v939 = vpop.f32.mrb[0].mxu0
  %v940 = vadd.f32 %v182, %v939
  %v941 = vpop.f32.mrb[0].mxu0
  %942 = vmatprep.mubr.bf16.mxu0 %v499
  %943 = vmatmul.mubr.bf16.gmra.mrb[0].mxu0 %v498
  %v944 = vpop.f32.mrb[0].mxu0
  %v945 = vadd.f32 %v182, %v944
  %v946 = vpop.f32.mrb[0].mxu0
  %v947 = vpop.f32.mrb[0].mxu0
  %v948 = vadd.f32 %v182, %v947
  %v949 = vpop.f32.mrb[0].mxu0
  %950 = vmatprep.mubr.bf16.mxu0 %v503
  %951 = vmatmul.mubr.bf16.gmra.mrb[0].mxu0 %v502
  %v952 = vpop.f32.mrb[0].mxu0
  %v953 = vadd.f32 %v182, %v952
  %v954 = vpop.f32.mrb[0].mxu0
  %v955 = vpop.f32.mrb[0].mxu0
  %v956 = vadd.f32 %v182, %v955
  %v957 = vpop.f32.mrb[0].mxu0
  %958 = vmatprep.mubr.bf16.mxu0 %v507
  %959 = vmatmul.mubr.bf16.gmra.mrb[0].mxu0 %v506
  %v960 = vpop.f32.mrb[0].mxu0
  %v961 = vadd.f32 %v182, %v960
  %v962 = vpop.f32.mrb[0].mxu0
  %v963 = vpop.f32.mrb[0].mxu0
  %v964 = vadd.f32 %v182, %v963
  %v965 = vpop.f32.mrb[0].mxu0
  %966 = vmatprep.mubr.bf16.mxu0 %v511
  %967 = vmatmul.mubr.bf16.gmra.mrb[0].mxu0 %v510
  %v968 = vpop.f32.mrb[0].mxu0
  %v969 = vadd.f32 %v182, %v968
  %v970 = vpop.f32.mrb[0].mxu0
  %v971 = vpop.f32.mrb[0].mxu0
  %v972 = vadd.f32 %v182, %v971
  %v973 = vpop.f32.mrb[0].mxu0
  %974 = vmatprep.mubr.bf16.mxu0 %v515
  %975 = vmatmul.mubr.bf16.gmra.mrb[0].mxu0 %v514
  %v976 = vpop.f32.mrb[0].mxu0
  %v977 = vadd.f32 %v182, %v976
  %v978 = vpop.f32.mrb[0].mxu0
  %v979 = vpop.f32.mrb[0].mxu0
  %v980 = vadd.f32 %v182, %v979
  %v981 = vpop.f32.mrb[0].mxu0
  %982 = vmatprep.mubr.bf16.mxu0 %v519
  %983 = vmatmul.mubr.bf16.gmra.mrb[0].mxu0 %v518
  %v984 = vpop.f32.mrb[0].mxu0
  %v985 = vadd.f32 %v182, %v984
  %v986 = vpop.f32.mrb[0].mxu0
  %v987 = vpop.f32.mrb[0].mxu0
  %v988 = vadd.f32 %v182, %v987
  %v989 = vpop.f32.mrb[0].mxu0
  %990 = vmatprep.mubr.bf16.mxu0 %v523
  %991 = vmatmul.mubr.bf16.gmra.mrb[0].mxu0 %v522
  %v992 = vpop.f32.mrb[0].mxu0
  %v993 = vadd.f32 %v182, %v992
  %v994 = vpop.f32.mrb[0].mxu0
  %v995 = vpop.f32.mrb[0].mxu0
  %v996 = vadd.f32 %v182, %v995
  %v997 = vpop.f32.mrb[0].mxu0
  %998 = vmatprep.mubr.bf16.mxu0 %v527
  %999 = vmatmul.mubr.bf16.gmra.mrb[0].mxu0 %v526
  %v1000 = vpop.f32.mrb[0].mxu0
  %v1001 = vadd.f32 %v182, %v1000
  %v1002 = vpop.f32.mrb[0].mxu0
  %v1003 = vpop.f32.mrb[0].mxu0
  %v1004 = vadd.f32 %v182, %v1003
  %v1005 = vpop.f32.mrb[0].mxu0
  %1006 = vmatprep.mubr.bf16.mxu0 %v531
  %1007 = vmatmul.mubr.bf16.gmra.mrb[0].mxu0 %v530
  %v1008 = vpop.f32.mrb[0].mxu0
  %v1009 = vadd.f32 %v182, %v1008
  %v1010 = vpop.f32.mrb[0].mxu0
  %v1011 = vpop.f32.mrb[0].mxu0
  %v1012 = vadd.f32 %v182, %v1011
  %v1013 = vpop.f32.mrb[0].mxu0
  %1014 = vmatprep.mubr.bf16.mxu0 %v535
  %1015 = vmatmul.mubr.bf16.gmra.mrb[0].mxu0 %v534
  %v1016 = vpop.f32.mrb[0].mxu0
  %v1017 = vadd.f32 %v182, %v1016
  %v1018 = vpop.f32.mrb[0].mxu0
  %v1019 = vpop.f32.mrb[0].mxu0
  %v1020 = vadd.f32 %v182, %v1019
  %v1021 = vpop.f32.mrb[0].mxu0
  %1022 = vmatprep.mubr.bf16.mxu0 %v539
  %1023 = vmatmul.mubr.bf16.gmra.mrb[0].mxu0 %v538
  %v1024 = vpop.f32.mrb[0].mxu0
  %v1025 = vadd.f32 %v182, %v1024
  %v1026 = vpop.f32.mrb[0].mxu0
  %v1027 = vpop.f32.mrb[0].mxu0
  %v1028 = vadd.f32 %v182, %v1027
  %v1029 = vpop.f32.mrb[0].mxu0
  %1030 = vmatprep.mubr.bf16.mxu0 %v543
  %1031 = vmatmul.mubr.bf16.gmra.mrb[0].mxu0 %v542
  %v1032 = vpop.f32.mrb[0].mxu0
  %v1033 = vadd.f32 %v182, %v1032
  %v1034 = vpop.f32.mrb[0].mxu0
  %v1035 = vpop.f32.mrb[0].mxu0
  %v1036 = vadd.f32 %v182, %v1035
  %v1037 = vpop.f32.mrb[0].mxu0
  %1038 = vmatprep.mubr.bf16.mxu0 %v547
  %1039 = vmatmul.mubr.bf16.gmra.mrb[0].mxu0 %v546
  %v1040 = vpop.f32.mrb[0].mxu0
  %v1041 = vadd.f32 %v182, %v1040
  %v1042 = vpop.f32.mrb[0].mxu0
  %v1043 = vpop.f32.mrb[0].mxu0
  %v1044 = vadd.f32 %v182, %v1043
  %v1045 = vpop.f32.mrb[0].mxu0
  %1046 = vmatprep.mubr.bf16.mxu0 %v551
  %1047 = vmatmul.mubr.bf16.gmra.mrb[0].mxu0 %v550
  %v1048 = vpop.f32.mrb[0].mxu0
  %v1049 = vadd.f32 %v182, %v1048
  %v1050 = vpop.f32.mrb[0].mxu0
  %v1051 = vpop.f32.mrb[0].mxu0
  %v1052 = vadd.f32 %v182, %v1051
  %v1053 = vpop.f32.mrb[0].mxu0
  %1054 = vmatprep.mubr.bf16.mxu0 %v555
  %1055 = vmatmul.mubr.bf16.gmra.mrb[0].mxu0 %v554
  %v1056 = vpop.f32.mrb[0].mxu0
  %v1057 = vadd.f32 %v182, %v1056
  %v1058 = vpop.f32.mrb[0].mxu0
  %v1059 = vpop.f32.mrb[0].mxu0
  %v1060 = vadd.f32 %v182, %v1059
  %v1061 = vpop.f32.mrb[0].mxu0
  %1062 = vmatprep.mubr.bf16.mxu0 %v559
  %1063 = vmatmul.mubr.bf16.gmra.mrb[0].mxu0 %v558
  %v1064 = vpop.f32.mrb[0].mxu0
  %v1065 = vadd.f32 %v182, %v1064
  %v1066 = vpop.f32.mrb[0].mxu0
  %v1067 = vpop.f32.mrb[0].mxu0
  %v1068 = vadd.f32 %v182, %v1067
  %v1069 = vpop.f32.mrb[0].mxu0
  %1070 = vmatprep.mubr.bf16.mxu0 %v563
  %1071 = vmatmul.mubr.bf16.gmra.mrb[0].mxu0 %v562
  %v1072 = vpop.f32.mrb[0].mxu0
  %v1073 = vadd.f32 %v182, %v1072
  %v1074 = vpop.f32.mrb[0].mxu0
  %v1075 = vpop.f32.mrb[0].mxu0
  %v1076 = vadd.f32 %v182, %v1075
  %v1077 = vpop.f32.mrb[0].mxu0
  %1078 = vmatprep.mubr.bf16.mxu0 %v567
  %1079 = vmatmul.mubr.bf16.gmra.mrb[0].mxu0 %v566
  %v1080 = vpop.f32.mrb[0].mxu0
  %v1081 = vadd.f32 %v182, %v1080
  %v1082 = vpop.f32.mrb[0].mxu0
  %v1083 = vpop.f32.mrb[0].mxu0
  %v1084 = vadd.f32 %v182, %v1083
  %v1085 = vpop.f32.mrb[0].mxu0
  %1086 = vmatprep.mubr.bf16.mxu0 %v571
  %1087 = vmatmul.mubr.bf16.gmra.mrb[0].mxu0 %v570
  %v1088 = vpop.f32.mrb[0].mxu0
  %v1089 = vadd.f32 %v182, %v1088
  %v1090 = vpop.f32.mrb[0].mxu0
  %v1091 = vpop.f32.mrb[0].mxu0
  %v1092 = vadd.f32 %v182, %v1091
  %v1093 = vpop.f32.mrb[0].mxu0
  %1094 = vmatprep.mubr.bf16.mxu0 %v575
  %1095 = vmatmul.mubr.bf16.gmra.mrb[0].mxu0 %v574
  %v1096 = vpop.f32.mrb[0].mxu0
  %v1097 = vadd.f32 %v182, %v1096
  %v1098 = vpop.f32.mrb[0].mxu0
  %v1099 = vpop.f32.mrb[0].mxu0
  %v1100 = vpop.f32.mrb[0].mxu0
  %1101 = vdwg.mxu0
  %1102 = vmatprep.subr.bf16.mxu0 0
  %1103 = vmatpush1.bf16.msra.mxu0 %v822
  %1104 = vmatprep.subr.bf16.mxu0 0
  %1105 = vmatpush1.bf16.msra.mxu0 %v823
  %1106 = vmatprep.subr.bf16.mxu0 0
  %1107 = vmatpush1.bf16.msra.mxu0 %v824
  %1108 = vmatprep.subr.bf16.mxu0 0
  %1109 = vmatpush1.bf16.msra.mxu0 %v825
  %1110 = vmatprep.subr.bf16.mxu0 0
  %1111 = vmatpush1.bf16.msra.mxu0 %v826
  %1112 = vmatprep.subr.bf16.mxu0 0
  %1113 = vmatpush1.bf16.msra.mxu0 %v827
  %1114 = vmatprep.subr.bf16.mxu0 0
  %1115 = vmatpush1.bf16.msra.mxu0 %v828
  %1116 = vmatprep.subr.bf16.mxu0 0
  %1117 = vmatpush1.bf16.msra.mxu0 %v829
  %1118 = vmatprep.subr.bf16.mxu0 0
  %1119 = vmatpush1.bf16.msra.mxu0 %v830
  %1120 = vmatprep.subr.bf16.mxu0 0
  %1121 = vmatpush1.bf16.msra.mxu0 %v831
  %1122 = vmatprep.subr.bf16.mxu0 0
  %1123 = vmatpush1.bf16.msra.mxu0 %v832
  %1124 = vmatprep.subr.bf16.mxu0 0
  %1125 = vmatpush1.bf16.msra.mxu0 %v833
  %1126 = vmatprep.subr.bf16.mxu0 0
  %1127 = vmatpush1.bf16.msra.mxu0 %v834
  %1128 = vmatprep.subr.bf16.mxu0 0
  %1129 = vmatpush1.bf16.msra.mxu0 %v835
  %1130 = vmatprep.subr.bf16.mxu0 0
  %1131 = vmatpush1.bf16.msra.mxu0 %v836
  %1132 = vmatprep.subr.bf16.mxu0 0
  %1133 = vmatpush1.bf16.msra.mxu0 %v837
  %1134 = vmatprep.mubr.bf16.mxu0 %v481
  %1135 = vmatmul.mubr.bf16.gmra.mrb[0].mxu0 %v480
  %v1136 = vpop.f32.mrb[0].mxu0
  %v1137 = vadd.f32 %v905, %v1136
  %v1138 = vpop.f32.mrb[0].mxu0
  %v1139 = vpop.f32.mrb[0].mxu0
  %v1140 = vadd.f32 %v908, %v1139
  %v1141 = vpop.f32.mrb[0].mxu0
  %1142 = vmatprep.mubr.bf16.mxu0 %v485
  %1143 = vmatmul.mubr.bf16.gmra.mrb[0].mxu0 %v484
  %v1144 = vpop.f32.mrb[0].mxu0
  %v1145 = vadd.f32 %v913, %v1144
  %v1146 = vpop.f32.mrb[0].mxu0
  %v1147 = vpop.f32.mrb[0].mxu0
  %v1148 = vadd.f32 %v916, %v1147
  %v1149 = vpop.f32.mrb[0].mxu0
  %1150 = vmatprep.mubr.bf16.mxu0 %v489
  %1151 = vmatmul.mubr.bf16.gmra.mrb[0].mxu0 %v488
  %v1152 = vpop.f32.mrb[0].mxu0
  %v1153 = vadd.f32 %v921, %v1152
  %v1154 = vpop.f32.mrb[0].mxu0
  %v1155 = vpop.f32.mrb[0].mxu0
  %v1156 = vadd.f32 %v924, %v1155
  %v1157 = vpop.f32.mrb[0].mxu0
  %1158 = vmatprep.mubr.bf16.mxu0 %v493
  %1159 = vmatmul.mubr.bf16.gmra.mrb[0].mxu0 %v492
  %v1160 = vpop.f32.mrb[0].mxu0
  %v1161 = vadd.f32 %v929, %v1160
  %v1162 = vpop.f32.mrb[0].mxu0
  %v1163 = vpop.f32.mrb[0].mxu0
  %v1164 = vadd.f32 %v932, %v1163
  %v1165 = vpop.f32.mrb[0].mxu0
  %1166 = vmatprep.mubr.bf16.mxu0 %v497
  %1167 = vmatmul.mubr.bf16.gmra.mrb[0].mxu0 %v496
  %v1168 = vpop.f32.mrb[0].mxu0
  %v1169 = vadd.f32 %v937, %v1168
  %v1170 = vpop.f32.mrb[0].mxu0
  %v1171 = vpop.f32.mrb[0].mxu0
  %v1172 = vadd.f32 %v940, %v1171
  %v1173 = vpop.f32.mrb[0].mxu0
  %1174 = vmatprep.mubr.bf16.mxu0 %v501
  %1175 = vmatmul.mubr.bf16.gmra.mrb[0].mxu0 %v500
  %v1176 = vpop.f32.mrb[0].mxu0
  %v1177 = vadd.f32 %v945, %v1176
  %v1178 = vpop.f32.mrb[0].mxu0
  %v1179 = vpop.f32.mrb[0].mxu0
  %v1180 = vadd.f32 %v948, %v1179
  %v1181 = vpop.f32.mrb[0].mxu0
  %1182 = vmatprep.mubr.bf16.mxu0 %v505
  %1183 = vmatmul.mubr.bf16.gmra.mrb[0].mxu0 %v504
  %v1184 = vpop.f32.mrb[0].mxu0
  %v1185 = vadd.f32 %v953, %v1184
  %v1186 = vpop.f32.mrb[0].mxu0
  %v1187 = vpop.f32.mrb[0].mxu0
  %v1188 = vadd.f32 %v956, %v1187
  %v1189 = vpop.f32.mrb[0].mxu0
  %1190 = vmatprep.mubr.bf16.mxu0 %v509
  %1191 = vmatmul.mubr.bf16.gmra.mrb[0].mxu0 %v508
  %v1192 = vpop.f32.mrb[0].mxu0
  %v1193 = vadd.f32 %v961, %v1192
  %v1194 = vpop.f32.mrb[0].mxu0
  %v1195 = vpop.f32.mrb[0].mxu0
  %v1196 = vadd.f32 %v964, %v1195
  %v1197 = vpop.f32.mrb[0].mxu0
  %1198 = vmatprep.mubr.bf16.mxu0 %v513
  %1199 = vmatmul.mubr.bf16.gmra.mrb[0].mxu0 %v512
  %v1200 = vpop.f32.mrb[0].mxu0
  %v1201 = vadd.f32 %v969, %v1200
  %v1202 = vpop.f32.mrb[0].mxu0
  %v1203 = vpop.f32.mrb[0].mxu0
  %v1204 = vadd.f32 %v972, %v1203
  %v1205 = vpop.f32.mrb[0].mxu0
  %1206 = vmatprep.mubr.bf16.mxu0 %v517
  %1207 = vmatmul.mubr.bf16.gmra.mrb[0].mxu0 %v516
  %v1208 = vpop.f32.mrb[0].mxu0
  %v1209 = vadd.f32 %v977, %v1208
  %v1210 = vpop.f32.mrb[0].mxu0
  %v1211 = vpop.f32.mrb[0].mxu0
  %v1212 = vadd.f32 %v980, %v1211
  %v1213 = vpop.f32.mrb[0].mxu0
  %1214 = vmatprep.mubr.bf16.mxu0 %v521
  %1215 = vmatmul.mubr.bf16.gmra.mrb[0].mxu0 %v520
  %v1216 = vpop.f32.mrb[0].mxu0
  %v1217 = vadd.f32 %v985, %v1216
  %v1218 = vpop.f32.mrb[0].mxu0
  %v1219 = vpop.f32.mrb[0].mxu0
  %v1220 = vadd.f32 %v988, %v1219
  %v1221 = vpop.f32.mrb[0].mxu0
  %1222 = vmatprep.mubr.bf16.mxu0 %v525
  %1223 = vmatmul.mubr.bf16.gmra.mrb[0].mxu0 %v524
  %v1224 = vpop.f32.mrb[0].mxu0
  %v1225 = vadd.f32 %v993, %v1224
  %v1226 = vpop.f32.mrb[0].mxu0
  %v1227 = vpop.f32.mrb[0].mxu0
  %v1228 = vadd.f32 %v996, %v1227
  %v1229 = vpop.f32.mrb[0].mxu0
  %1230 = vmatprep.mubr.bf16.mxu0 %v529
  %1231 = vmatmul.mubr.bf16.gmra.mrb[0].mxu0 %v528
  %v1232 = vpop.f32.mrb[0].mxu0
  %v1233 = vadd.f32 %v1001, %v1232
  %v1234 = vpop.f32.mrb[0].mxu0
  %v1235 = vpop.f32.mrb[0].mxu0
  %v1236 = vadd.f32 %v1004, %v1235
  %v1237 = vpop.f32.mrb[0].mxu0
  %1238 = vmatprep.mubr.bf16.mxu0 %v533
  %1239 = vmatmul.mubr.bf16.gmra.mrb[0].mxu0 %v532
  %v1240 = vpop.f32.mrb[0].mxu0
  %v1241 = vadd.f32 %v1009, %v1240
  %v1242 = vpop.f32.mrb[0].mxu0
  %v1243 = vpop.f32.mrb[0].mxu0
  %v1244 = vadd.f32 %v1012, %v1243
  %v1245 = vpop.f32.mrb[0].mxu0
  %1246 = vmatprep.mubr.bf16.mxu0 %v537
  %1247 = vmatmul.mubr.bf16.gmra.mrb[0].mxu0 %v536
  %v1248 = vpop.f32.mrb[0].mxu0
  %v1249 = vadd.f32 %v1017, %v1248
  %v1250 = vpop.f32.mrb[0].mxu0
  %v1251 = vpop.f32.mrb[0].mxu0
  %v1252 = vadd.f32 %v1020, %v1251
  %v1253 = vpop.f32.mrb[0].mxu0
  %1254 = vmatprep.mubr.bf16.mxu0 %v541
  %1255 = vmatmul.mubr.bf16.gmra.mrb[0].mxu0 %v540
  %v1256 = vpop.f32.mrb[0].mxu0
  %v1257 = vadd.f32 %v1025, %v1256
  %v1258 = vpop.f32.mrb[0].mxu0
  %v1259 = vpop.f32.mrb[0].mxu0
  %v1260 = vadd.f32 %v1028, %v1259
  %v1261 = vpop.f32.mrb[0].mxu0
  %1262 = vmatprep.mubr.bf16.mxu0 %v545
  %1263 = vmatmul.mubr.bf16.gmra.mrb[0].mxu0 %v544
  %v1264 = vpop.f32.mrb[0].mxu0
  %v1265 = vadd.f32 %v1033, %v1264
  %v1266 = vpop.f32.mrb[0].mxu0
  %v1267 = vpop.f32.mrb[0].mxu0
  %v1268 = vadd.f32 %v1036, %v1267
  %v1269 = vpop.f32.mrb[0].mxu0
  %1270 = vmatprep.mubr.bf16.mxu0 %v549
  %1271 = vmatmul.mubr.bf16.gmra.mrb[0].mxu0 %v548
  %v1272 = vpop.f32.mrb[0].mxu0
  %v1273 = vadd.f32 %v1041, %v1272
  %v1274 = vpop.f32.mrb[0].mxu0
  %v1275 = vpop.f32.mrb[0].mxu0
  %v1276 = vadd.f32 %v1044, %v1275
  %v1277 = vpop.f32.mrb[0].mxu0
  %1278 = vmatprep.mubr.bf16.mxu0 %v553
  %1279 = vmatmul.mubr.bf16.gmra.mrb[0].mxu0 %v552
  %v1280 = vpop.f32.mrb[0].mxu0
  %v1281 = vadd.f32 %v1049, %v1280
  %v1282 = vpop.f32.mrb[0].mxu0
  %v1283 = vpop.f32.mrb[0].mxu0
  %v1284 = vadd.f32 %v1052, %v1283
  %v1285 = vpop.f32.mrb[0].mxu0
  %1286 = vmatprep.mubr.bf16.mxu0 %v557
  %1287 = vmatmul.mubr.bf16.gmra.mrb[0].mxu0 %v556
  %v1288 = vpop.f32.mrb[0].mxu0
  %v1289 = vadd.f32 %v1057, %v1288
  %v1290 = vpop.f32.mrb[0].mxu0
  %v1291 = vpop.f32.mrb[0].mxu0
  %v1292 = vadd.f32 %v1060, %v1291
  %v1293 = vpop.f32.mrb[0].mxu0
  %1294 = vmatprep.mubr.bf16.mxu0 %v561
  %1295 = vmatmul.mubr.bf16.gmra.mrb[0].mxu0 %v560
  %v1296 = vpop.f32.mrb[0].mxu0
  %v1297 = vadd.f32 %v1065, %v1296
  %v1298 = vpop.f32.mrb[0].mxu0
  %v1299 = vpop.f32.mrb[0].mxu0
  %v1300 = vadd.f32 %v1068, %v1299
  %v1301 = vpop.f32.mrb[0].mxu0
  %1302 = vmatprep.mubr.bf16.mxu0 %v565
  %1303 = vmatmul.mubr.bf16.gmra.mrb[0].mxu0 %v564
  %v1304 = vpop.f32.mrb[0].mxu0
  %v1305 = vadd.f32 %v1073, %v1304
  %v1306 = vpop.f32.mrb[0].mxu0
  %v1307 = vpop.f32.mrb[0].mxu0
  %v1308 = vadd.f32 %v1076, %v1307
  %v1309 = vpop.f32.mrb[0].mxu0
  %1310 = vmatprep.mubr.bf16.mxu0 %v569
  %1311 = vmatmul.mubr.bf16.gmra.mrb[0].mxu0 %v568
  %v1312 = vpop.f32.mrb[0].mxu0
  %v1313 = vadd.f32 %v1081, %v1312
  %v1314 = vpop.f32.mrb[0].mxu0
  %v1315 = vpop.f32.mrb[0].mxu0
  %v1316 = vadd.f32 %v1084, %v1315
  %v1317 = vpop.f32.mrb[0].mxu0
  %1318 = vmatprep.mubr.bf16.mxu0 %v573
  %1319 = vmatmul.mubr.bf16.gmra.mrb[0].mxu0 %v572
  %v1320 = vpop.f32.mrb[0].mxu0
  %v1321 = vadd.f32 %v1089, %v1320
  %v1322 = vpop.f32.mrb[0].mxu0
  %v1323 = vpop.f32.mrb[0].mxu0
  %v1324 = vadd.f32 %v1092, %v1323
  %v1325 = vpop.f32.mrb[0].mxu0
  %1326 = vmatprep.mubr.bf16.mxu0 %v577
  %1327 = vmatmul.mubr.bf16.gmra.mrb[0].mxu0 %v576
  %v1328 = vpop.f32.mrb[0].mxu0
  %v1329 = vadd.f32 %v1097, %v1328
  %v1330 = vpop.f32.mrb[0].mxu0
  %v1331 = vpop.f32.mrb[0].mxu0
  %v1332 = vpop.f32.mrb[0].mxu0
  %1333 = vdwg.mxu0
  %v1334 = vmax.f32 %v1137, 0.0
  %v1335 = vmax.f32 %v1140, 0.0
  %v1336 = vmax.f32 %v1145, 0.0
  %v1337 = vmax.f32 %v1148, 0.0
  %v1338 = vmax.f32 %v1153, 0.0
  %v1339 = vmax.f32 %v1156, 0.0
  %v1340 = vmax.f32 %v1161, 0.0
  %v1341 = vmax.f32 %v1164, 0.0
  %v1342 = vmax.f32 %v1169, 0.0
  %v1343 = vmax.f32 %v1172, 0.0
  %v1344 = vmax.f32 %v1177, 0.0
  %v1345 = vmax.f32 %v1180, 0.0
  %v1346 = vmax.f32 %v1185, 0.0
  %v1347 = vmax.f32 %v1188, 0.0
  %v1348 = vmax.f32 %v1193, 0.0
  %v1349 = vmax.f32 %v1196, 0.0
  %v1350 = vmax.f32 %v1201, 0.0
  %v1351 = vmax.f32 %v1204, 0.0
  %v1352 = vmax.f32 %v1209, 0.0
  %v1353 = vmax.f32 %v1212, 0.0
  %v1354 = vmax.f32 %v1217, 0.0
  %v1355 = vmax.f32 %v1220, 0.0
  %v1356 = vmax.f32 %v1225, 0.0
  %v1357 = vmax.f32 %v1228, 0.0
  %v1358 = vmax.f32 %v1233, 0.0
  %v1359 = vmax.f32 %v1236, 0.0
  %v1360 = vmax.f32 %v1241, 0.0
  %v1361 = vmax.f32 %v1244, 0.0
  %v1362 = vmax.f32 %v1249, 0.0
  %v1363 = vmax.f32 %v1252, 0.0
  %v1364 = vmax.f32 %v1257, 0.0
  %v1365 = vmax.f32 %v1260, 0.0
  %v1366 = vmax.f32 %v1265, 0.0
  %v1367 = vmax.f32 %v1268, 0.0
  %v1368 = vmax.f32 %v1273, 0.0
  %v1369 = vmax.f32 %v1276, 0.0
  %v1370 = vmax.f32 %v1281, 0.0
  %v1371 = vmax.f32 %v1284, 0.0
  %v1372 = vmax.f32 %v1289, 0.0
  %v1373 = vmax.f32 %v1292, 0.0
  %v1374 = vmax.f32 %v1297, 0.0
  %v1375 = vmax.f32 %v1300, 0.0
  %v1376 = vmax.f32 %v1305, 0.0
  %v1377 = vmax.f32 %v1308, 0.0
  %v1378 = vmax.f32 %v1313, 0.0
  %v1379 = vmax.f32 %v1316, 0.0
  %v1380 = vmax.f32 %v1321, 0.0
  %v1381 = vmax.f32 %v1324, 0.0
  %v1382 = vmax.f32 %v1329, 0.0
  %v1383 = vpack.c.bf16 %v1335, %v1334
  %v1384 = vpack.c.bf16 %v1337, %v1336
  %v1385 = vpack.c.bf16 %v1339, %v1338
  %v1386 = vpack.c.bf16 %v1341, %v1340
  %v1387 = vpack.c.bf16 %v1343, %v1342
  %v1388 = vpack.c.bf16 %v1345, %v1344
  %v1389 = vpack.c.bf16 %v1347, %v1346
  %v1390 = vpack.c.bf16 %v1349, %v1348
  %v1391 = vpack.c.bf16 %v1351, %v1350
  %v1392 = vpack.c.bf16 %v1353, %v1352
  %v1393 = vpack.c.bf16 %v1355, %v1354
  %v1394 = vpack.c.bf16 %v1357, %v1356
  %v1395 = vpack.c.bf16 %v1359, %v1358
  %v1396 = vpack.c.bf16 %v1361, %v1360
  %v1397 = vpack.c.bf16 %v1363, %v1362
  %v1398 = vpack.c.bf16 %v1365, %v1364
  %v1399 = vpack.c.bf16 %v1367, %v1366
  %v1400 = vpack.c.bf16 %v1369, %v1368
  %v1401 = vpack.c.bf16 %v1371, %v1370
  %v1402 = vpack.c.bf16 %v1373, %v1372
  %v1403 = vpack.c.bf16 %v1375, %v1374
  %v1404 = vpack.c.bf16 %v1377, %v1376
  %v1405 = vpack.c.bf16 %v1379, %v1378
  %v1406 = vpack.c.bf16 %v1381, %v1380
  %v1407 = vpack.c.bf16 %v1382, %v1382
  %v1433 = vunpack.c.l.b16 %v1383
  %v1434 = vunpack.c.h.b16 %v1383
  %v1435 = vunpack.c.l.b16 %v1384
  %v1436 = vunpack.c.h.b16 %v1384
  %v1437 = vunpack.c.l.b16 %v1385
  %v1438 = vunpack.c.h.b16 %v1385
  %v1439 = vunpack.c.l.b16 %v1386
  %v1440 = vunpack.c.h.b16 %v1386
  %v1441 = vunpack.c.l.b16 %v1387
  %v1442 = vunpack.c.h.b16 %v1387
  %v1443 = vunpack.c.l.b16 %v1388
  %v1444 = vunpack.c.h.b16 %v1388
  %v1445 = vunpack.c.l.b16 %v1389
  %v1446 = vunpack.c.h.b16 %v1389
  %v1447 = vunpack.c.l.b16 %v1390
  %v1448 = vunpack.c.h.b16 %v1390
  %v1449 = vunpack.c.l.b16 %v1391
  %v1450 = vunpack.c.h.b16 %v1391
  %v1451 = vunpack.c.l.b16 %v1392
  %v1452 = vunpack.c.h.b16 %v1392
  %v1453 = vunpack.c.l.b16 %v1393
  %v1454 = vunpack.c.h.b16 %v1393
  %v1455 = vunpack.c.l.b16 %v1394
  %v1456 = vunpack.c.h.b16 %v1394
  %v1457 = vunpack.c.l.b16 %v1395
  %v1458 = vunpack.c.h.b16 %v1395
  %v1459 = vunpack.c.l.b16 %v1396
  %v1460 = vunpack.c.h.b16 %v1396
  %v1461 = vunpack.c.l.b16 %v1397
  %v1462 = vunpack.c.h.b16 %v1397
  %v1463 = vunpack.c.l.b16 %v1398
  %v1464 = vunpack.c.h.b16 %v1398
  %v1465 = vunpack.c.l.b16 %v1399
  %v1466 = vunpack.c.h.b16 %v1399
  %v1467 = vunpack.c.l.b16 %v1400
  %v1468 = vunpack.c.h.b16 %v1400
  %v1469 = vunpack.c.l.b16 %v1401
  %v1470 = vunpack.c.h.b16 %v1401
  %v1471 = vunpack.c.l.b16 %v1402
  %v1472 = vunpack.c.h.b16 %v1402
  %v1473 = vunpack.c.l.b16 %v1403
  %v1474 = vunpack.c.h.b16 %v1403
  %v1475 = vunpack.c.l.b16 %v1404
  %v1476 = vunpack.c.h.b16 %v1404
  %v1477 = vunpack.c.l.b16 %v1405
  %v1478 = vunpack.c.h.b16 %v1405
  %v1479 = vunpack.c.l.b16 %v1406
  %v1480 = vunpack.c.h.b16 %v1406
  %v1481 = vunpack.c.l.b16 %v1407
  %v1482 = vpack.c.b16 %v1433, %v1433
  %v1483 = vpack.c.b16 %v1434, %v1434
  %v1484 = vpack.c.b16 %v1435, %v1435
  %v1485 = vpack.c.b16 %v1436, %v1436
  %v1486 = vpack.c.b16 %v1437, %v1437
  %v1487 = vpack.c.b16 %v1438, %v1438
  %v1488 = vpack.c.b16 %v1439, %v1439
  %v1489 = vpack.c.b16 %v1440, %v1440
  %v1490 = vpack.c.b16 %v1441, %v1441
  %v1491 = vpack.c.b16 %v1442, %v1442
  %v1492 = vpack.c.b16 %v1443, %v1443
  %v1493 = vpack.c.b16 %v1444, %v1444
  %v1494 = vpack.c.b16 %v1445, %v1445
  %v1495 = vpack.c.b16 %v1446, %v1446
  %v1496 = vpack.c.b16 %v1447, %v1447
  %v1497 = vpack.c.b16 %v1448, %v1448
  %v1498 = vpack.c.b16 %v1449, %v1449
  %v1499 = vpack.c.b16 %v1450, %v1450
  %v1500 = vpack.c.b16 %v1451, %v1451
  %v1501 = vpack.c.b16 %v1452, %v1452
  %v1502 = vpack.c.b16 %v1453, %v1453
  %v1503 = vpack.c.b16 %v1454, %v1454
  %v1504 = vpack.c.b16 %v1455, %v1455
  %v1505 = vpack.c.b16 %v1456, %v1456
  %v1506 = vpack.c.b16 %v1457, %v1457
  %v1507 = vpack.c.b16 %v1458, %v1458
  %v1508 = vpack.c.b16 %v1459, %v1459
  %v1509 = vpack.c.b16 %v1460, %v1460
  %v1510 = vpack.c.b16 %v1461, %v1461
  %v1511 = vpack.c.b16 %v1462, %v1462
  %v1512 = vpack.c.b16 %v1463, %v1463
  %v1513 = vpack.c.b16 %v1464, %v1464
  %v1514 = vpack.c.b16 %v1465, %v1465
  %v1515 = vpack.c.b16 %v1466, %v1466
  %v1516 = vpack.c.b16 %v1467, %v1467
  %v1517 = vpack.c.b16 %v1468, %v1468
  %v1518 = vpack.c.b16 %v1469, %v1469
  %v1519 = vpack.c.b16 %v1470, %v1470
  %v1520 = vpack.c.b16 %v1471, %v1471
  %v1521 = vpack.c.b16 %v1472, %v1472
  %v1522 = vpack.c.b16 %v1473, %v1473
  %v1523 = vpack.c.b16 %v1474, %v1474
  %v1524 = vpack.c.b16 %v1475, %v1475
  %v1525 = vpack.c.b16 %v1476, %v1476
  %v1526 = vpack.c.b16 %v1477, %v1477
  %v1527 = vpack.c.b16 %v1478, %v1478
  %v1528 = vpack.c.b16 %v1479, %v1479
  %v1529 = vpack.c.b16 %v1480, %v1480
  %v1530 = vpack.c.b16 %v1481, %v1481
  %1580 = vst [vmem:[%s3] sm:$0xf] %v1482
  %1581 = vst [vmem:[%s3 + $0x4] sm:$0xf] %v1483
  %1582 = vst [vmem:[%s3 + $0x8] sm:$0xf] %v1484
  %1583 = vst [vmem:[%s3 + $0xc] sm:$0xf] %v1485
  %1584 = vst [vmem:[%s3 + $0x10] sm:$0xf] %v1486
  %1585 = vst [vmem:[%s3 + $0x14] sm:$0xf] %v1487
  %1586 = vst [vmem:[%s3 + $0x18] sm:$0xf] %v1488
  %1587 = vst [vmem:[%s3 + $0x1c] sm:$0xf] %v1489
  %1588 = vst [vmem:[%s3 + $0x20] sm:$0xf] %v1490
  %1589 = vst [vmem:[%s3 + $0x24] sm:$0xf] %v1491
  %1590 = vst [vmem:[%s3 + $0x28] sm:$0xf] %v1492
  %1591 = vst [vmem:[%s3 + $0x2c] sm:$0xf] %v1493
  %1592 = vst [vmem:[%s3 + $0x30] sm:$0xf] %v1494
  %1593 = vst [vmem:[%s3 + $0x34] sm:$0xf] %v1495
  %1594 = vst [vmem:[%s3 + $0x38] sm:$0xf] %v1496
  %1595 = vst [vmem:[%s3 + $0x3c] sm:$0xf] %v1497
  %1596 = vst [vmem:[%s3 + $0x40] sm:$0xf] %v1498
  %1597 = vst [vmem:[%s3 + $0x44] sm:$0xf] %v1499
  %1598 = vst [vmem:[%s3 + $0x48] sm:$0xf] %v1500
  %1599 = vst [vmem:[%s3 + $0x4c] sm:$0xf] %v1501
  %1600 = vst [vmem:[%s3 + $0x50] sm:$0xf] %v1502
  %1601 = vst [vmem:[%s3 + $0x54] sm:$0xf] %v1503
  %1602 = vst [vmem:[%s3 + $0x58] sm:$0xf] %v1504
  %1603 = vst [vmem:[%s3 + $0x5c] sm:$0xf] %v1505
  %1604 = vst [vmem:[%s3 + $0x60] sm:$0xf] %v1506
  %1605 = vst [vmem:[%s3 + $0x64] sm:$0xf] %v1507
  %1606 = vst [vmem:[%s3 + $0x68] sm:$0xf] %v1508
  %1607 = vst [vmem:[%s3 + $0x6c] sm:$0xf] %v1509
  %1608 = vst [vmem:[%s3 + $0x70] sm:$0xf] %v1510
  %1609 = vst [vmem:[%s3 + $0x74] sm:$0xf] %v1511
  %1610 = vst [vmem:[%s3 + $0x78] sm:$0xf] %v1512
  %1611 = vst [vmem:[%s3 + $0x7c] sm:$0xf] %v1513
  %1612 = vst [vmem:[%s3 + $0x80] sm:$0xf] %v1514
  %1613 = vst [vmem:[%s3 + $0x84] sm:$0xf] %v1515
  %1614 = vst [vmem:[%s3 + $0x88] sm:$0xf] %v1516
  %1615 = vst [vmem:[%s3 + $0x8c] sm:$0xf] %v1517
  %1616 = vst [vmem:[%s3 + $0x90] sm:$0xf] %v1518
  %1617 = vst [vmem:[%s3 + $0x94] sm:$0xf] %v1519
  %1618 = vst [vmem:[%s3 + $0x98] sm:$0xf] %v1520
  %1619 = vst [vmem:[%s3 + $0x9c] sm:$0xf] %v1521
  %1620 = vst [vmem:[%s3 + $0xa0] sm:$0xf] %v1522
  %1621 = vst [vmem:[%s3 + $0xa4] sm:$0xf] %v1523
  %1622 = vst [vmem:[%s3 + $0xa8] sm:$0xf] %v1524
  %1623 = vst [vmem:[%s3 + $0xac] sm:$0xf] %v1525
  %1624 = vst [vmem:[%s3 + $0xb0] sm:$0xf] %v1526
  %1625 = vst [vmem:[%s3 + $0xb4] sm:$0xf] %v1527
  %1626 = vst [vmem:[%s3 + $0xb8] sm:$0xf] %v1528
  %1627 = vst [vmem:[%s3 + $0xbc] sm:$0xf] %v1529
  %1628 = vst [vmem:[%s3 + $0xc0] sm:$0xf] %v1530
  // Predicated region
  $region14: #{autoencoder_forward.8} parent=0 // pred_check
    _
  $region15: #{autoencoder_forward.8} parent=0 // pred_check_branch
    %1630 = sbr.rel (0) target = $region17
  $region16: #{autoencoder_forward.8} parent=0 // pred_region
    _
  $region17: #{autoencoder_forward.8} parent=0 // pred_fallthru
    _
  // Predicated region
  $region18: #{autoencoder_forward.8} parent=0 // pred_check
    _
  $region19: #{autoencoder_forward.8} parent=0 // pred_check_branch
    %1632 = sbr.rel (0) target = $region21
  $region20: #{autoencoder_forward.8} parent=0 // pred_region
    _
  $region21: #{autoencoder_forward.8} parent=0 // pred_fallthru
    _

// kernel: autoencoder_forward.9
$region0: #{autoencoder_forward.9}
  #allocation0 [shape = 'u32[]', space=smem, size = 0x4, offset = 0x4, fixed_abs, tag = 'smem constant byte address 0x4 - core index']
  #allocation1 [shape = 'u32[144,128]{1,0:T(1,128)}', space=vmem, size = 0x12000, scoped, tag = 'internal scratch']
  %s0 = inlined_call_operand.vmem [shape: bf16[1568,256], index: 0, kind: input, shape index: {}]
  %s1 = inlined_call_operand.vmem [shape: bf16[256,128], index: 1, kind: input, shape index: {}]
  %s2 = inlined_call_operand.vmem [shape: f32[1,128], index: 2, kind: input, shape index: {}]
  %s3 = inlined_call_operand.vmem [shape: f32[1568,128], index: 3, kind: output, shape index: {}]
  %s4 = sld [smem:[#allocation0]]
  $region45: #{autoencoder_forward.9} parent=0
    _
  %s6 = ssub.s32 1, %s4
  %s7 = scalar_select 0, %s6, %s4
  loop: start=0, step=1, limit=9
  $region2: #{autoencoder_forward.9} parent=0 // loop_pre_header
    _
  $region3: #{autoencoder_forward.9} parent=0 // loop_header
    %s9 = sphi 0, %s13
    %p10 = scmp.ge.s32.totalorder %s9, 9
    %s19 = sphi 0, %s21
    %s22 = sphi 0, %s19
    %s23 = sphi 0, %s22
    %s39 = sphi 0, %s23
    %s43 = sphi 0, %s43
    %s45 = sphi 0, %s43
    %s46 = sphi 0, %s45
    %s60 = sphi 0, %s46
    %s64 = sphi 0, %s64
    %s66 = sphi 0, %s64
    %s67 = sphi 0, %s66
    %s81 = sphi 0, %s67
    %s87 = sphi 0, %s89
    %s90 = sphi 0, %s87
    %s91 = sphi 0, %s90
    %s107 = sphi 0, %s91
  $region4: #{autoencoder_forward.9} parent=0 // loop_header_branch
    %12 = sbr.rel (%p10) target = $region8
  $region5: #{autoencoder_forward.9} parent=0 // loop_body
    %s14 = ssub.s32 %s9, 1
    %s15 = ssub.s32 %s9, 2
    %s16 = sadd.s32 %s9, 1
    %s17 = ssub.s32 %s9, %s16
    %p18 = scmp.eq.s32.totalorder %s17, 0
    %s20 = sadd.s32 %s19, 1
    %s21 = scalar_select %p18, %s19, %s20
    %p24 = pneg %p18
    %p25 = scmp.eq.s32.totalorder %s9, 6
    %p26 = por %p24, %p25
    %p27 = scmp.ne.s32.totalorder %s19, %s22
    %p28 = scmp.eq.s32.totalorder %s9, 0
    %p29 = por %p27, %p28
    %p30 = scmp.ne.s32.totalorder %s19, %s22
    %p31 = scmp.eq.s32.totalorder %s14, 6
    %p32 = por %p30, %p31
    %p33 = scmp.ne.s32.totalorder %s22, %s23
    %p34 = scmp.eq.s32.totalorder %s14, 0
    %p35 = por %p33, %p34
    %p36 = scmp.ne.s32.totalorder %s22, %s23
    %p37 = scmp.eq.s32.totalorder %s15, 6
    %p38 = por %p36, %p37
    %p40 = scmp.ne.s32.totalorder %s23, %s39
    %p41 = scmp.eq.s32.totalorder %s15, 0
    %p42 = por %p40, %p41
    %s44 = sadd.s32 %s43, 1
    %p47 = scmp.eq.s32.totalorder %s9, 6
    %p48 = scmp.ne.s32.totalorder %s43, %s45
    %p49 = scmp.eq.s32.totalorder %s9, 0
    %p50 = por %p48, %p49
    %p51 = scmp.ne.s32.totalorder %s43, %s45
    %p52 = scmp.eq.s32.totalorder %s14, 6
    %p53 = por %p51, %p52
    %p54 = scmp.ne.s32.totalorder %s45, %s46
    %p55 = scmp.eq.s32.totalorder %s14, 0
    %p56 = por %p54, %p55
    %p57 = scmp.ne.s32.totalorder %s45, %s46
    %p58 = scmp.eq.s32.totalorder %s15, 6
    %p59 = por %p57, %p58
    %p61 = scmp.ne.s32.totalorder %s46, %s60
    %p62 = scmp.eq.s32.totalorder %s15, 0
    %p63 = por %p61, %p62
    %s65 = sadd.s32 %s64, 1
    %p68 = scmp.eq.s32.totalorder %s9, 6
    %p69 = scmp.ne.s32.totalorder %s64, %s66
    %p70 = scmp.eq.s32.totalorder %s9, 0
    %p71 = por %p69, %p70
    %p72 = scmp.ne.s32.totalorder %s64, %s66
    %p73 = scmp.eq.s32.totalorder %s14, 6
    %p74 = por %p72, %p73
    %p75 = scmp.ne.s32.totalorder %s66, %s67
    %p76 = scmp.eq.s32.totalorder %s14, 0
    %p77 = por %p75, %p76
    %p78 = scmp.ne.s32.totalorder %s66, %s67
    %p79 = scmp.eq.s32.totalorder %s15, 6
    %p80 = por %p78, %p79
    %p82 = scmp.ne.s32.totalorder %s67, %s81
    %p83 = scmp.eq.s32.totalorder %s15, 0
    %p84 = por %p82, %p83
    %s85 = ssub.s32 %s9, %s16
    %p86 = scmp.eq.s32.totalorder %s85, 0
    %s88 = sadd.s32 %s87, 1
    %s89 = scalar_select %p86, %s87, %s88
    %p92 = pneg %p86
    %p93 = scmp.eq.s32.totalorder %s9, 6
    %p94 = por %p92, %p93
    %p95 = scmp.ne.s32.totalorder %s87, %s90
    %p96 = scmp.eq.s32.totalorder %s9, 0
    %p97 = por %p95, %p96
    %p98 = scmp.ne.s32.totalorder %s87, %s90
    %p99 = scmp.eq.s32.totalorder %s14, 6
    %p100 = por %p98, %p99
    %p101 = scmp.ne.s32.totalorder %s90, %s91
    %p102 = scmp.eq.s32.totalorder %s14, 0
    %p103 = por %p101, %p102
    %p104 = scmp.ne.s32.totalorder %s90, %s91
    %p105 = scmp.eq.s32.totalorder %s15, 6
    %p106 = por %p104, %p105
    %p108 = scmp.ne.s32.totalorder %s91, %s107
    %p109 = scmp.eq.s32.totalorder %s15, 0
    %p110 = por %p108, %p109
    %p111 = scmp.le.s32.totalorder 1, %s9
    %p112 = scmp.lt.s32.totalorder %s9, 8
    %p113 = pnand %p111, %p112
    %p114 = pneg %p113
    // Predicated region
    $region9: #{autoencoder_forward.9} parent=5 // pred_check
      _
    $region10: #{autoencoder_forward.9} parent=5 // pred_check_branch
      %116 = sbr.rel (%p113) target = $region12
    $region11: #{autoencoder_forward.9} parent=5 // pred_region
      %s117 = ssub.s32 %s9, 1
      // Predicated region
      $region13: #{autoencoder_forward.9} parent=11 // pred_check
        %p118 = pneg %p56
      $region14: #{autoencoder_forward.9} parent=11 // pred_check_branch
        %120 = sbr.rel (%p118) target = $region16
      $region15: #{autoencoder_forward.9} parent=11 // pred_region
        _
      $region16: #{autoencoder_forward.9} parent=11 // pred_fallthru
        _
      // Predicated region
      $region17: #{autoencoder_forward.9} parent=11 // pred_check
        %p121 = pneg %p77
      $region18: #{autoencoder_forward.9} parent=11 // pred_check_branch
        %123 = sbr.rel (%p121) target = $region20
      $region19: #{autoencoder_forward.9} parent=11 // pred_region
        _
      $region20: #{autoencoder_forward.9} parent=11 // pred_fallthru
        _
    $region12: #{autoencoder_forward.9} parent=5 // pred_fallthru
      _
    %p124 = scmp.lt.s32.totalorder %s9, 7
    // Predicated region
    $region21: #{autoencoder_forward.9} parent=5 // pred_check
      %p125 = pneg %p124
    $region22: #{autoencoder_forward.9} parent=5 // pred_check_branch
      %127 = sbr.rel (%p125) target = $region24
    $region23: #{autoencoder_forward.9} parent=5 // pred_region
      // Predicated region
      $region25: #{autoencoder_forward.9} parent=23 // pred_check
        %p128 = pneg %p29
      $region26: #{autoencoder_forward.9} parent=23 // pred_check_branch
        %130 = sbr.rel (%p128) target = $region28
      $region27: #{autoencoder_forward.9} parent=23 // pred_region
        %s131 = smul.u32 28, %s9
        %p132 = scmp.lt.s32.totalorder %s131, 195
        %s133 = scalar_select %p132, %s131, 195
        %s134 = smul.addr %s133, 2
        %s135 = smul.addr %s134, 4
        %s136 = scalar_lea.vmem %s0, %s135
        %s137 = smul.u32 28, %s9
      $region28: #{autoencoder_forward.9} parent=23 // pred_fallthru
        _
    $region24: #{autoencoder_forward.9} parent=5 // pred_fallthru
      _
    %p138 = scmp.le.s32.totalorder 1, %s9
    %p139 = scmp.lt.s32.totalorder %s9, 8
    %p140 = pnand %p138, %p139
    %p141 = pneg %p140
    // Predicated region
    $region29: #{autoencoder_forward.9} parent=5 // pred_check
      _
    $region30: #{autoencoder_forward.9} parent=5 // pred_check_branch
      %143 = sbr.rel (%p140) target = $region32
    $region31: #{autoencoder_forward.9} parent=5 // pred_region
      %s144 = ssub.s32 %s9, 1
      %s145 = smul.u32 28, %s14
      %p146 = scmp.lt.s32.totalorder %s145, 195
      %s147 = scalar_select %p146, %s145, 195
      %s148 = smul.addr %s147, 2
      %s149 = smul.addr %s148, 4
      %s150 = scalar_lea.vmem %s0, %s149
      %p151 = pneg %p35
      %p152 = pneg %p32
      %p153 = pneg %p56
      %p154 = pneg %p53
      %p155 = pneg %p77
      %p156 = pneg %p74
      %p157 = pneg %p103
      %p158 = pneg %p100
      %s159 = smul.u32 28, %s14
      %p160 = scmp.lt.s32.totalorder %s159, 195
      %s161 = scalar_select %p160, %s159, 195
      %s162 = smul.addr %s161, 8
      %s163 = scalar_lea.vmem %s3, %s162
      %s164 = smul.u32 28, %s14
      %p165 = scmp.lt.s32.totalorder %s164, 195
      %s166 = scalar_select %p165, %s164, 195
      %s167 = smul.addr %s166, 2
      %s168 = smul.addr %s167, 4
      %s169 = scalar_lea.vmem %s0, %s168
      %s170 = smul.u32 28, %s14
      %s171 = smul.u32 28, %s14
      %p172 = scmp.lt.s32.totalorder %s171, 195
      %s173 = scalar_select %p172, %s171, 195
      %s174 = smul.addr %s173, 8
      %s175 = scalar_lea.vmem %s3, %s174
      %s176 = smul.u32 28, %s14
      %v178 = vld [vmem:[%s169] sm:$0xff]
      %v179 = vld [vmem:[%s169 + $0x8] sm:$0xff]
      %v180 = vld [vmem:[%s169 + $0x10] sm:$0xff]
      %v181 = vld [vmem:[%s169 + $0x18] sm:$0xff]
      %v182 = vld [vmem:[%s169 + $0x20] sm:$0xff]
      %v183 = vld [vmem:[%s169 + $0x28] sm:$0xff]
      %v184 = vld [vmem:[%s169 + $0x30] sm:$0xff]
      %v185 = vld [vmem:[%s169 + $0x38] sm:$0xff]
      %v186 = vld [vmem:[%s169 + $0x40] sm:$0xff]
      %v187 = vld [vmem:[%s169 + $0x48] sm:$0xff]
      %v188 = vld [vmem:[%s169 + $0x50] sm:$0xff]
      %v189 = vld [vmem:[%s169 + $0x58] sm:$0xff]
      %v190 = vld [vmem:[%s169 + $0x60] sm:$0xff]
      %v191 = vld [vmem:[%s169 + $0x68] sm:$0xff]
      %v192 = vld [vmem:[%s169 + $0x70] sm:$0xff]
      %v193 = vld [vmem:[%s169 + $0x78] sm:$0xff]
      %v194 = vld [vmem:[%s169 + $0x80] sm:$0xff]
      %v195 = vld [vmem:[%s169 + $0x88] sm:$0xff]
      %v196 = vld [vmem:[%s169 + $0x90] sm:$0xff]
      %v197 = vld [vmem:[%s169 + $0x98] sm:$0xff]
      %v198 = vld [vmem:[%s169 + $0xa0] sm:$0xff]
      %v199 = vld [vmem:[%s169 + $0xa8] sm:$0xff]
      %v200 = vld [vmem:[%s169 + $0xb0] sm:$0xff]
      %v201 = vld [vmem:[%s169 + $0xb8] sm:$0xff]
      %v202 = vld [vmem:[%s169 + $0xc0] sm:$0xff]
      %v203 = vld [vmem:[%s169 + $0xc8] sm:$0xff]
      %v204 = vld [vmem:[%s169 + $0xd0] sm:$0xff]
      %v205 = vld [vmem:[%s169 + $0xd8] sm:$0xff]
      %v206 = vld [vmem:[%s1] sm:$0xf]
      %v207 = vld [vmem:[%s1 + $0x4] sm:$0xf]
      %v208 = vld [vmem:[%s1 + $0x8] sm:$0xf]
      %v209 = vld [vmem:[%s1 + $0xc] sm:$0xf]
      %v210 = vld [vmem:[%s1 + $0x10] sm:$0xf]
      %v211 = vld [vmem:[%s1 + $0x14] sm:$0xf]
      %v212 = vld [vmem:[%s1 + $0x18] sm:$0xf]
      %v213 = vld [vmem:[%s1 + $0x1c] sm:$0xf]
      %v214 = vld [vmem:[%s1 + $0x20] sm:$0xf]
      %v215 = vld [vmem:[%s1 + $0x24] sm:$0xf]
      %v216 = vld [vmem:[%s1 + $0x28] sm:$0xf]
      %v217 = vld [vmem:[%s1 + $0x2c] sm:$0xf]
      %v218 = vld [vmem:[%s1 + $0x30] sm:$0xf]
      %v219 = vld [vmem:[%s1 + $0x34] sm:$0xf]
      %v220 = vld [vmem:[%s1 + $0x38] sm:$0xf]
      %v221 = vld [vmem:[%s1 + $0x3c] sm:$0xf]
      %v222 = vld [vmem:[%s1 + $0x40] sm:$0xf]
      %v223 = vld [vmem:[%s1 + $0x44] sm:$0xf]
      %v224 = vld [vmem:[%s1 + $0x48] sm:$0xf]
      %v225 = vld [vmem:[%s1 + $0x4c] sm:$0xf]
      %v226 = vld [vmem:[%s1 + $0x50] sm:$0xf]
      %v227 = vld [vmem:[%s1 + $0x54] sm:$0xf]
      %v228 = vld [vmem:[%s1 + $0x58] sm:$0xf]
      %v229 = vld [vmem:[%s1 + $0x5c] sm:$0xf]
      %v230 = vld [vmem:[%s1 + $0x60] sm:$0xf]
      %v231 = vld [vmem:[%s1 + $0x64] sm:$0xf]
      %v232 = vld [vmem:[%s1 + $0x68] sm:$0xf]
      %v233 = vld [vmem:[%s1 + $0x6c] sm:$0xf]
      %v234 = vld [vmem:[%s1 + $0x70] sm:$0xf]
      %v235 = vld [vmem:[%s1 + $0x74] sm:$0xf]
      %v236 = vld [vmem:[%s1 + $0x78] sm:$0xf]
      %v237 = vld [vmem:[%s1 + $0x7c] sm:$0xf]
      %v238 = vld [vmem:[%s2] sm:$0x1]
      %v240 = vlaneseq
      %v241 = vshrl.u32 %v240, 7
      %v242 = vsub.s32 0, %v241
      %v243 = vrot.slane %v238, %v242
      %v273 = vunpack.c.l.b16 %v178
      %v274 = vunpack.c.h.b16 %v178
      %v275 = vunpack.c.l.b16 %v179
      %v276 = vunpack.c.h.b16 %v179
      %v277 = vunpack.c.l.b16 %v180
      %v278 = vunpack.c.h.b16 %v180
      %v279 = vunpack.c.l.b16 %v181
      %v280 = vunpack.c.h.b16 %v181
      %v281 = vunpack.c.l.b16 %v182
      %v282 = vunpack.c.h.b16 %v182
      %v283 = vunpack.c.l.b16 %v183
      %v284 = vunpack.c.h.b16 %v183
      %v285 = vunpack.c.l.b16 %v184
      %v286 = vunpack.c.h.b16 %v184
      %v287 = vunpack.c.l.b16 %v185
      %v288 = vunpack.c.h.b16 %v185
      %v289 = vunpack.c.l.b16 %v186
      %v290 = vunpack.c.h.b16 %v186
      %v291 = vunpack.c.l.b16 %v187
      %v292 = vunpack.c.h.b16 %v187
      %v293 = vunpack.c.l.b16 %v188
      %v294 = vunpack.c.h.b16 %v188
      %v295 = vunpack.c.l.b16 %v189
      %v296 = vunpack.c.h.b16 %v189
      %v297 = vunpack.c.l.b16 %v190
      %v298 = vunpack.c.h.b16 %v190
      %v299 = vunpack.c.l.b16 %v191
      %v300 = vunpack.c.h.b16 %v191
      %v301 = vunpack.c.l.b16 %v192
      %v302 = vunpack.c.h.b16 %v192
      %v303 = vunpack.c.l.b16 %v193
      %v304 = vunpack.c.h.b16 %v193
      %v305 = vunpack.c.l.b16 %v194
      %v306 = vunpack.c.h.b16 %v194
      %v307 = vunpack.c.l.b16 %v195
      %v308 = vunpack.c.h.b16 %v195
      %v309 = vunpack.c.l.b16 %v196
      %v310 = vunpack.c.h.b16 %v196
      %v311 = vunpack.c.l.b16 %v197
      %v312 = vunpack.c.h.b16 %v197
      %v313 = vunpack.c.l.b16 %v198
      %v314 = vunpack.c.h.b16 %v198
      %v315 = vunpack.c.l.b16 %v199
      %v316 = vunpack.c.h.b16 %v199
      %v317 = vunpack.c.l.b16 %v200
      %v318 = vunpack.c.h.b16 %v200
      %v319 = vunpack.c.l.b16 %v201
      %v320 = vunpack.c.h.b16 %v201
      %v321 = vunpack.c.l.b16 %v202
      %v322 = vunpack.c.h.b16 %v202
      %v323 = vunpack.c.l.b16 %v203
      %v324 = vunpack.c.h.b16 %v203
      %v325 = vunpack.c.l.b16 %v204
      %v326 = vunpack.c.h.b16 %v204
      %v327 = vunpack.c.l.b16 %v205
      %v328 = vunpack.c.h.b16 %v205
      %v329 = vpack.c.b16 %v275, %v273
      %v330 = vpack.c.b16 %v276, %v274
      %v331 = vpack.c.b16 %v279, %v277
      %v332 = vpack.c.b16 %v280, %v278
      %v333 = vpack.c.b16 %v283, %v281
      %v334 = vpack.c.b16 %v284, %v282
      %v335 = vpack.c.b16 %v287, %v285
      %v336 = vpack.c.b16 %v288, %v286
      %v337 = vpack.c.b16 %v291, %v289
      %v338 = vpack.c.b16 %v292, %v290
      %v339 = vpack.c.b16 %v295, %v293
      %v340 = vpack.c.b16 %v296, %v294
      %v341 = vpack.c.b16 %v299, %v297
      %v342 = vpack.c.b16 %v300, %v298
      %v343 = vpack.c.b16 %v303, %v301
      %v344 = vpack.c.b16 %v304, %v302
      %v345 = vpack.c.b16 %v307, %v305
      %v346 = vpack.c.b16 %v308, %v306
      %v347 = vpack.c.b16 %v311, %v309
      %v348 = vpack.c.b16 %v312, %v310
      %v349 = vpack.c.b16 %v315, %v313
      %v350 = vpack.c.b16 %v316, %v314
      %v351 = vpack.c.b16 %v319, %v317
      %v352 = vpack.c.b16 %v320, %v318
      %v353 = vpack.c.b16 %v323, %v321
      %v354 = vpack.c.b16 %v324, %v322
      %v355 = vpack.c.b16 %v327, %v325
      %v356 = vpack.c.b16 %v328, %v326
      %v417 = vunpack.c.l.b16 %v206
      %v418 = vunpack.c.l.b16 %v207
      %v419 = vunpack.c.l.b16 %v208
      %v420 = vunpack.c.l.b16 %v209
      %v421 = vunpack.c.l.b16 %v210
      %v422 = vunpack.c.l.b16 %v211
      %v423 = vunpack.c.l.b16 %v212
      %v424 = vunpack.c.l.b16 %v213
      %v425 = vunpack.c.l.b16 %v214
      %v426 = vunpack.c.l.b16 %v215
      %v427 = vunpack.c.l.b16 %v216
      %v428 = vunpack.c.l.b16 %v217
      %v429 = vunpack.c.l.b16 %v218
      %v430 = vunpack.c.l.b16 %v219
      %v431 = vunpack.c.l.b16 %v220
      %v432 = vunpack.c.l.b16 %v221
      %v433 = vunpack.c.l.b16 %v222
      %v434 = vunpack.c.l.b16 %v223
      %v435 = vunpack.c.l.b16 %v224
      %v436 = vunpack.c.l.b16 %v225
      %v437 = vunpack.c.l.b16 %v226
      %v438 = vunpack.c.l.b16 %v227
      %v439 = vunpack.c.l.b16 %v228
      %v440 = vunpack.c.l.b16 %v229
      %v441 = vunpack.c.l.b16 %v230
      %v442 = vunpack.c.l.b16 %v231
      %v443 = vunpack.c.l.b16 %v232
      %v444 = vunpack.c.l.b16 %v233
      %v445 = vunpack.c.l.b16 %v234
      %v446 = vunpack.c.l.b16 %v235
      %v447 = vunpack.c.l.b16 %v236
      %v448 = vunpack.c.l.b16 %v237
      %v449 = vpack.c.b16 %v418, %v417
      %v450 = vpack.c.b16 %v420, %v419
      %v451 = vpack.c.b16 %v422, %v421
      %v452 = vpack.c.b16 %v424, %v423
      %v453 = vpack.c.b16 %v426, %v425
      %v454 = vpack.c.b16 %v428, %v427
      %v455 = vpack.c.b16 %v430, %v429
      %v456 = vpack.c.b16 %v432, %v431
      %v457 = vpack.c.b16 %v434, %v433
      %v458 = vpack.c.b16 %v436, %v435
      %v459 = vpack.c.b16 %v438, %v437
      %v460 = vpack.c.b16 %v440, %v439
      %v461 = vpack.c.b16 %v442, %v441
      %v462 = vpack.c.b16 %v444, %v443
      %v463 = vpack.c.b16 %v446, %v445
      %v464 = vpack.c.b16 %v448, %v447
      %481 = vmatprep.subr.bf16.mxu0 0
      %482 = vmatpush1.bf16.msra.mxu0 %v449
      %483 = vmatprep.subr.bf16.mxu0 0
      %484 = vmatpush1.bf16.msra.mxu0 %v450
      %485 = vmatprep.subr.bf16.mxu0 0
      %486 = vmatpush1.bf16.msra.mxu0 %v451
      %487 = vmatprep.subr.bf16.mxu0 0
      %488 = vmatpush1.bf16.msra.mxu0 %v452
      %489 = vmatprep.subr.bf16.mxu0 0
      %490 = vmatpush1.bf16.msra.mxu0 %v453
      %491 = vmatprep.subr.bf16.mxu0 0
      %492 = vmatpush1.bf16.msra.mxu0 %v454
      %493 = vmatprep.subr.bf16.mxu0 0
      %494 = vmatpush1.bf16.msra.mxu0 %v455
      %495 = vmatprep.subr.bf16.mxu0 0
      %496 = vmatpush1.bf16.msra.mxu0 %v456
      %497 = vmatprep.subr.bf16.mxu0 0
      %498 = vmatpush1.bf16.msra.mxu0 %v457
      %499 = vmatprep.subr.bf16.mxu0 0
      %500 = vmatpush1.bf16.msra.mxu0 %v458
      %501 = vmatprep.subr.bf16.mxu0 0
      %502 = vmatpush1.bf16.msra.mxu0 %v459
      %503 = vmatprep.subr.bf16.mxu0 0
      %504 = vmatpush1.bf16.msra.mxu0 %v460
      %505 = vmatprep.subr.bf16.mxu0 0
      %506 = vmatpush1.bf16.msra.mxu0 %v461
      %507 = vmatprep.subr.bf16.mxu0 0
      %508 = vmatpush1.bf16.msra.mxu0 %v462
      %509 = vmatprep.subr.bf16.mxu0 0
      %510 = vmatpush1.bf16.msra.mxu0 %v463
      %511 = vmatprep.subr.bf16.mxu0 0
      %512 = vmatpush1.bf16.msra.mxu0 %v464
      %513 = vmatprep.mubr.bf16.mxu0 %v330
      %514 = vmatmul.mubr.bf16.gmra.mrb[0].mxu0 %v329
      %v515 = vpop.f32.mrb[0].mxu0
      %v516 = vadd.f32 %v243, %v515
      %v517 = vpop.f32.mrb[0].mxu0
      %v518 = vpop.f32.mrb[0].mxu0
      %v519 = vadd.f32 %v243, %v518
      %v520 = vpop.f32.mrb[0].mxu0
      %521 = vmatprep.mubr.bf16.mxu0 %v332
      %522 = vmatmul.mubr.bf16.gmra.mrb[0].mxu0 %v331
      %v523 = vpop.f32.mrb[0].mxu0
      %v524 = vadd.f32 %v243, %v523
      %v525 = vpop.f32.mrb[0].mxu0
      %v526 = vpop.f32.mrb[0].mxu0
      %v527 = vadd.f32 %v243, %v526
      %v528 = vpop.f32.mrb[0].mxu0
      %529 = vmatprep.mubr.bf16.mxu0 %v334
      %530 = vmatmul.mubr.bf16.gmra.mrb[0].mxu0 %v333
      %v531 = vpop.f32.mrb[0].mxu0
      %v532 = vadd.f32 %v243, %v531
      %v533 = vpop.f32.mrb[0].mxu0
      %v534 = vpop.f32.mrb[0].mxu0
      %v535 = vadd.f32 %v243, %v534
      %v536 = vpop.f32.mrb[0].mxu0
      %537 = vmatprep.mubr.bf16.mxu0 %v336
      %538 = vmatmul.mubr.bf16.gmra.mrb[0].mxu0 %v335
      %v539 = vpop.f32.mrb[0].mxu0
      %v540 = vadd.f32 %v243, %v539
      %v541 = vpop.f32.mrb[0].mxu0
      %v542 = vpop.f32.mrb[0].mxu0
      %v543 = vadd.f32 %v243, %v542
      %v544 = vpop.f32.mrb[0].mxu0
      %545 = vmatprep.mubr.bf16.mxu0 %v338
      %546 = vmatmul.mubr.bf16.gmra.mrb[0].mxu0 %v337
      %v547 = vpop.f32.mrb[0].mxu0
      %v548 = vadd.f32 %v243, %v547
      %v549 = vpop.f32.mrb[0].mxu0
      %v550 = vpop.f32.mrb[0].mxu0
      %v551 = vadd.f32 %v243, %v550
      %v552 = vpop.f32.mrb[0].mxu0
      %553 = vmatprep.mubr.bf16.mxu0 %v340
      %554 = vmatmul.mubr.bf16.gmra.mrb[0].mxu0 %v339
      %v555 = vpop.f32.mrb[0].mxu0
      %v556 = vadd.f32 %v243, %v555
      %v557 = vpop.f32.mrb[0].mxu0
      %v558 = vpop.f32.mrb[0].mxu0
      %v559 = vadd.f32 %v243, %v558
      %v560 = vpop.f32.mrb[0].mxu0
      %561 = vmatprep.mubr.bf16.mxu0 %v342
      %562 = vmatmul.mubr.bf16.gmra.mrb[0].mxu0 %v341
      %v563 = vpop.f32.mrb[0].mxu0
      %v564 = vadd.f32 %v243, %v563
      %v565 = vpop.f32.mrb[0].mxu0
      %v566 = vpop.f32.mrb[0].mxu0
      %v567 = vadd.f32 %v243, %v566
      %v568 = vpop.f32.mrb[0].mxu0
      %569 = vmatprep.mubr.bf16.mxu0 %v344
      %570 = vmatmul.mubr.bf16.gmra.mrb[0].mxu0 %v343
      %v571 = vpop.f32.mrb[0].mxu0
      %v572 = vadd.f32 %v243, %v571
      %v573 = vpop.f32.mrb[0].mxu0
      %v574 = vpop.f32.mrb[0].mxu0
      %v575 = vadd.f32 %v243, %v574
      %v576 = vpop.f32.mrb[0].mxu0
      %577 = vmatprep.mubr.bf16.mxu0 %v346
      %578 = vmatmul.mubr.bf16.gmra.mrb[0].mxu0 %v345
      %v579 = vpop.f32.mrb[0].mxu0
      %v580 = vadd.f32 %v243, %v579
      %v581 = vpop.f32.mrb[0].mxu0
      %v582 = vpop.f32.mrb[0].mxu0
      %v583 = vadd.f32 %v243, %v582
      %v584 = vpop.f32.mrb[0].mxu0
      %585 = vmatprep.mubr.bf16.mxu0 %v348
      %586 = vmatmul.mubr.bf16.gmra.mrb[0].mxu0 %v347
      %v587 = vpop.f32.mrb[0].mxu0
      %v588 = vadd.f32 %v243, %v587
      %v589 = vpop.f32.mrb[0].mxu0
      %v590 = vpop.f32.mrb[0].mxu0
      %v591 = vadd.f32 %v243, %v590
      %v592 = vpop.f32.mrb[0].mxu0
      %593 = vmatprep.mubr.bf16.mxu0 %v350
      %594 = vmatmul.mubr.bf16.gmra.mrb[0].mxu0 %v349
      %v595 = vpop.f32.mrb[0].mxu0
      %v596 = vadd.f32 %v243, %v595
      %v597 = vpop.f32.mrb[0].mxu0
      %v598 = vpop.f32.mrb[0].mxu0
      %v599 = vadd.f32 %v243, %v598
      %v600 = vpop.f32.mrb[0].mxu0
      %601 = vmatprep.mubr.bf16.mxu0 %v352
      %602 = vmatmul.mubr.bf16.gmra.mrb[0].mxu0 %v351
      %v603 = vpop.f32.mrb[0].mxu0
      %v604 = vadd.f32 %v243, %v603
      %v605 = vpop.f32.mrb[0].mxu0
      %v606 = vpop.f32.mrb[0].mxu0
      %v607 = vadd.f32 %v243, %v606
      %v608 = vpop.f32.mrb[0].mxu0
      %609 = vmatprep.mubr.bf16.mxu0 %v354
      %610 = vmatmul.mubr.bf16.gmra.mrb[0].mxu0 %v353
      %v611 = vpop.f32.mrb[0].mxu0
      %v612 = vadd.f32 %v243, %v611
      %v613 = vpop.f32.mrb[0].mxu0
      %v614 = vpop.f32.mrb[0].mxu0
      %v615 = vadd.f32 %v243, %v614
      %v616 = vpop.f32.mrb[0].mxu0
      %617 = vmatprep.mubr.bf16.mxu0 %v356
      %618 = vmatmul.mubr.bf16.gmra.mrb[0].mxu0 %v355
      %v619 = vpop.f32.mrb[0].mxu0
      %v620 = vadd.f32 %v243, %v619
      %v621 = vpop.f32.mrb[0].mxu0
      %v622 = vpop.f32.mrb[0].mxu0
      %v623 = vadd.f32 %v243, %v622
      %v624 = vpop.f32.mrb[0].mxu0
      %625 = vdwg.mxu0
      %626 = vst [vmem:[%s175] sm:$0xff] %v516
      %627 = vst [vmem:[%s175 + $0x8] sm:$0xff] %v519
      %628 = vst [vmem:[%s175 + $0x10] sm:$0xff] %v524
      %629 = vst [vmem:[%s175 + $0x18] sm:$0xff] %v527
      %630 = vst [vmem:[%s175 + $0x20] sm:$0xff] %v532
      %631 = vst [vmem:[%s175 + $0x28] sm:$0xff] %v535
      %632 = vst [vmem:[%s175 + $0x30] sm:$0xff] %v540
      %633 = vst [vmem:[%s175 + $0x38] sm:$0xff] %v543
      %634 = vst [vmem:[%s175 + $0x40] sm:$0xff] %v548
      %635 = vst [vmem:[%s175 + $0x48] sm:$0xff] %v551
      %636 = vst [vmem:[%s175 + $0x50] sm:$0xff] %v556
      %637 = vst [vmem:[%s175 + $0x58] sm:$0xff] %v559
      %638 = vst [vmem:[%s175 + $0x60] sm:$0xff] %v564
      %639 = vst [vmem:[%s175 + $0x68] sm:$0xff] %v567
      %640 = vst [vmem:[%s175 + $0x70] sm:$0xff] %v572
      %641 = vst [vmem:[%s175 + $0x78] sm:$0xff] %v575
      %642 = vst [vmem:[%s175 + $0x80] sm:$0xff] %v580
      %643 = vst [vmem:[%s175 + $0x88] sm:$0xff] %v583
      %644 = vst [vmem:[%s175 + $0x90] sm:$0xff] %v588
      %645 = vst [vmem:[%s175 + $0x98] sm:$0xff] %v591
      %646 = vst [vmem:[%s175 + $0xa0] sm:$0xff] %v596
      %647 = vst [vmem:[%s175 + $0xa8] sm:$0xff] %v599
      %648 = vst [vmem:[%s175 + $0xb0] sm:$0xff] %v604
      %649 = vst [vmem:[%s175 + $0xb8] sm:$0xff] %v607
      %650 = vst [vmem:[%s175 + $0xc0] sm:$0xff] %v612
      %651 = vst [vmem:[%s175 + $0xc8] sm:$0xff] %v615
      %652 = vst [vmem:[%s175 + $0xd0] sm:$0xff] %v620
      %653 = vst [vmem:[%s175 + $0xd8] sm:$0xff] %v623
      %s654 = smul.u32 28, %s14
      %p655 = scmp.lt.s32.totalorder %s654, 195
      %s656 = scalar_select %p655, %s654, 195
      %s657 = smul.addr %s656, 8
      %s658 = scalar_lea.vmem %s3, %s657
      // Predicated region
      $region33: #{autoencoder_forward.9} parent=31 // pred_check
        %p659 = pneg %p100
      $region34: #{autoencoder_forward.9} parent=31 // pred_check_branch
        %661 = sbr.rel (%p659) target = $region36
      $region35: #{autoencoder_forward.9} parent=31 // pred_region
        %s662 = smul.u32 28, %s14
      $region36: #{autoencoder_forward.9} parent=31 // pred_fallthru
        _
    $region32: #{autoencoder_forward.9} parent=5 // pred_fallthru
      _
    %p663 = scmp.le.s32.totalorder 2, %s9
    // Predicated region
    $region37: #{autoencoder_forward.9} parent=5 // pred_check
      %p664 = pneg %p663
    $region38: #{autoencoder_forward.9} parent=5 // pred_check_branch
      %666 = sbr.rel (%p664) target = $region40
    $region39: #{autoencoder_forward.9} parent=5 // pred_region
      %s667 = ssub.s32 %s9, 2
      // Predicated region
      $region41: #{autoencoder_forward.9} parent=39 // pred_check
        %p668 = pneg %p106
      $region42: #{autoencoder_forward.9} parent=39 // pred_check_branch
        %670 = sbr.rel (%p668) target = $region44
      $region43: #{autoencoder_forward.9} parent=39 // pred_region
        %s671 = smul.u32 28, %s15
        %p672 = scmp.lt.s32.totalorder %s671, 195
        %s673 = scalar_select %p672, %s671, 195
        %s674 = smul.addr %s673, 8
        %s675 = scalar_lea.vmem %s3, %s674
      $region44: #{autoencoder_forward.9} parent=39 // pred_fallthru
        _
    $region40: #{autoencoder_forward.9} parent=5 // pred_fallthru
      _
  $region6: #{autoencoder_forward.9} parent=0 // loop_footer
    %s13 = sadd.s32 1, %s9
  $region7: #{autoencoder_forward.9} parent=0 // loop_footer_branch
    %8 = sbr.rel target = $region3
  $region8: #{autoencoder_forward.9} parent=0 // loop_exit
    _

</llo_original>
